<compile_context>
chip_gen: v5e
topology: v5e:2x2
jax: 0.10.0
libtpu: 0.0.40
codegen_flags: <defaults>
</compile_context>

<pallas_src>
import functools
import math

import jax
import jax.numpy as jnp
from jax.experimental import pallas as pl
from jax.experimental.pallas import tpu as pltpu


C_MID = 64          # hidden channel count of the model
C_IN_PAD = 8        # conv1 input channels padded 3 -> 8 (lane alignment)
C_OUT_PAD = 8       # conv4 output channels padded 3 -> 8 (lane-dense stores)


def _row_tile(h, target):
    """Largest divisor of h that is <= target."""
    t = max(1, min(h, target))
    while h % t:
        t -= 1
    return t


def _mosaic_params(vmem_est_bytes):
    limit = int(min(max(4 * vmem_est_bytes, 16 * 1024 * 1024), 48 * 1024 * 1024))
    return pltpu.CompilerParams(
        dimension_semantics=("parallel", "parallel"),
        vmem_limit_bytes=limit,
    )


# ---------------------------------------------------------------------------
# Stage A: conv1(3->64)+ReLU + conv2(64->64)+ReLU, fused, row-tiled over H.
# ---------------------------------------------------------------------------
def _stage_a_kernel(x_ref, w1_ref, b1_ref, w2_ref, b2_ref, o_ref,
                    mid_buf, p1_buf, p2_buf, *, TH, H, W):
    # x_ref : (1, H+4, W+2, C_IN_PAD) bf16  spatially pre-padded input (resident)
    # w1    : (9*C_IN_PAD, 64) bf16 ; w2 : (576, 64) bf16 ; b1/b2 : (1, 64) f32
    # o_ref : (1, TH, W, 64) bf16           rows [i*TH, i*TH+TH) of conv2 output
    # mid_buf : (TH+2, W+2, 64) bf16        conv1 output + zero borders (VMEM only)
    # p1_buf  : (TH+2, W, 9*C_IN_PAD) bf16  conv1 im2col patches
    # p2_buf  : (TH,   W, 576)        bf16  conv2 im2col patches
    i = pl.program_id(1)
    r1 = TH + 2                       # conv1 rows needed (1-row halo each side)

    # ---- conv1: im2col -> one (r1*W, 72) @ (72, 64) MXU matmul ----
    for ky in range(3):
        for kx in range(3):
            k = ky * 3 + kx
            p1_buf[:, :, k * C_IN_PAD:(k + 1) * C_IN_PAD] = (
                x_ref[0, pl.ds(i * TH + ky, r1), pl.ds(kx, W), :])
    y1 = jnp.dot(p1_buf[...].reshape(r1 * W, 9 * C_IN_PAD), w1_ref[...],
                 preferred_element_type=jnp.float32)
    y1 = jnp.maximum(y1 + b1_ref[...], 0.0).reshape(r1, W, C_MID)
    # conv1 halo rows outside the image must be ZERO for conv2's padding
    # (relu(bias) != 0, so mask explicitly).
    g = i * TH - 1 + jax.lax.broadcasted_iota(jnp.int32, (r1, 1, 1), 0)
    y1 = jnp.where(jnp.logical_and(g >= 0, g < H), y1, 0.0)

    mid_buf[:, 1:W + 1, :] = y1.astype(jnp.bfloat16)
    mid_buf[:, 0:1, :] = jnp.zeros((r1, 1, C_MID), jnp.bfloat16)
    mid_buf[:, W + 1:W + 2, :] = jnp.zeros((r1, 1, C_MID), jnp.bfloat16)

    # ---- conv2: im2col -> one (TH*W, 576) @ (576, 64) MXU matmul ----
    for ky in range(3):
        for kx in range(3):
            k = ky * 3 + kx
            p2_buf[:, :, k * C_MID:(k + 1) * C_MID] = (
                mid_buf[ky:ky + TH, kx:kx + W, :])
    y2 = jnp.dot(p2_buf[...].reshape(TH * W, 9 * C_MID), w2_ref[...],
                 preferred_element_type=jnp.float32)
    y2 = jnp.maximum(y2 + b2_ref[...], 0.0)
    o_ref[0] = y2.reshape(TH, W, C_MID).astype(jnp.bfloat16)


def _stage_a(xp, w1, b1, w2, b2, *, H, W):
    N = xp.shape[0]
    TH = _row_tile(H, 8)
    grid = (N, H // TH)
    est = (2 * ((H + 4) * (W + 2) * C_IN_PAD * 2 + TH * W * C_MID * 2)
           + (9 * C_IN_PAD + 9 * C_MID) * C_MID * 2
           + ((TH + 2) * (W + 2) * C_MID
              + (TH + 2) * W * 9 * C_IN_PAD
              + TH * W * 9 * C_MID) * 2)
    kernel = functools.partial(_stage_a_kernel, TH=TH, H=H, W=W)
    return pl.pallas_call(
        kernel,
        out_shape=jax.ShapeDtypeStruct((N, H, W, C_MID), jnp.bfloat16),
        grid_spec=pltpu.PrefetchScalarGridSpec(
            num_scalar_prefetch=0,
            grid=grid,
            in_specs=[
                # the small 8-channel padded image stays resident per batch elem
                pl.BlockSpec((1, H + 4, W + 2, C_IN_PAD), lambda n, i: (n, 0, 0, 0)),
                pl.BlockSpec((9 * C_IN_PAD, C_MID), lambda n, i: (0, 0)),
                pl.BlockSpec((1, C_MID), lambda n, i: (0, 0)),
                pl.BlockSpec((9 * C_MID, C_MID), lambda n, i: (0, 0)),
                pl.BlockSpec((1, C_MID), lambda n, i: (0, 0)),
            ],
            out_specs=pl.BlockSpec((1, TH, W, C_MID), lambda n, i: (n, i, 0, 0)),
            scratch_shapes=[
                pltpu.VMEM((TH + 2, W + 2, C_MID), jnp.bfloat16),
                pltpu.VMEM((TH + 2, W, 9 * C_IN_PAD), jnp.bfloat16),
                pltpu.VMEM((TH, W, 9 * C_MID), jnp.bfloat16),
            ],
        ),
        compiler_params=_mosaic_params(est),
    )(xp, w1, b1, w2, b2)


# ---------------------------------------------------------------------------
# Stage B: bilinear upsample (align_corners=False) + conv3+ReLU + conv4,
# fused, row-tiled over output rows.
# ---------------------------------------------------------------------------
def _stage_b_kernel(feat_ref, w3_ref, b3_ref, w4_ref, b4_ref, o_ref,
                    ups_buf, u_buf, c3_buf, pat_buf, *, s, THf, H, W, Ho):
    # feat_ref : (1, H, W, 64) bf16      whole feature map, resident per batch
    # o_ref    : (1, THo, W, s*C_OUT_PAD) f32
    #            (final image column w*s + p lives at [.., w, p*Cp + c])
    # ups_buf  : (THo+4, W+2, 64)   H-upsampled rows, replicate-edge columns
    # u_buf    : (s, THo+4, W+2, 64) W-upsample phase arrays, zero border cols
    # c3_buf   : (s, THo+2, W+2, 64) conv3 output phases, zero border cols
    # pat_buf  : (THo+2, W, 576)     shared im2col scratch
    j = pl.program_id(1)
    THo = s * THf
    r_up = THo + 4                    # upsampled rows needed (2-row halo)
    r3 = THo + 2                      # conv3 output rows needed (1-row halo)

    # ---- bilinear upsample along H: 2-tap lerp per output row --------------
    for r in range(r_up):
        t = r - 2                                     # output-row offset in tile
        v = (t + 0.5) / s - 0.5
        f0 = int(math.floor(v))
        lam = v - f0
        i0 = jnp.clip(j * THf + f0, 0, H - 1)
        i1 = jnp.clip(j * THf + f0 + 1, 0, H - 1)
        row0 = feat_ref[0, pl.ds(i0, 1), :, :].astype(jnp.float32)
        row1 = feat_ref[0, pl.ds(i1, 1), :, :].astype(jnp.float32)
        row = (1.0 - lam) * row0 + lam * row1         # (1, W, 64)
        ho = j * THo + t
        valid = jnp.logical_and(ho >= 0, ho < Ho).astype(jnp.float32)
        ups_buf[r:r + 1, 1:W + 1, :] = (row * valid).astype(jnp.bfloat16)
    # replicate edge columns (source-index clamping of the width upsample)
    ups_buf[:, 0:1, :] = ups_buf[:, 1:2, :]
    ups_buf[:, W + 1:W + 2, :] = ups_buf[:, W:W + 1, :]

    # ---- bilinear upsample along W: s phase arrays (no interleave needed) ---
    for p in range(s):
        v = (p + 0.5) / s - 0.5
        d0 = int(math.floor(v))
        lam = v - d0
        a = ups_buf[:, 1 + d0:1 + d0 + W, :].astype(jnp.float32)
        b = ups_buf[:, 2 + d0:2 + d0 + W, :].astype(jnp.float32)
        u_buf[p, :, 1:W + 1, :] = ((1.0 - lam) * a + lam * b).astype(jnp.bfloat16)
    u_buf[:, :, 0:1, :] = jnp.zeros((s, r_up, 1, C_MID), jnp.bfloat16)
    u_buf[:, :, W + 1:W + 2, :] = jnp.zeros((s, r_up, 1, C_MID), jnp.bfloat16)

    # ---- conv3 (+ReLU), per width-phase -------------------------------------
    for p in range(s):
        for ky in range(3):
            for kxs in (-1, 0, 1):
                q = (p + kxs) % s                     # source phase
                sh = (p + kxs) // s                   # column shift (-1, 0, +1)
                k = ky * 3 + (kxs + 1)
                pat_buf[0:r3, :, k * C_MID:(k + 1) * C_MID] = (
                    u_buf[q, ky:ky + r3, 1 + sh:1 + sh + W, :])
        y3 = jnp.dot(pat_buf[...].reshape(r3 * W, 9 * C_MID), w3_ref[...],
                     preferred_element_type=jnp.float32)
        y3 = jnp.maximum(y3 + b3_ref[...], 0.0).reshape(r3, W, C_MID)
        g = j * THo - 1 + jax.lax.broadcasted_iota(jnp.int32, (r3, 1, 1), 0)
        y3 = jnp.where(jnp.logical_and(g >= 0, g < Ho), y3, 0.0)
        c3_buf[p, :, 1:W + 1, :] = y3.astype(jnp.bfloat16)
    c3_buf[:, :, 0:1, :] = jnp.zeros((s, r3, 1, C_MID), jnp.bfloat16)
    c3_buf[:, :, W + 1:W + 2, :] = jnp.zeros((s, r3, 1, C_MID), jnp.bfloat16)

    # ---- conv4 (64 -> C_OUT_PAD), per width-phase ----------------------------
    for p in range(s):
        for ky in range(3):
            for kxs in (-1, 0, 1):
                q = (p + kxs) % s
                sh = (p + kxs) // s
                k = ky * 3 + (kxs + 1)
                pat_buf[0:THo, :, k * C_MID:(k + 1) * C_MID] = (
                    c3_buf[q, ky:ky + THo, 1 + sh:1 + sh + W, :])
        y4 = jnp.dot(pat_buf[0:THo, :, :].reshape(THo * W, 9 * C_MID), w4_ref[...],
                     preferred_element_type=jnp.float32)
        y4 = (y4 + b4_ref[...]).reshape(THo, W, C_OUT_PAD)
        o_ref[0, :, :, p * C_OUT_PAD:(p + 1) * C_OUT_PAD] = y4


def _stage_b(feat, w3, b3, w4, b4, *, s, H, W):
    N = feat.shape[0]
    Ho = H * s
    THf = _row_tile(H, 8)
    THo = s * THf
    grid = (N, H // THf)
    est = (2 * (H * W * C_MID * 2 + THo * W * s * C_OUT_PAD * 4)
           + (9 * C_MID * C_MID + 9 * C_MID * C_OUT_PAD) * 2
           + ((THo + 4) * (W + 2) * C_MID * (1 + s)
              + (THo + 2) * (W + 2) * C_MID * s
              + (THo + 2) * W * 9 * C_MID) * 2)
    kernel = functools.partial(_stage_b_kernel, s=s, THf=THf, H=H, W=W, Ho=Ho)
    return pl.pallas_call(
        kernel,
        out_shape=jax.ShapeDtypeStruct((N, Ho, W, s * C_OUT_PAD), jnp.float32),
        grid_spec=pltpu.PrefetchScalarGridSpec(
            num_scalar_prefetch=0,
            grid=grid,
            in_specs=[
                pl.BlockSpec((1, H, W, C_MID), lambda n, j: (n, 0, 0, 0)),
                pl.BlockSpec((9 * C_MID, C_MID), lambda n, j: (0, 0)),
                pl.BlockSpec((1, C_MID), lambda n, j: (0, 0)),
                pl.BlockSpec((9 * C_MID, C_OUT_PAD), lambda n, j: (0, 0)),
                pl.BlockSpec((1, C_OUT_PAD), lambda n, j: (0, 0)),
            ],
            out_specs=pl.BlockSpec((1, THo, W, s * C_OUT_PAD),
                                   lambda n, j: (n, j, 0, 0)),
            scratch_shapes=[
                pltpu.VMEM((THo + 4, W + 2, C_MID), jnp.bfloat16),
                pltpu.VMEM((s, THo + 4, W + 2, C_MID), jnp.bfloat16),
                pltpu.VMEM((s, THo + 2, W + 2, C_MID), jnp.bfloat16),
                pltpu.VMEM((THo + 2, W, 9 * C_MID), jnp.bfloat16),
            ],
        ),
        compiler_params=_mosaic_params(est),
    )(feat, w3, b3, w4, b4)


# ---------------------------------------------------------------------------
# Full model forward
# ---------------------------------------------------------------------------
def init_params(key):
    """Deterministic synthetic parameters (HWIO conv weights).
    Real PyTorch OIHW weights would need a transpose to HWIO."""
    ks = jax.random.split(key, 8)

    def conv_p(kw, kb, cin, cout):
        fan_in = cin * 9
        w = jax.random.normal(kw, (3, 3, cin, cout), jnp.float32) * (fan_in ** -0.5)
        b = jax.random.normal(kb, (cout,), jnp.float32) * 0.01
        return w, b

    w1, b1 = conv_p(ks[0], ks[1], 3, 64)
    w2, b2 = conv_p(ks[2], ks[3], 64, 64)
    w3, b3 = conv_p(ks[4], ks[5], 64, 64)
    w4, b4 = conv_p(ks[6], ks[7], 64, 3)
    return dict(w1=w1, b1=b1, w2=w2, b2=b2, w3=w3, b3=b3, w4=w4, b4=b4)


def upsampling_model_forward(params, x_nchw, scale_factor):
    """x_nchw: (N, 3, H, W) float32 -> (N, 3, H*s, W*s) float32."""
    s = int(scale_factor)
    N, Cin, H, W = x_nchw.shape

    # NCHW -> NHWC, pad channels 3->8, pad spatially ONCE (2 rows / 1 col), bf16.
    x = jnp.transpose(x_nchw, (0, 2, 3, 1))
    xp = jnp.pad(x, ((0, 0), (2, 2), (1, 1), (0, C_IN_PAD - Cin))).astype(jnp.bfloat16)

    # Weights -> im2col layout (9*Cin, Cout) bf16; biases stay f32.
    w1 = jnp.pad(params["w1"], ((0, 0), (0, 0), (0, C_IN_PAD - Cin), (0, 0)))
    w1 = w1.reshape(9 * C_IN_PAD, C_MID).astype(jnp.bfloat16)
    b1 = params["b1"].reshape(1, C_MID).astype(jnp.float32)
    w2 = params["w2"].reshape(9 * C_MID, C_MID).astype(jnp.bfloat16)
    b2 = params["b2"].reshape(1, C_MID).astype(jnp.float32)
    w3 = params["w3"].reshape(9 * C_MID, C_MID).astype(jnp.bfloat16)
    b3 = params["b3"].reshape(1, C_MID).astype(jnp.float32)
    w4 = jnp.pad(params["w4"], ((0, 0), (0, 0), (0, 0), (0, C_OUT_PAD - 3)))
    w4 = w4.reshape(9 * C_MID, C_OUT_PAD).astype(jnp.bfloat16)
    b4 = jnp.pad(params["b4"], (0, C_OUT_PAD - 3)).reshape(1, C_OUT_PAD)
    b4 = b4.astype(jnp.float32)

    feat = _stage_a(xp, w1, b1, w2, b2, H=H, W=W)            # (N, H, W, 64) bf16
    out = _stage_b(feat, w3, b3, w4, b4, s=s, H=H, W=W)      # (N, Ho, W, s*8) f32
    out = out.reshape(N, H * s, W * s, C_OUT_PAD)[..., :3]   # free reshape + slice
    return jnp.transpose(out, (0, 3, 1, 2))                  # NHWC -> NCHW


# ---------------------------------------------------------------------------
# Pure-JAX f32 reference (for a loose bf16-tolerance check)
# ---------------------------------------------------------------------------
def _reference_forward(params, x_nchw, s):
    def conv(x, w, b, relu):
        y = jax.lax.conv_general_dilated(
            x, w, window_strides=(1, 1), padding="SAME",
            dimension_numbers=("NHWC", "HWIO", "NHWC"))
        y = y + b
        return jnp.maximum(y, 0.0) if relu else y

    def upsample(x):
        _, H, W, _ = x.shape

        def taps(size):
            raw = (jnp.arange(size * s, dtype=jnp.float32) + 0.5) / s - 0.5
            f = jnp.floor(raw)
            i0 = jnp.clip(f, 0, size - 1).astype(jnp.int32)
            i1 = jnp.clip(f + 1, 0, size - 1).astype(jnp.int32)
            return i0, i1, raw - f

        i0, i1, lh = taps(H)
        x = ((1 - lh)[None, :, None, None] * x[:, i0]
             + lh[None, :, None, None] * x[:, i1])
        j0, j1, lw = taps(W)
        x = ((1 - lw)[None, None, :, None] * x[:, :, j0]
             + lw[None, None, :, None] * x[:, :, j1])
        return x

    x = jnp.transpose(x_nchw, (0, 2, 3, 1)).astype(jnp.float32)
    x = conv(x, params["w1"], params["b1"], True)
    x = conv(x, params["w2"], params["b2"], True)
    x = upsample(x)
    x = conv(x, params["w3"], params["b3"], True)
    x = conv(x, params["w4"], params["b4"], False)
    return jnp.transpose(x, (0, 3, 1, 2))


if __name__ == "__main__":
    scale_factor = 2
    N, C, H, W = 2, 3, 16, 16

    key = jax.random.PRNGKey(0)
    k_x, k_p = jax.random.split(key)
    x = jax.random.normal(k_x, (N, C, H, W), jnp.float32)
    params = init_params(k_p)

    out = upsampling_model_forward(params, x, scale_factor)
    out = jax.block_until_ready(out)

    assert out.shape == (N, C, H * scale_factor, W * scale_factor), out.shape
    assert out.dtype == jnp.float32

    ref = _reference_forward(params, x, scale_factor)
    err = float(jnp.max(jnp.abs(out - ref)))
    assert err < 0.25, f"mismatch vs reference: max abs err = {err}"
    print("KERNEL_OK")
</pallas_src>

<mosaic_0001>
module attributes {stable_mosaic.version = 11 : i64} {
  func.func @_stage_a_kernel(%arg0: i32, %arg1: i32, %arg2: memref<1x20x18x8xbf16, #tpu.memory_space<vmem>>, %arg3: memref<72x64xbf16, #tpu.memory_space<vmem>>, %arg4: memref<1x64xf32, #tpu.memory_space<vmem>>, %arg5: memref<576x64xbf16, #tpu.memory_space<vmem>>, %arg6: memref<1x64xf32, #tpu.memory_space<vmem>>, %arg7: memref<1x8x16x64xbf16, #tpu.memory_space<vmem>>, %arg8: memref<10x18x64xbf16, #tpu.memory_space<vmem>>, %arg9: memref<10x16x72xbf16, #tpu.memory_space<vmem>>, %arg10: memref<8x16x576xbf16, #tpu.memory_space<vmem>>) attributes {dimension_semantics = [#tpu.dimension_semantics<parallel>, #tpu.dimension_semantics<parallel>], iteration_bounds = array<i64: 2, 2>, scalar_prefetch = 0 : i64, scratch_operands = 3 : i64, tpu.core_type = #tpu.core_type<tc>, window_params = [{transform_indices = @transform_0, window_bounds = array<i64: 1, 20, 18, 8>}, {pipeline_mode = #tpu.pipeline_mode<synchronous>, transform_indices = @transform_1, window_bounds = array<i64: 72, 64>}, {pipeline_mode = #tpu.pipeline_mode<synchronous>, transform_indices = @transform_2, window_bounds = array<i64: 1, 64>}, {pipeline_mode = #tpu.pipeline_mode<synchronous>, transform_indices = @transform_3, window_bounds = array<i64: 576, 64>}, {pipeline_mode = #tpu.pipeline_mode<synchronous>, transform_indices = @transform_4, window_bounds = array<i64: 1, 64>}, {transform_indices = @transform_5, window_bounds = array<i64: 1, 8, 16, 64>}]} {
    %c8_i32 = arith.constant 8 : i32
    %0 = arith.muli %arg1, %c8_i32 : i32
    %c0_i32 = arith.constant 0 : i32
    %1 = arith.addi %0, %c0_i32 : i32
    %c0 = arith.constant 0 : index
    %2 = arith.index_cast %1 : i32 to index
    %c0_0 = arith.constant 0 : index
    %c0_1 = arith.constant 0 : index
    %3 = vector.load %arg2[%c0, %2, %c0_0, %c0_1] : memref<1x20x18x8xbf16, #tpu.memory_space<vmem>>, vector<1x10x16x8xbf16>
    %4 = vector.shape_cast %3 : vector<1x10x16x8xbf16> to vector<10x16x8xbf16>
    %c0_2 = arith.constant 0 : index
    %c0_3 = arith.constant 0 : index
    %c0_4 = arith.constant 0 : index
    %5 = vector.load %arg9[%c0_2, %c0_3, %c0_4] : memref<10x16x72xbf16, #tpu.memory_space<vmem>>, vector<10x16x8xbf16>
    tpu.vector_store %arg9[%c0_2, %c0_3, %c0_4], %4 {strides = array<i32>} : memref<10x16x72xbf16, #tpu.memory_space<vmem>>, vector<10x16x8xbf16>,
    %c8_i32_5 = arith.constant 8 : i32
    %6 = arith.muli %arg1, %c8_i32_5 : i32
    %c0_i32_6 = arith.constant 0 : i32
    %7 = arith.addi %6, %c0_i32_6 : i32
    %c0_7 = arith.constant 0 : index
    %8 = arith.index_cast %7 : i32 to index
    %c1 = arith.constant 1 : index
    %c0_8 = arith.constant 0 : index
    %9 = vector.load %arg2[%c0_7, %8, %c1, %c0_8] : memref<1x20x18x8xbf16, #tpu.memory_space<vmem>>, vector<1x10x16x8xbf16>
    %10 = vector.shape_cast %9 : vector<1x10x16x8xbf16> to vector<10x16x8xbf16>
    %c0_9 = arith.constant 0 : index
    %c0_10 = arith.constant 0 : index
    %c8 = arith.constant 8 : index
    %11 = vector.load %arg9[%c0_9, %c0_10, %c8] : memref<10x16x72xbf16, #tpu.memory_space<vmem>>, vector<10x16x8xbf16>
    tpu.vector_store %arg9[%c0_9, %c0_10, %c8], %10 {strides = array<i32>} : memref<10x16x72xbf16, #tpu.memory_space<vmem>>, vector<10x16x8xbf16>,
    %c8_i32_11 = arith.constant 8 : i32
    %12 = arith.muli %arg1, %c8_i32_11 : i32
    %c0_i32_12 = arith.constant 0 : i32
    %13 = arith.addi %12, %c0_i32_12 : i32
    %c0_13 = arith.constant 0 : index
    %14 = arith.index_cast %13 : i32 to index
    %c2 = arith.constant 2 : index
    %c0_14 = arith.constant 0 : index
    %15 = vector.load %arg2[%c0_13, %14, %c2, %c0_14] : memref<1x20x18x8xbf16, #tpu.memory_space<vmem>>, vector<1x10x16x8xbf16>
    %16 = vector.shape_cast %15 : vector<1x10x16x8xbf16> to vector<10x16x8xbf16>
    %c0_15 = arith.constant 0 : index
    %c0_16 = arith.constant 0 : index
    %c16 = arith.constant 16 : index
    %17 = vector.load %arg9[%c0_15, %c0_16, %c16] : memref<10x16x72xbf16, #tpu.memory_space<vmem>>, vector<10x16x8xbf16>
    tpu.vector_store %arg9[%c0_15, %c0_16, %c16], %16 {strides = array<i32>} : memref<10x16x72xbf16, #tpu.memory_space<vmem>>, vector<10x16x8xbf16>,
    %c8_i32_17 = arith.constant 8 : i32
    %18 = arith.muli %arg1, %c8_i32_17 : i32
    %c1_i32 = arith.constant 1 : i32
    %19 = arith.addi %18, %c1_i32 : i32
    %c0_18 = arith.constant 0 : index
    %20 = arith.index_cast %19 : i32 to index
    %c0_19 = arith.constant 0 : index
    %c0_20 = arith.constant 0 : index
    %21 = vector.load %arg2[%c0_18, %20, %c0_19, %c0_20] : memref<1x20x18x8xbf16, #tpu.memory_space<vmem>>, vector<1x10x16x8xbf16>
    %22 = vector.shape_cast %21 : vector<1x10x16x8xbf16> to vector<10x16x8xbf16>
    %c0_21 = arith.constant 0 : index
    %c0_22 = arith.constant 0 : index
    %c24 = arith.constant 24 : index
    %23 = vector.load %arg9[%c0_21, %c0_22, %c24] : memref<10x16x72xbf16, #tpu.memory_space<vmem>>, vector<10x16x8xbf16>
    tpu.vector_store %arg9[%c0_21, %c0_22, %c24], %22 {strides = array<i32>} : memref<10x16x72xbf16, #tpu.memory_space<vmem>>, vector<10x16x8xbf16>,
    %c8_i32_23 = arith.constant 8 : i32
    %24 = arith.muli %arg1, %c8_i32_23 : i32
    %c1_i32_24 = arith.constant 1 : i32
    %25 = arith.addi %24, %c1_i32_24 : i32
    %c0_25 = arith.constant 0 : index
    %26 = arith.index_cast %25 : i32 to index
    %c1_26 = arith.constant 1 : index
    %c0_27 = arith.constant 0 : index
    %27 = vector.load %arg2[%c0_25, %26, %c1_26, %c0_27] : memref<1x20x18x8xbf16, #tpu.memory_space<vmem>>, vector<1x10x16x8xbf16>
    %28 = vector.shape_cast %27 : vector<1x10x16x8xbf16> to vector<10x16x8xbf16>
    %c0_28 = arith.constant 0 : index
    %c0_29 = arith.constant 0 : index
    %c32 = arith.constant 32 : index
    %29 = vector.load %arg9[%c0_28, %c0_29, %c32] : memref<10x16x72xbf16, #tpu.memory_space<vmem>>, vector<10x16x8xbf16>
    tpu.vector_store %arg9[%c0_28, %c0_29, %c32], %28 {strides = array<i32>} : memref<10x16x72xbf16, #tpu.memory_space<vmem>>, vector<10x16x8xbf16>,
    %c8_i32_30 = arith.constant 8 : i32
    %30 = arith.muli %arg1, %c8_i32_30 : i32
    %c1_i32_31 = arith.constant 1 : i32
    %31 = arith.addi %30, %c1_i32_31 : i32
    %c0_32 = arith.constant 0 : index
    %32 = arith.index_cast %31 : i32 to index
    %c2_33 = arith.constant 2 : index
    %c0_34 = arith.constant 0 : index
    %33 = vector.load %arg2[%c0_32, %32, %c2_33, %c0_34] : memref<1x20x18x8xbf16, #tpu.memory_space<vmem>>, vector<1x10x16x8xbf16>
    %34 = vector.shape_cast %33 : vector<1x10x16x8xbf16> to vector<10x16x8xbf16>
    %c0_35 = arith.constant 0 : index
    %c0_36 = arith.constant 0 : index
    %c40 = arith.constant 40 : index
    %35 = vector.load %arg9[%c0_35, %c0_36, %c40] : memref<10x16x72xbf16, #tpu.memory_space<vmem>>, vector<10x16x8xbf16>
    tpu.vector_store %arg9[%c0_35, %c0_36, %c40], %34 {strides = array<i32>} : memref<10x16x72xbf16, #tpu.memory_space<vmem>>, vector<10x16x8xbf16>,
    %c8_i32_37 = arith.constant 8 : i32
    %36 = arith.muli %arg1, %c8_i32_37 : i32
    %c2_i32 = arith.constant 2 : i32
    %37 = arith.addi %36, %c2_i32 : i32
    %c0_38 = arith.constant 0 : index
    %38 = arith.index_cast %37 : i32 to index
    %c0_39 = arith.constant 0 : index
    %c0_40 = arith.constant 0 : index
    %39 = vector.load %arg2[%c0_38, %38, %c0_39, %c0_40] : memref<1x20x18x8xbf16, #tpu.memory_space<vmem>>, vector<1x10x16x8xbf16>
    %40 = vector.shape_cast %39 : vector<1x10x16x8xbf16> to vector<10x16x8xbf16>
    %c0_41 = arith.constant 0 : index
    %c0_42 = arith.constant 0 : index
    %c48 = arith.constant 48 : index
    %41 = vector.load %arg9[%c0_41, %c0_42, %c48] : memref<10x16x72xbf16, #tpu.memory_space<vmem>>, vector<10x16x8xbf16>
    tpu.vector_store %arg9[%c0_41, %c0_42, %c48], %40 {strides = array<i32>} : memref<10x16x72xbf16, #tpu.memory_space<vmem>>, vector<10x16x8xbf16>,
    %c8_i32_43 = arith.constant 8 : i32
    %42 = arith.muli %arg1, %c8_i32_43 : i32
    %c2_i32_44 = arith.constant 2 : i32
    %43 = arith.addi %42, %c2_i32_44 : i32
    %c0_45 = arith.constant 0 : index
    %44 = arith.index_cast %43 : i32 to index
    %c1_46 = arith.constant 1 : index
    %c0_47 = arith.constant 0 : index
    %45 = vector.load %arg2[%c0_45, %44, %c1_46, %c0_47] : memref<1x20x18x8xbf16, #tpu.memory_space<vmem>>, vector<1x10x16x8xbf16>
    %46 = vector.shape_cast %45 : vector<1x10x16x8xbf16> to vector<10x16x8xbf16>
    %c0_48 = arith.constant 0 : index
    %c0_49 = arith.constant 0 : index
    %c56 = arith.constant 56 : index
    %47 = vector.load %arg9[%c0_48, %c0_49, %c56] : memref<10x16x72xbf16, #tpu.memory_space<vmem>>, vector<10x16x8xbf16>
    tpu.vector_store %arg9[%c0_48, %c0_49, %c56], %46 {strides = array<i32>} : memref<10x16x72xbf16, #tpu.memory_space<vmem>>, vector<10x16x8xbf16>,
    %c8_i32_50 = arith.constant 8 : i32
    %48 = arith.muli %arg1, %c8_i32_50 : i32
    %c2_i32_51 = arith.constant 2 : i32
    %49 = arith.addi %48, %c2_i32_51 : i32
    %c0_52 = arith.constant 0 : index
    %50 = arith.index_cast %49 : i32 to index
    %c2_53 = arith.constant 2 : index
    %c0_54 = arith.constant 0 : index
    %51 = vector.load %arg2[%c0_52, %50, %c2_53, %c0_54] : memref<1x20x18x8xbf16, #tpu.memory_space<vmem>>, vector<1x10x16x8xbf16>
    %52 = vector.shape_cast %51 : vector<1x10x16x8xbf16> to vector<10x16x8xbf16>
    %c0_55 = arith.constant 0 : index
    %c0_56 = arith.constant 0 : index
    %c64 = arith.constant 64 : index
    %53 = vector.load %arg9[%c0_55, %c0_56, %c64] : memref<10x16x72xbf16, #tpu.memory_space<vmem>>, vector<10x16x8xbf16>
    tpu.vector_store %arg9[%c0_55, %c0_56, %c64], %52 {strides = array<i32>} : memref<10x16x72xbf16, #tpu.memory_space<vmem>>, vector<10x16x8xbf16>,
    %c0_57 = arith.constant 0 : index
    %c0_58 = arith.constant 0 : index
    %c0_59 = arith.constant 0 : index
    %54 = vector.load %arg9[%c0_57, %c0_58, %c0_59] : memref<10x16x72xbf16, #tpu.memory_space<vmem>>, vector<10x16x72xbf16>
    %55 = vector.shape_cast %54 : vector<10x16x72xbf16> to vector<160x72xbf16>
    %c0_60 = arith.constant 0 : index
    %c0_61 = arith.constant 0 : index
    %56 = vector.load %arg3[%c0_60, %c0_61] : memref<72x64xbf16, #tpu.memory_space<vmem>>, vector<72x64xbf16>
    %cst = arith.constant dense<0.000000e+00> : vector<160x64xf32>
    %57 = tpu.matmul %55, %56, %cst {dimension_numbers = #tpu.dot_dimension_numbers<[1], [0], [0], [1], [0, 0, 1, 1], [], []>} : vector<160x72xbf16>, vector<72x64xbf16>, vector<160x64xf32> -> vector<160x64xf32>
    %c0_62 = arith.constant 0 : index
    %c0_63 = arith.constant 0 : index
    %58 = vector.load %arg4[%c0_62, %c0_63] : memref<1x64xf32, #tpu.memory_space<vmem>>, vector<1x64xf32>
    %59 = vector.broadcast %58 : vector<1x64xf32> to vector<160x64xf32>
    %60 = arith.addf %57, %59 : vector<160x64xf32>
    %cst_64 = arith.constant 0.000000e+00 : f32
    %61 = vector.broadcast %cst_64 : f32 to vector<160x64xf32>
    %62 = arith.maximumf %60, %61 : vector<160x64xf32>
    %63 = vector.shape_cast %62 : vector<160x64xf32> to vector<10x16x64xf32>
    %c8_i32_65 = arith.constant 8 : i32
    %64 = arith.muli %arg1, %c8_i32_65 : i32
    %c1_i32_66 = arith.constant 1 : i32
    %65 = arith.subi %64, %c1_i32_66 : i32
    %66 = tpu.iota {dimensions = array<i32: 0>} : vector<10x1x1xi32>
    %67 = vector.broadcast %65 : i32 to vector<10x1x1xi32>
    %68 = arith.addi %67, %66 : vector<10x1x1xi32>
    %c0_i32_67 = arith.constant 0 : i32
    %69 = vector.broadcast %c0_i32_67 : i32 to vector<10x1x1xi32>
    %70 = arith.cmpi sge, %68, %69 : vector<10x1x1xi32>
    %c16_i32 = arith.constant 16 : i32
    %71 = vector.broadcast %c16_i32 : i32 to vector<10x1x1xi32>
    %72 = arith.cmpi slt, %68, %71 : vector<10x1x1xi32>
    %73 = arith.andi %70, %72 : vector<10x1x1xi1>
    %cst_68 = arith.constant 0.000000e+00 : f32
    %74 = vector.shape_cast %73 : vector<10x1x1xi1> to vector<10x1x1xi1>
    %75 = vector.broadcast %74 : vector<10x1x1xi1> to vector<10x16x64xi1>
    %76 = vector.broadcast %cst_68 : f32 to vector<10x16x64xf32>
    %77 = arith.select %75, %63, %76 : vector<10x16x64xi1>, vector<10x16x64xf32>
    %78 = arith.truncf %77 : vector<10x16x64xf32> to vector<10x16x64xbf16>
    %c0_69 = arith.constant 0 : index
    %c1_70 = arith.constant 1 : index
    %c0_71 = arith.constant 0 : index
    %79 = vector.load %arg8[%c0_69, %c1_70, %c0_71] : memref<10x18x64xbf16, #tpu.memory_space<vmem>>, vector<10x16x64xbf16>
    tpu.vector_store %arg8[%c0_69, %c1_70, %c0_71], %78 {strides = array<i32>} : memref<10x18x64xbf16, #tpu.memory_space<vmem>>, vector<10x16x64xbf16>,
    %cst_72 = arith.constant 0.000000e+00 : bf16
    %80 = vector.broadcast %cst_72 : bf16 to vector<10x1x64xbf16>
    %c0_73 = arith.constant 0 : index
    %c0_74 = arith.constant 0 : index
    %c0_75 = arith.constant 0 : index
    %81 = vector.load %arg8[%c0_73, %c0_74, %c0_75] : memref<10x18x64xbf16, #tpu.memory_space<vmem>>, vector<10x1x64xbf16>
    tpu.vector_store %arg8[%c0_73, %c0_74, %c0_75], %80 {strides = array<i32>} : memref<10x18x64xbf16, #tpu.memory_space<vmem>>, vector<10x1x64xbf16>,
    %cst_76 = arith.constant 0.000000e+00 : bf16
    %82 = vector.broadcast %cst_76 : bf16 to vector<10x1x64xbf16>
    %c0_77 = arith.constant 0 : index
    %c17 = arith.constant 17 : index
    %c0_78 = arith.constant 0 : index
    %83 = vector.load %arg8[%c0_77, %c17, %c0_78] : memref<10x18x64xbf16, #tpu.memory_space<vmem>>, vector<10x1x64xbf16>
    tpu.vector_store %arg8[%c0_77, %c17, %c0_78], %82 {strides = array<i32>} : memref<10x18x64xbf16, #tpu.memory_space<vmem>>, vector<10x1x64xbf16>,
    %c0_79 = arith.constant 0 : index
    %c0_80 = arith.constant 0 : index
    %c0_81 = arith.constant 0 : index
    %84 = vector.load %arg8[%c0_79, %c0_80, %c0_81] : memref<10x18x64xbf16, #tpu.memory_space<vmem>>, vector<8x16x64xbf16>
    %c0_82 = arith.constant 0 : index
    %c0_83 = arith.constant 0 : index
    %c0_84 = arith.constant 0 : index
    %85 = vector.load %arg10[%c0_82, %c0_83, %c0_84] : memref<8x16x576xbf16, #tpu.memory_space<vmem>>, vector<8x16x64xbf16>
    tpu.vector_store %arg10[%c0_82, %c0_83, %c0_84], %84 {strides = array<i32>} : memref<8x16x576xbf16, #tpu.memory_space<vmem>>, vector<8x16x64xbf16>,
    %c0_85 = arith.constant 0 : index
    %c1_86 = arith.constant 1 : index
    %c0_87 = arith.constant 0 : index
    %86 = vector.load %arg8[%c0_85, %c1_86, %c0_87] : memref<10x18x64xbf16, #tpu.memory_space<vmem>>, vector<8x16x64xbf16>
    %c0_88 = arith.constant 0 : index
    %c0_89 = arith.constant 0 : index
    %c64_90 = arith.constant 64 : index
    %87 = vector.load %arg10[%c0_88, %c0_89, %c64_90] : memref<8x16x576xbf16, #tpu.memory_space<vmem>>, vector<8x16x64xbf16>
    tpu.vector_store %arg10[%c0_88, %c0_89, %c64_90], %86 {strides = array<i32>} : memref<8x16x576xbf16, #tpu.memory_space<vmem>>, vector<8x16x64xbf16>,
    %c0_91 = arith.constant 0 : index
    %c2_92 = arith.constant 2 : index
    %c0_93 = arith.constant 0 : index
    %88 = vector.load %arg8[%c0_91, %c2_92, %c0_93] : memref<10x18x64xbf16, #tpu.memory_space<vmem>>, vector<8x16x64xbf16>
    %c0_94 = arith.constant 0 : index
    %c0_95 = arith.constant 0 : index
    %c128 = arith.constant 128 : index
    %89 = vector.load %arg10[%c0_94, %c0_95, %c128] : memref<8x16x576xbf16, #tpu.memory_space<vmem>>, vector<8x16x64xbf16>
    tpu.vector_store %arg10[%c0_94, %c0_95, %c128], %88 {strides = array<i32>} : memref<8x16x576xbf16, #tpu.memory_space<vmem>>, vector<8x16x64xbf16>,
    %c1_96 = arith.constant 1 : index
    %c0_97 = arith.constant 0 : index
    %c0_98 = arith.constant 0 : index
    %90 = vector.load %arg8[%c1_96, %c0_97, %c0_98] : memref<10x18x64xbf16, #tpu.memory_space<vmem>>, vector<8x16x64xbf16>
    %c0_99 = arith.constant 0 : index
    %c0_100 = arith.constant 0 : index
    %c192 = arith.constant 192 : index
    %91 = vector.load %arg10[%c0_99, %c0_100, %c192] : memref<8x16x576xbf16, #tpu.memory_space<vmem>>, vector<8x16x64xbf16>
    tpu.vector_store %arg10[%c0_99, %c0_100, %c192], %90 {strides = array<i32>} : memref<8x16x576xbf16, #tpu.memory_space<vmem>>, vector<8x16x64xbf16>,
    %c1_101 = arith.constant 1 : index
    %c1_102 = arith.constant 1 : index
    %c0_103 = arith.constant 0 : index
    %92 = vector.load %arg8[%c1_101, %c1_102, %c0_103] : memref<10x18x64xbf16, #tpu.memory_space<vmem>>, vector<8x16x64xbf16>
    %c0_104 = arith.constant 0 : index
    %c0_105 = arith.constant 0 : index
    %c256 = arith.constant 256 : index
    %93 = vector.load %arg10[%c0_104, %c0_105, %c256] : memref<8x16x576xbf16, #tpu.memory_space<vmem>>, vector<8x16x64xbf16>
    tpu.vector_store %arg10[%c0_104, %c0_105, %c256], %92 {strides = array<i32>} : memref<8x16x576xbf16, #tpu.memory_space<vmem>>, vector<8x16x64xbf16>,
    %c1_106 = arith.constant 1 : index
    %c2_107 = arith.constant 2 : index
    %c0_108 = arith.constant 0 : index
    %94 = vector.load %arg8[%c1_106, %c2_107, %c0_108] : memref<10x18x64xbf16, #tpu.memory_space<vmem>>, vector<8x16x64xbf16>
    %c0_109 = arith.constant 0 : index
    %c0_110 = arith.constant 0 : index
    %c320 = arith.constant 320 : index
    %95 = vector.load %arg10[%c0_109, %c0_110, %c320] : memref<8x16x576xbf16, #tpu.memory_space<vmem>>, vector<8x16x64xbf16>
    tpu.vector_store %arg10[%c0_109, %c0_110, %c320], %94 {strides = array<i32>} : memref<8x16x576xbf16, #tpu.memory_space<vmem>>, vector<8x16x64xbf16>,
    %c2_111 = arith.constant 2 : index
    %c0_112 = arith.constant 0 : index
    %c0_113 = arith.constant 0 : index
    %96 = vector.load %arg8[%c2_111, %c0_112, %c0_113] : memref<10x18x64xbf16, #tpu.memory_space<vmem>>, vector<8x16x64xbf16>
    %c0_114 = arith.constant 0 : index
    %c0_115 = arith.constant 0 : index
    %c384 = arith.constant 384 : index
    %97 = vector.load %arg10[%c0_114, %c0_115, %c384] : memref<8x16x576xbf16, #tpu.memory_space<vmem>>, vector<8x16x64xbf16>
    tpu.vector_store %arg10[%c0_114, %c0_115, %c384], %96 {strides = array<i32>} : memref<8x16x576xbf16, #tpu.memory_space<vmem>>, vector<8x16x64xbf16>,
    %c2_116 = arith.constant 2 : index
    %c1_117 = arith.constant 1 : index
    %c0_118 = arith.constant 0 : index
    %98 = vector.load %arg8[%c2_116, %c1_117, %c0_118] : memref<10x18x64xbf16, #tpu.memory_space<vmem>>, vector<8x16x64xbf16>
    %c0_119 = arith.constant 0 : index
    %c0_120 = arith.constant 0 : index
    %c448 = arith.constant 448 : index
    %99 = vector.load %arg10[%c0_119, %c0_120, %c448] : memref<8x16x576xbf16, #tpu.memory_space<vmem>>, vector<8x16x64xbf16>
    tpu.vector_store %arg10[%c0_119, %c0_120, %c448], %98 {strides = array<i32>} : memref<8x16x576xbf16, #tpu.memory_space<vmem>>, vector<8x16x64xbf16>,
    %c2_121 = arith.constant 2 : index
    %c2_122 = arith.constant 2 : index
    %c0_123 = arith.constant 0 : index
    %100 = vector.load %arg8[%c2_121, %c2_122, %c0_123] : memref<10x18x64xbf16, #tpu.memory_space<vmem>>, vector<8x16x64xbf16>
    %c0_124 = arith.constant 0 : index
    %c0_125 = arith.constant 0 : index
    %c512 = arith.constant 512 : index
    %101 = vector.load %arg10[%c0_124, %c0_125, %c512] : memref<8x16x576xbf16, #tpu.memory_space<vmem>>, vector<8x16x64xbf16>
    tpu.vector_store %arg10[%c0_124, %c0_125, %c512], %100 {strides = array<i32>} : memref<8x16x576xbf16, #tpu.memory_space<vmem>>, vector<8x16x64xbf16>,
    %c0_126 = arith.constant 0 : index
    %c0_127 = arith.constant 0 : index
    %c0_128 = arith.constant 0 : index
    %102 = vector.load %arg10[%c0_126, %c0_127, %c0_128] : memref<8x16x576xbf16, #tpu.memory_space<vmem>>, vector<8x16x576xbf16>
    %103 = vector.shape_cast %102 : vector<8x16x576xbf16> to vector<128x576xbf16>
    %c0_129 = arith.constant 0 : index
    %c0_130 = arith.constant 0 : index
    %104 = vector.load %arg5[%c0_129, %c0_130] : memref<576x64xbf16, #tpu.memory_space<vmem>>, vector<576x64xbf16>
    %cst_131 = arith.constant dense<0.000000e+00> : vector<128x64xf32>
    %105 = tpu.matmul %103, %104, %cst_131 {dimension_numbers = #tpu.dot_dimension_numbers<[1], [0], [0], [1], [0, 0, 1, 1], [], []>} : vector<128x576xbf16>, vector<576x64xbf16>, vector<128x64xf32> -> vector<128x64xf32>
    %c0_132 = arith.constant 0 : index
    %c0_133 = arith.constant 0 : index
    %106 = vector.load %arg6[%c0_132, %c0_133] : memref<1x64xf32, #tpu.memory_space<vmem>>, vector<1x64xf32>
    %107 = vector.broadcast %106 : vector<1x64xf32> to vector<128x64xf32>
    %108 = arith.addf %105, %107 : vector<128x64xf32>
    %cst_134 = arith.constant 0.000000e+00 : f32
    %109 = vector.broadcast %cst_134 : f32 to vector<128x64xf32>
    %110 = arith.maximumf %108, %109 : vector<128x64xf32>
    %111 = vector.shape_cast %110 : vector<128x64xf32> to vector<8x16x64xf32>
    %112 = arith.truncf %111 : vector<8x16x64xf32> to vector<8x16x64xbf16>
    %c0_135 = arith.constant 0 : index
    %c0_136 = arith.constant 0 : index
    %c0_137 = arith.constant 0 : index
    %c0_138 = arith.constant 0 : index
    %113 = vector.load %arg7[%c0_135, %c0_136, %c0_137, %c0_138] : memref<1x8x16x64xbf16, #tpu.memory_space<vmem>>, vector<1x8x16x64xbf16>
    %114 = vector.shape_cast %113 : vector<1x8x16x64xbf16> to vector<8x16x64xbf16>
    %115 = vector.shape_cast %112 : vector<8x16x64xbf16> to vector<1x8x16x64xbf16>
    tpu.vector_store %arg7[%c0_135, %c0_136, %c0_137, %c0_138], %115 {strides = array<i32>} : memref<1x8x16x64xbf16, #tpu.memory_space<vmem>>, vector<1x8x16x64xbf16>,
    return
  }
  func.func @transform_0(%arg0: i32, %arg1: i32) -> (i32, i32, i32, i32) {
    %c0_i32 = arith.constant 0 : i32
    %c0_i32_0 = arith.constant 0 : i32
    %c0_i32_1 = arith.constant 0 : i32
    %c0_i32_2 = arith.constant 0 : i32
    return %arg0, %c0_i32, %c0_i32_0, %c0_i32_1 : i32, i32, i32, i32
  }
  func.func @transform_1(%arg0: i32, %arg1: i32) -> (i32, i32) {
    %c0_i32 = arith.constant 0 : i32
    %c0_i32_0 = arith.constant 0 : i32
    %c0_i32_1 = arith.constant 0 : i32
    return %c0_i32, %c0_i32_0 : i32, i32
  }
  func.func @transform_2(%arg0: i32, %arg1: i32) -> (i32, i32) {
    %c0_i32 = arith.constant 0 : i32
    %c0_i32_0 = arith.constant 0 : i32
    %c0_i32_1 = arith.constant 0 : i32
    return %c0_i32, %c0_i32_0 : i32, i32
  }
  func.func @transform_3(%arg0: i32, %arg1: i32) -> (i32, i32) {
    %c0_i32 = arith.constant 0 : i32
    %c0_i32_0 = arith.constant 0 : i32
    %c0_i32_1 = arith.constant 0 : i32
    return %c0_i32, %c0_i32_0 : i32, i32
  }
  func.func @transform_4(%arg0: i32, %arg1: i32) -> (i32, i32) {
    %c0_i32 = arith.constant 0 : i32
    %c0_i32_0 = arith.constant 0 : i32
    %c0_i32_1 = arith.constant 0 : i32
    return %c0_i32, %c0_i32_0 : i32, i32
  }
  func.func @transform_5(%arg0: i32, %arg1: i32) -> (i32, i32, i32, i32) {
    %c0_i32 = arith.constant 0 : i32
    %c0_i32_0 = arith.constant 0 : i32
    %c0_i32_1 = arith.constant 0 : i32
    return %arg0, %arg1, %c0_i32, %c0_i32_0 : i32, i32, i32, i32
  }
}

</mosaic_0001>

<llo_original>
// kernel: tpu_custom_call.1
$region0: #{tpu_custom_call.1}
  #allocation0 [shape = 'u32[]', space=smem, size = 0x4, offset = 0x4, fixed_abs, tag = 'smem constant byte address 0x4 - core index']
  #allocation1 [shape = 'u32[72,128]{1,0:T(1,128)}', space=vmem, size = 0x9000, scoped, tag = 'internal scratch']
  #allocation2 [shape = 'bf16[10,18,64]{2,1,0:T(8,128)(2,1)}', space=vmem, size = 0xf000, scoped, tag = 'scratch operand']
  #allocation3 [shape = 'bf16[10,16,72]{2,1,0:T(8,128)(2,1)}', space=vmem, size = 0xa000, scoped, tag = 'scratch operand']
  #allocation4 [shape = 'bf16[8,16,576]{2,1,0:T(8,128)(2,1)}', space=vmem, size = 0x28000, scoped, tag = 'scratch operand']
  %s0 = inlined_call_operand.vmem [shape: bf16[2,20,18,8], index: 0, kind: input, shape index: {}]
  %s1 = inlined_call_operand.vmem [shape: bf16[72,64], index: 1, kind: input, shape index: {}]
  %s2 = inlined_call_operand.vmem [shape: f32[1,64], index: 2, kind: input, shape index: {}]
  %s3 = inlined_call_operand.vmem [shape: bf16[576,64], index: 3, kind: input, shape index: {}]
  %s4 = inlined_call_operand.vmem [shape: f32[1,64], index: 4, kind: input, shape index: {}]
  %s5 = inlined_call_operand.hbm [shape: bf16[2,16,16,64], index: 5, kind: output, shape index: {}]
  %s6 = sld [smem:[#allocation0]]
  $region53: #{tpu_custom_call.1} parent=0
    _
  %s8 = ssub.s32 1, %s6
  %s9 = scalar_select 0, %s8, %s6
  $region1: #{tpu_custom_call.1} parent=0
    #allocation5 [shape = 'u8[65536]{0}', space=vmem, size = 0x10000, scoped, tag = 'output window, operand 0']
    #allocation6 [shape = 's32[2]{0}', space=sflag, size = 0x8, scoped, tag = 'scoped memory for tpu_custom_call.1']
    %10 = vsyncpa [#allocation6], 0
    %s11 = scalar_lea.sflag [#allocation6], 1
    %12 = vsyncpa %s11, 0
    loop: start=0, step=1, limit=6
    $region2: #{tpu_custom_call.1} parent=1 // loop_pre_header
      _
    $region3: #{tpu_custom_call.1} parent=1 // loop_header
      %s14 = sphi 0, %s18
      %p15 = scmp.ge.s32.totalorder %s14, 6
      %s21 = sphi 0, %s33
      %s22 = sphi 0, %s29
      %s23 = sphi 0, %s21
      %s24 = sphi 0, %s22
      %s25 = sphi 0, %s23
      %s26 = sphi 0, %s24
      %s36 = sphi 0, %s38
      %s39 = sphi 0, %s36
      %s40 = sphi 0, %s39
      %s56 = sphi 0, %s40
      %s60 = sphi 0, %s60
      %s62 = sphi 0, %s60
      %s63 = sphi 0, %s62
      %s77 = sphi 0, %s63
      %s81 = sphi 0, %s81
      %s83 = sphi 0, %s81
      %s84 = sphi 0, %s83
      %s98 = sphi 0, %s84
      %s102 = sphi 0, %s102
      %s104 = sphi 0, %s102
      %s105 = sphi 0, %s104
      %s119 = sphi 0, %s105
      %s123 = sphi 0, %s123
      %s125 = sphi 0, %s123
      %s126 = sphi 0, %s125
      %s140 = sphi 0, %s126
      %s148 = sphi 0, %s150
      %s151 = sphi 0, %s148
      %s152 = sphi 0, %s151
      %s168 = sphi 0, %s152
    $region4: #{tpu_custom_call.1} parent=1 // loop_header_branch
      %17 = sbr.rel (%p15) target = $region8
    $region5: #{tpu_custom_call.1} parent=1 // loop_body
      %s19 = ssub.s32 %s14, 1
      %s20 = ssub.s32 %s14, 2
      %s27 = sadd.s32 1, %s22
      %p28 = scmp.ge.s32.totalorder %s27, 2
      %s29 = scalar_select %p28, 0, %s27
      %s30 = sadd.s32 1, %s21
      %s31 = scalar_select %p28, %s30, %s21
      %p32 = scmp.ge.s32.totalorder %s31, 2
      %s33 = scalar_select %p32, 0, %s31
      %s34 = ssub.s32 %s21, %s33
      %p35 = scmp.eq.s32.totalorder %s34, 0
      %s37 = sadd.s32 %s36, 1
      %s38 = scalar_select %p35, %s36, %s37
      %p41 = pneg %p35
      %p42 = scmp.eq.s32.totalorder %s14, 3
      %p43 = por %p41, %p42
      %p44 = scmp.ne.s32.totalorder %s36, %s39
      %p45 = scmp.eq.s32.totalorder %s14, 0
      %p46 = por %p44, %p45
      %p47 = scmp.ne.s32.totalorder %s36, %s39
      %p48 = scmp.eq.s32.totalorder %s19, 3
      %p49 = por %p47, %p48
      %p50 = scmp.ne.s32.totalorder %s39, %s40
      %p51 = scmp.eq.s32.totalorder %s19, 0
      %p52 = por %p50, %p51
      %p53 = scmp.ne.s32.totalorder %s39, %s40
      %p54 = scmp.eq.s32.totalorder %s20, 3
      %p55 = por %p53, %p54
      %p57 = scmp.ne.s32.totalorder %s40, %s56
      %p58 = scmp.eq.s32.totalorder %s20, 0
      %p59 = por %p57, %p58
      %s61 = sadd.s32 %s60, 1
      %p64 = scmp.eq.s32.totalorder %s14, 3
      %p65 = scmp.ne.s32.totalorder %s60, %s62
      %p66 = scmp.eq.s32.totalorder %s14, 0
      %p67 = por %p65, %p66
      %p68 = scmp.ne.s32.totalorder %s60, %s62
      %p69 = scmp.eq.s32.totalorder %s19, 3
      %p70 = por %p68, %p69
      %p71 = scmp.ne.s32.totalorder %s62, %s63
      %p72 = scmp.eq.s32.totalorder %s19, 0
      %p73 = por %p71, %p72
      %p74 = scmp.ne.s32.totalorder %s62, %s63
      %p75 = scmp.eq.s32.totalorder %s20, 3
      %p76 = por %p74, %p75
      %p78 = scmp.ne.s32.totalorder %s63, %s77
      %p79 = scmp.eq.s32.totalorder %s20, 0
      %p80 = por %p78, %p79
      %s82 = sadd.s32 %s81, 1
      %p85 = scmp.eq.s32.totalorder %s14, 3
      %p86 = scmp.ne.s32.totalorder %s81, %s83
      %p87 = scmp.eq.s32.totalorder %s14, 0
      %p88 = por %p86, %p87
      %p89 = scmp.ne.s32.totalorder %s81, %s83
      %p90 = scmp.eq.s32.totalorder %s19, 3
      %p91 = por %p89, %p90
      %p92 = scmp.ne.s32.totalorder %s83, %s84
      %p93 = scmp.eq.s32.totalorder %s19, 0
      %p94 = por %p92, %p93
      %p95 = scmp.ne.s32.totalorder %s83, %s84
      %p96 = scmp.eq.s32.totalorder %s20, 3
      %p97 = por %p95, %p96
      %p99 = scmp.ne.s32.totalorder %s84, %s98
      %p100 = scmp.eq.s32.totalorder %s20, 0
      %p101 = por %p99, %p100
      %s103 = sadd.s32 %s102, 1
      %p106 = scmp.eq.s32.totalorder %s14, 3
      %p107 = scmp.ne.s32.totalorder %s102, %s104
      %p108 = scmp.eq.s32.totalorder %s14, 0
      %p109 = por %p107, %p108
      %p110 = scmp.ne.s32.totalorder %s102, %s104
      %p111 = scmp.eq.s32.totalorder %s19, 3
      %p112 = por %p110, %p111
      %p113 = scmp.ne.s32.totalorder %s104, %s105
      %p114 = scmp.eq.s32.totalorder %s19, 0
      %p115 = por %p113, %p114
      %p116 = scmp.ne.s32.totalorder %s104, %s105
      %p117 = scmp.eq.s32.totalorder %s20, 3
      %p118 = por %p116, %p117
      %p120 = scmp.ne.s32.totalorder %s105, %s119
      %p121 = scmp.eq.s32.totalorder %s20, 0
      %p122 = por %p120, %p121
      %s124 = sadd.s32 %s123, 1
      %p127 = scmp.eq.s32.totalorder %s14, 3
      %p128 = scmp.ne.s32.totalorder %s123, %s125
      %p129 = scmp.eq.s32.totalorder %s14, 0
      %p130 = por %p128, %p129
      %p131 = scmp.ne.s32.totalorder %s123, %s125
      %p132 = scmp.eq.s32.totalorder %s19, 3
      %p133 = por %p131, %p132
      %p134 = scmp.ne.s32.totalorder %s125, %s126
      %p135 = scmp.eq.s32.totalorder %s19, 0
      %p136 = por %p134, %p135
      %p137 = scmp.ne.s32.totalorder %s125, %s126
      %p138 = scmp.eq.s32.totalorder %s20, 3
      %p139 = por %p137, %p138
      %p141 = scmp.ne.s32.totalorder %s126, %s140
      %p142 = scmp.eq.s32.totalorder %s20, 0
      %p143 = por %p141, %p142
      %s144 = ssub.s32 %s21, %s33
      %s145 = ssub.s32 %s22, %s29
      %s146 = sor.u32 %s144, %s145
      %p147 = scmp.eq.s32.totalorder %s146, 0
      %s149 = sadd.s32 %s148, 1
      %s150 = scalar_select %p147, %s148, %s149
      %p153 = pneg %p147
      %p154 = scmp.eq.s32.totalorder %s14, 3
      %p155 = por %p153, %p154
      %p156 = scmp.ne.s32.totalorder %s148, %s151
      %p157 = scmp.eq.s32.totalorder %s14, 0
      %p158 = por %p156, %p157
      %p159 = scmp.ne.s32.totalorder %s148, %s151
      %p160 = scmp.eq.s32.totalorder %s19, 3
      %p161 = por %p159, %p160
      %p162 = scmp.ne.s32.totalorder %s151, %s152
      %p163 = scmp.eq.s32.totalorder %s19, 0
      %p164 = por %p162, %p163
      %p165 = scmp.ne.s32.totalorder %s151, %s152
      %p166 = scmp.eq.s32.totalorder %s20, 3
      %p167 = por %p165, %p166
      %p169 = scmp.ne.s32.totalorder %s152, %s168
      %p170 = scmp.eq.s32.totalorder %s20, 0
      %p171 = por %p169, %p170
      %p172 = scmp.le.s32.totalorder 1, %s14
      %p173 = scmp.lt.s32.totalorder %s14, 5
      %p174 = pnand %p172, %p173
      %p175 = pneg %p174
      // Predicated region
      $region9: #{tpu_custom_call.1} parent=5 // pred_check
        _
      $region10: #{tpu_custom_call.1} parent=5 // pred_check_branch
        %177 = sbr.rel (%p174) target = $region12
      $region11: #{tpu_custom_call.1} parent=5 // pred_region
        %s178 = ssub.s32 %s14, 1
        // Predicated region
        $region13: #{tpu_custom_call.1} parent=11 // pred_check
          %p179 = pneg %p73
        $region14: #{tpu_custom_call.1} parent=11 // pred_check_branch
          %181 = sbr.rel (%p179) target = $region16
        $region15: #{tpu_custom_call.1} parent=11 // pred_region
          _
        $region16: #{tpu_custom_call.1} parent=11 // pred_fallthru
          _
        // Predicated region
        $region17: #{tpu_custom_call.1} parent=11 // pred_check
          %p182 = pneg %p94
        $region18: #{tpu_custom_call.1} parent=11 // pred_check_branch
          %184 = sbr.rel (%p182) target = $region20
        $region19: #{tpu_custom_call.1} parent=11 // pred_region
          _
        $region20: #{tpu_custom_call.1} parent=11 // pred_fallthru
          _
        // Predicated region
        $region21: #{tpu_custom_call.1} parent=11 // pred_check
          %p185 = pneg %p115
        $region22: #{tpu_custom_call.1} parent=11 // pred_check_branch
          %187 = sbr.rel (%p185) target = $region24
        $region23: #{tpu_custom_call.1} parent=11 // pred_region
          _
        $region24: #{tpu_custom_call.1} parent=11 // pred_fallthru
          _
        // Predicated region
        $region25: #{tpu_custom_call.1} parent=11 // pred_check
          %p188 = pneg %p136
        $region26: #{tpu_custom_call.1} parent=11 // pred_check_branch
          %190 = sbr.rel (%p188) target = $region28
        $region27: #{tpu_custom_call.1} parent=11 // pred_region
          _
        $region28: #{tpu_custom_call.1} parent=11 // pred_fallthru
          _
      $region12: #{tpu_custom_call.1} parent=5 // pred_fallthru
        _
      %p191 = scmp.lt.s32.totalorder %s14, 4
      // Predicated region
      $region29: #{tpu_custom_call.1} parent=5 // pred_check
        %p192 = pneg %p191
      $region30: #{tpu_custom_call.1} parent=5 // pred_check_branch
        %194 = sbr.rel (%p192) target = $region32
      $region31: #{tpu_custom_call.1} parent=5 // pred_region
        // Predicated region
        $region33: #{tpu_custom_call.1} parent=31 // pred_check
          %p195 = pneg %p46
        $region34: #{tpu_custom_call.1} parent=31 // pred_check_branch
          %197 = sbr.rel (%p195) target = $region36
        $region35: #{tpu_custom_call.1} parent=31 // pred_region
          %p198 = scmp.lt.s32.totalorder %s21, 1
          %s199 = scalar_select %p198, %s21, 1
          %s200 = smul.addr %s199, 60
          %s201 = smul.addr %s200, 4
          %s202 = scalar_lea.vmem %s0, %s201
        $region36: #{tpu_custom_call.1} parent=31 // pred_fallthru
          _
      $region32: #{tpu_custom_call.1} parent=5 // pred_fallthru
        _
      %p203 = scmp.le.s32.totalorder 1, %s14
      %p204 = scmp.lt.s32.totalorder %s14, 5
      %p205 = pnand %p203, %p204
      %p206 = pneg %p205
      // Predicated region
      $region37: #{tpu_custom_call.1} parent=5 // pred_check
        _
      $region38: #{tpu_custom_call.1} parent=5 // pred_check_branch
        %208 = sbr.rel (%p205) target = $region40
      $region39: #{tpu_custom_call.1} parent=5 // pred_region
        %s209 = ssub.s32 %s14, 1
        %p210 = scmp.lt.s32.totalorder %s23, 1
        %s211 = scalar_select %p210, %s23, 1
        %s212 = smul.addr %s211, 60
        %s213 = smul.addr %s212, 4
        %s214 = scalar_lea.vmem %s0, %s213
        %p215 = pneg %p52
        %p216 = pneg %p49
        %p217 = pneg %p73
        %p218 = pneg %p70
        %p219 = pneg %p94
        %p220 = pneg %p91
        %p221 = pneg %p115
        %p222 = pneg %p112
        %p223 = pneg %p136
        %p224 = pneg %p133
        %p225 = pneg %p164
        %p226 = pneg %p161
        %s227 = sand.u32 %s151, 1
        %s228 = scalar_lea.sflag [#allocation6], %s227
        %s229 = sand.u32 %s151, 1
        %s230 = smul.addr %s229, 64
        %s231 = scalar_lea.vmem [#allocation5], %s230
        %p232 = scmp.lt.s32.totalorder %s23, 1
        %s233 = scalar_select %p232, %s23, 1
        %s234 = smul.addr %s233, 60
        %s235 = smul.addr %s234, 4
        %s236 = scalar_lea.vmem %s0, %s235
        %s237 = smul.u32 8, %s24
        %s239 = smul.u32 %s24, 8
        %s240 = smul.u32 %s239, 3
        %s241 = smul.addr %s240, 4
        %s242 = scalar_lea.vmem %s236, %s241
        %v243 = vld [vmem:[%s242] sm:$0xf]
        %v244 = vld [vmem:[%s242 + $0x4] sm:$0xf]
        %v245 = vld [vmem:[%s242 + $0xc] sm:$0xf]
        %v246 = vld [vmem:[%s242 + $0x10] sm:$0xf]
        %v247 = vld [vmem:[%s242 + $0x18] sm:$0xf]
        %v248 = vld [vmem:[%s242 + $0x1c] sm:$0xf]
        %v249 = vld [vmem:[%s242 + $0x24] sm:$0xf]
        %v250 = vld [vmem:[%s242 + $0x28] sm:$0xf]
        %v251 = vld [vmem:[%s242 + $0x30] sm:$0xf]
        %v252 = vld [vmem:[%s242 + $0x34] sm:$0xf]
        %v253 = vld [vmem:[%s242 + $0x3c] sm:$0xf]
        %v254 = vld [vmem:[%s242 + $0x40] sm:$0xf]
        %v255 = vld [vmem:[%s242 + $0x48] sm:$0xf]
        %v256 = vld [vmem:[%s242 + $0x4c] sm:$0xf]
        %v257 = vld [vmem:[%s242 + $0x54] sm:$0xf]
        %v258 = vld [vmem:[%s242 + $0x58] sm:$0xf]
        %v259 = vld [vmem:[%s242 + $0x60] sm:$0xf]
        %v260 = vld [vmem:[%s242 + $0x64] sm:$0xf]
        %v261 = vld [vmem:[%s242 + $0x6c] sm:$0xf]
        %v262 = vld [vmem:[%s242 + $0x70] sm:$0xf]
        %vm263 = vcmask 60416
        %264 = vst.msk [vmem:[#allocation3] sm:$0xf] %vm263, %v243
        %265 = vst.msk [vmem:[#allocation3 + $0x4] sm:$0xf] %vm263, %v244
        %266 = vst.msk [vmem:[#allocation3 + $0x8] sm:$0xf] %vm263, %v245
        %267 = vst.msk [vmem:[#allocation3 + $0xc] sm:$0xf] %vm263, %v246
        %268 = vst.msk [vmem:[#allocation3 + $0x10] sm:$0xf] %vm263, %v247
        %269 = vst.msk [vmem:[#allocation3 + $0x14] sm:$0xf] %vm263, %v248
        %270 = vst.msk [vmem:[#allocation3 + $0x18] sm:$0xf] %vm263, %v249
        %271 = vst.msk [vmem:[#allocation3 + $0x1c] sm:$0xf] %vm263, %v250
        %272 = vst.msk [vmem:[#allocation3 + $0x20] sm:$0xf] %vm263, %v251
        %273 = vst.msk [vmem:[#allocation3 + $0x24] sm:$0xf] %vm263, %v252
        %274 = vst.msk [vmem:[#allocation3 + $0x28] sm:$0xf] %vm263, %v253
        %275 = vst.msk [vmem:[#allocation3 + $0x2c] sm:$0xf] %vm263, %v254
        %276 = vst.msk [vmem:[#allocation3 + $0x30] sm:$0xf] %vm263, %v255
        %277 = vst.msk [vmem:[#allocation3 + $0x34] sm:$0xf] %vm263, %v256
        %278 = vst.msk [vmem:[#allocation3 + $0x38] sm:$0xf] %vm263, %v257
        %279 = vst.msk [vmem:[#allocation3 + $0x3c] sm:$0xf] %vm263, %v258
        %280 = vst.msk [vmem:[#allocation3 + $0x40] sm:$0xf] %vm263, %v259
        %281 = vst.msk [vmem:[#allocation3 + $0x44] sm:$0xf] %vm263, %v260
        %282 = vst.msk [vmem:[#allocation3 + $0x48] sm:$0xf] %vm263, %v261
        %283 = vst.msk [vmem:[#allocation3 + $0x4c] sm:$0xf] %vm263, %v262
        %v284 = vld [vmem:[%s242] sm:$0xf]
        %v285 = vld [vmem:[%s242 + $0x4] sm:$0xf]
        %v286 = vld [vmem:[%s242 + $0x8] sm:$0x1]
        %v287 = vld [vmem:[%s242 + $0xc] sm:$0xf]
        %v288 = vld [vmem:[%s242 + $0x10] sm:$0xf]
        %v289 = vld [vmem:[%s242 + $0x14] sm:$0x1]
        %v290 = vld [vmem:[%s242 + $0x18] sm:$0xf]
        %v291 = vld [vmem:[%s242 + $0x1c] sm:$0xf]
        %v292 = vld [vmem:[%s242 + $0x20] sm:$0x1]
        %v293 = vld [vmem:[%s242 + $0x24] sm:$0xf]
        %v294 = vld [vmem:[%s242 + $0x28] sm:$0xf]
        %v295 = vld [vmem:[%s242 + $0x2c] sm:$0x1]
        %v296 = vld [vmem:[%s242 + $0x30] sm:$0xf]
        %v297 = vld [vmem:[%s242 + $0x34] sm:$0xf]
        %v298 = vld [vmem:[%s242 + $0x38] sm:$0x1]
        %v299 = vld [vmem:[%s242 + $0x3c] sm:$0xf]
        %v300 = vld [vmem:[%s242 + $0x40] sm:$0xf]
        %v301 = vld [vmem:[%s242 + $0x44] sm:$0x1]
        %v302 = vld [vmem:[%s242 + $0x48] sm:$0xf]
        %v303 = vld [vmem:[%s242 + $0x4c] sm:$0xf]
        %v304 = vld [vmem:[%s242 + $0x50] sm:$0x1]
        %v305 = vld [vmem:[%s242 + $0x54] sm:$0xf]
        %v306 = vld [vmem:[%s242 + $0x58] sm:$0xf]
        %v307 = vld [vmem:[%s242 + $0x5c] sm:$0x1]
        %v308 = vld [vmem:[%s242 + $0x60] sm:$0xf]
        %v309 = vld [vmem:[%s242 + $0x64] sm:$0xf]
        %v310 = vld [vmem:[%s242 + $0x68] sm:$0x1]
        %v311 = vld [vmem:[%s242 + $0x6c] sm:$0xf]
        %v312 = vld [vmem:[%s242 + $0x70] sm:$0xf]
        %v313 = vld [vmem:[%s242 + $0x74] sm:$0x1]
        %vm314 = vsmask.f32 3328
        %vm315 = vsmask.f32 7440
        %vm316 = vmor %vm314, %vm315
        %v318 = vshrl.u32 %v284, 16
        %v320 = vrot.slane %v318, 4
        %v321 = vshll.u32 %v284, 16
        %v323 = vrot.slane %v321, 5
        %v324 = vor.u32 %v320, %v323
        %v325 = vrot.slane %v324, 4
        %v327 = vshll.u32 %v285, 16
        %v329 = vrot.slane %v327, 5
        %v330 = vsel %vm316, %v325, %v329
        %v331 = vshrl.u32 %v285, 16
        %v333 = vrot.slane %v331, 4
        %v334 = vor.u32 %v333, %v329
        %v335 = vrot.slane %v334, 4
        %v337 = vshll.u32 %v286, 16
        %v339 = vrot.slane %v337, 5
        %v340 = vsel %vm316, %v335, %v339
        %v342 = vshrl.u32 %v287, 16
        %v344 = vrot.slane %v342, 4
        %v345 = vshll.u32 %v287, 16
        %v347 = vrot.slane %v345, 5
        %v348 = vor.u32 %v344, %v347
        %v349 = vrot.slane %v348, 4
        %v351 = vshll.u32 %v288, 16
        %v353 = vrot.slane %v351, 5
        %v354 = vsel %vm316, %v349, %v353
        %v355 = vshrl.u32 %v288, 16
        %v357 = vrot.slane %v355, 4
        %v358 = vor.u32 %v357, %v353
        %v359 = vrot.slane %v358, 4
        %v361 = vshll.u32 %v289, 16
        %v363 = vrot.slane %v361, 5
        %v364 = vsel %vm316, %v359, %v363
        %v366 = vshrl.u32 %v290, 16
        %v368 = vrot.slane %v366, 4
        %v369 = vshll.u32 %v290, 16
        %v371 = vrot.slane %v369, 5
        %v372 = vor.u32 %v368, %v371
        %v373 = vrot.slane %v372, 4
        %v375 = vshll.u32 %v291, 16
        %v377 = vrot.slane %v375, 5
        %v378 = vsel %vm316, %v373, %v377
        %v379 = vshrl.u32 %v291, 16
        %v381 = vrot.slane %v379, 4
        %v382 = vor.u32 %v381, %v377
        %v383 = vrot.slane %v382, 4
        %v385 = vshll.u32 %v292, 16
        %v387 = vrot.slane %v385, 5
        %v388 = vsel %vm316, %v383, %v387
        %v390 = vshrl.u32 %v293, 16
        %v392 = vrot.slane %v390, 4
        %v393 = vshll.u32 %v293, 16
        %v395 = vrot.slane %v393, 5
        %v396 = vor.u32 %v392, %v395
        %v397 = vrot.slane %v396, 4
        %v399 = vshll.u32 %v294, 16
        %v401 = vrot.slane %v399, 5
        %v402 = vsel %vm316, %v397, %v401
        %v403 = vshrl.u32 %v294, 16
        %v405 = vrot.slane %v403, 4
        %v406 = vor.u32 %v405, %v401
        %v407 = vrot.slane %v406, 4
        %v409 = vshll.u32 %v295, 16
        %v411 = vrot.slane %v409, 5
        %v412 = vsel %vm316, %v407, %v411
        %v414 = vshrl.u32 %v296, 16
        %v416 = vrot.slane %v414, 4
        %v417 = vshll.u32 %v296, 16
        %v419 = vrot.slane %v417, 5
        %v420 = vor.u32 %v416, %v419
        %v421 = vrot.slane %v420, 4
        %v423 = vshll.u32 %v297, 16
        %v425 = vrot.slane %v423, 5
        %v426 = vsel %vm316, %v421, %v425
        %v427 = vshrl.u32 %v297, 16
        %v429 = vrot.slane %v427, 4
        %v430 = vor.u32 %v429, %v425
        %v431 = vrot.slane %v430, 4
        %v433 = vshll.u32 %v298, 16
        %v435 = vrot.slane %v433, 5
        %v436 = vsel %vm316, %v431, %v435
        %v438 = vshrl.u32 %v299, 16
        %v440 = vrot.slane %v438, 4
        %v441 = vshll.u32 %v299, 16
        %v443 = vrot.slane %v441, 5
        %v444 = vor.u32 %v440, %v443
        %v445 = vrot.slane %v444, 4
        %v447 = vshll.u32 %v300, 16
        %v449 = vrot.slane %v447, 5
        %v450 = vsel %vm316, %v445, %v449
        %v451 = vshrl.u32 %v300, 16
        %v453 = vrot.slane %v451, 4
        %v454 = vor.u32 %v453, %v449
        %v455 = vrot.slane %v454, 4
        %v457 = vshll.u32 %v301, 16
        %v459 = vrot.slane %v457, 5
        %v460 = vsel %vm316, %v455, %v459
        %v462 = vshrl.u32 %v302, 16
        %v464 = vrot.slane %v462, 4
        %v465 = vshll.u32 %v302, 16
        %v467 = vrot.slane %v465, 5
        %v468 = vor.u32 %v464, %v467
        %v469 = vrot.slane %v468, 4
        %v471 = vshll.u32 %v303, 16
        %v473 = vrot.slane %v471, 5
        %v474 = vsel %vm316, %v469, %v473
        %v475 = vshrl.u32 %v303, 16
        %v477 = vrot.slane %v475, 4
        %v478 = vor.u32 %v477, %v473
        %v479 = vrot.slane %v478, 4
        %v481 = vshll.u32 %v304, 16
        %v483 = vrot.slane %v481, 5
        %v484 = vsel %vm316, %v479, %v483
        %v486 = vshrl.u32 %v305, 16
        %v488 = vrot.slane %v486, 4
        %v489 = vshll.u32 %v305, 16
        %v491 = vrot.slane %v489, 5
        %v492 = vor.u32 %v488, %v491
        %v493 = vrot.slane %v492, 4
        %v495 = vshll.u32 %v306, 16
        %v497 = vrot.slane %v495, 5
        %v498 = vsel %vm316, %v493, %v497
        %v499 = vshrl.u32 %v306, 16
        %v501 = vrot.slane %v499, 4
        %v502 = vor.u32 %v501, %v497
        %v503 = vrot.slane %v502, 4
        %v505 = vshll.u32 %v307, 16
        %v507 = vrot.slane %v505, 5
        %v508 = vsel %vm316, %v503, %v507
        %v510 = vshrl.u32 %v308, 16
        %v512 = vrot.slane %v510, 4
        %v513 = vshll.u32 %v308, 16
        %v515 = vrot.slane %v513, 5
        %v516 = vor.u32 %v512, %v515
        %v517 = vrot.slane %v516, 4
        %v519 = vshll.u32 %v309, 16
        %v521 = vrot.slane %v519, 5
        %v522 = vsel %vm316, %v517, %v521
        %v523 = vshrl.u32 %v309, 16
        %v525 = vrot.slane %v523, 4
        %v526 = vor.u32 %v525, %v521
        %v527 = vrot.slane %v526, 4
        %v529 = vshll.u32 %v310, 16
        %v531 = vrot.slane %v529, 5
        %v532 = vsel %vm316, %v527, %v531
        %v534 = vshrl.u32 %v311, 16
        %v536 = vrot.slane %v534, 4
        %v537 = vshll.u32 %v311, 16
        %v539 = vrot.slane %v537, 5
        %v540 = vor.u32 %v536, %v539
        %v541 = vrot.slane %v540, 4
        %v543 = vshll.u32 %v312, 16
        %v545 = vrot.slane %v543, 5
        %v546 = vsel %vm316, %v541, %v545
        %v547 = vshrl.u32 %v312, 16
        %v549 = vrot.slane %v547, 4
        %v550 = vor.u32 %v549, %v545
        %v551 = vrot.slane %v550, 4
        %v553 = vshll.u32 %v313, 16
        %v555 = vrot.slane %v553, 5
        %v556 = vsel %vm316, %v551, %v555
        %557 = vrot.lane.b32.xlu0 %v330, 8
        %v558 = vpop.permute.xlu0 %557
        %559 = vrot.lane.b32.xlu0 %v340, 8
        %v560 = vpop.permute.xlu0 %559
        %561 = vrot.lane.b32.xlu0 %v354, 8
        %v562 = vpop.permute.xlu0 %561
        %563 = vrot.lane.b32.xlu0 %v364, 8
        %v564 = vpop.permute.xlu0 %563
        %565 = vrot.lane.b32.xlu0 %v378, 8
        %v566 = vpop.permute.xlu0 %565
        %567 = vrot.lane.b32.xlu0 %v388, 8
        %v568 = vpop.permute.xlu0 %567
        %569 = vrot.lane.b32.xlu0 %v402, 8
        %v570 = vpop.permute.xlu0 %569
        %571 = vrot.lane.b32.xlu0 %v412, 8
        %v572 = vpop.permute.xlu0 %571
        %573 = vrot.lane.b32.xlu0 %v426, 8
        %v574 = vpop.permute.xlu0 %573
        %575 = vrot.lane.b32.xlu0 %v436, 8
        %v576 = vpop.permute.xlu0 %575
        %577 = vrot.lane.b32.xlu0 %v450, 8
        %v578 = vpop.permute.xlu0 %577
        %579 = vrot.lane.b32.xlu0 %v460, 8
        %v580 = vpop.permute.xlu0 %579
        %581 = vrot.lane.b32.xlu0 %v474, 8
        %v582 = vpop.permute.xlu0 %581
        %583 = vrot.lane.b32.xlu0 %v484, 8
        %v584 = vpop.permute.xlu0 %583
        %585 = vrot.lane.b32.xlu0 %v498, 8
        %v586 = vpop.permute.xlu0 %585
        %587 = vrot.lane.b32.xlu0 %v508, 8
        %v588 = vpop.permute.xlu0 %587
        %589 = vrot.lane.b32.xlu0 %v522, 8
        %v590 = vpop.permute.xlu0 %589
        %591 = vrot.lane.b32.xlu0 %v532, 8
        %v592 = vpop.permute.xlu0 %591
        %593 = vrot.lane.b32.xlu0 %v546, 8
        %v594 = vpop.permute.xlu0 %593
        %595 = vrot.lane.b32.xlu0 %v556, 8
        %v596 = vpop.permute.xlu0 %595
        %vm617 = vcmask 126016
        %618 = vst.msk [vmem:[#allocation3] sm:$0xf] %vm617, %v558
        %619 = vst.msk [vmem:[#allocation3 + $0x4] sm:$0xf] %vm617, %v560
        %620 = vst.msk [vmem:[#allocation3 + $0x8] sm:$0xf] %vm617, %v562
        %621 = vst.msk [vmem:[#allocation3 + $0xc] sm:$0xf] %vm617, %v564
        %622 = vst.msk [vmem:[#allocation3 + $0x10] sm:$0xf] %vm617, %v566
        %623 = vst.msk [vmem:[#allocation3 + $0x14] sm:$0xf] %vm617, %v568
        %624 = vst.msk [vmem:[#allocation3 + $0x18] sm:$0xf] %vm617, %v570
        %625 = vst.msk [vmem:[#allocation3 + $0x1c] sm:$0xf] %vm617, %v572
        %626 = vst.msk [vmem:[#allocation3 + $0x20] sm:$0xf] %vm617, %v574
        %627 = vst.msk [vmem:[#allocation3 + $0x24] sm:$0xf] %vm617, %v576
        %628 = vst.msk [vmem:[#allocation3 + $0x28] sm:$0xf] %vm617, %v578
        %629 = vst.msk [vmem:[#allocation3 + $0x2c] sm:$0xf] %vm617, %v580
        %630 = vst.msk [vmem:[#allocation3 + $0x30] sm:$0xf] %vm617, %v582
        %631 = vst.msk [vmem:[#allocation3 + $0x34] sm:$0xf] %vm617, %v584
        %632 = vst.msk [vmem:[#allocation3 + $0x38] sm:$0xf] %vm617, %v586
        %633 = vst.msk [vmem:[#allocation3 + $0x3c] sm:$0xf] %vm617, %v588
        %634 = vst.msk [vmem:[#allocation3 + $0x40] sm:$0xf] %vm617, %v590
        %635 = vst.msk [vmem:[#allocation3 + $0x44] sm:$0xf] %vm617, %v592
        %636 = vst.msk [vmem:[#allocation3 + $0x48] sm:$0xf] %vm617, %v594
        %637 = vst.msk [vmem:[#allocation3 + $0x4c] sm:$0xf] %vm617, %v596
        %v638 = vld [vmem:[%s242] sm:$0xe]
        %v639 = vld [vmem:[%s242 + $0x4] sm:$0xf]
        %v640 = vld [vmem:[%s242 + $0x8] sm:$0x1]
        %v641 = vld [vmem:[%s242 + $0xc] sm:$0xe]
        %v642 = vld [vmem:[%s242 + $0x10] sm:$0xf]
        %v643 = vld [vmem:[%s242 + $0x14] sm:$0x1]
        %v644 = vld [vmem:[%s242 + $0x18] sm:$0xe]
        %v645 = vld [vmem:[%s242 + $0x1c] sm:$0xf]
        %v646 = vld [vmem:[%s242 + $0x20] sm:$0x1]
        %v647 = vld [vmem:[%s242 + $0x24] sm:$0xe]
        %v648 = vld [vmem:[%s242 + $0x28] sm:$0xf]
        %v649 = vld [vmem:[%s242 + $0x2c] sm:$0x1]
        %v650 = vld [vmem:[%s242 + $0x30] sm:$0xe]
        %v651 = vld [vmem:[%s242 + $0x34] sm:$0xf]
        %v652 = vld [vmem:[%s242 + $0x38] sm:$0x1]
        %v653 = vld [vmem:[%s242 + $0x3c] sm:$0xe]
        %v654 = vld [vmem:[%s242 + $0x40] sm:$0xf]
        %v655 = vld [vmem:[%s242 + $0x44] sm:$0x1]
        %v656 = vld [vmem:[%s242 + $0x48] sm:$0xe]
        %v657 = vld [vmem:[%s242 + $0x4c] sm:$0xf]
        %v658 = vld [vmem:[%s242 + $0x50] sm:$0x1]
        %v659 = vld [vmem:[%s242 + $0x54] sm:$0xe]
        %v660 = vld [vmem:[%s242 + $0x58] sm:$0xf]
        %v661 = vld [vmem:[%s242 + $0x5c] sm:$0x1]
        %v662 = vld [vmem:[%s242 + $0x60] sm:$0xe]
        %v663 = vld [vmem:[%s242 + $0x64] sm:$0xf]
        %v664 = vld [vmem:[%s242 + $0x68] sm:$0x1]
        %v665 = vld [vmem:[%s242 + $0x6c] sm:$0xe]
        %v666 = vld [vmem:[%s242 + $0x70] sm:$0xf]
        %v667 = vld [vmem:[%s242 + $0x74] sm:$0x1]
        %vm698 = vcmask 1042432
        %vm699 = vcmask 1046532
        %vm700 = vmor %vm698, %vm699
        %v701 = vrot.slane %v638, 5
        %v702 = vrot.slane %v701, 4
        %v703 = vrot.slane %v639, 5
        %v704 = vsel %vm700, %v702, %v703
        %v705 = vrot.slane %v703, 4
        %v706 = vrot.slane %v640, 5
        %v707 = vsel %vm700, %v705, %v706
        %v708 = vrot.slane %v641, 5
        %v709 = vrot.slane %v708, 4
        %v710 = vrot.slane %v642, 5
        %v711 = vsel %vm700, %v709, %v710
        %v712 = vrot.slane %v710, 4
        %v713 = vrot.slane %v643, 5
        %v714 = vsel %vm700, %v712, %v713
        %v715 = vrot.slane %v644, 5
        %v716 = vrot.slane %v715, 4
        %v717 = vrot.slane %v645, 5
        %v718 = vsel %vm700, %v716, %v717
        %v719 = vrot.slane %v717, 4
        %v720 = vrot.slane %v646, 5
        %v721 = vsel %vm700, %v719, %v720
        %v722 = vrot.slane %v647, 5
        %v723 = vrot.slane %v722, 4
        %v724 = vrot.slane %v648, 5
        %v725 = vsel %vm700, %v723, %v724
        %v726 = vrot.slane %v724, 4
        %v727 = vrot.slane %v649, 5
        %v728 = vsel %vm700, %v726, %v727
        %v729 = vrot.slane %v650, 5
        %v730 = vrot.slane %v729, 4
        %v731 = vrot.slane %v651, 5
        %v732 = vsel %vm700, %v730, %v731
        %v733 = vrot.slane %v731, 4
        %v734 = vrot.slane %v652, 5
        %v735 = vsel %vm700, %v733, %v734
        %v736 = vrot.slane %v653, 5
        %v737 = vrot.slane %v736, 4
        %v738 = vrot.slane %v654, 5
        %v739 = vsel %vm700, %v737, %v738
        %v740 = vrot.slane %v738, 4
        %v741 = vrot.slane %v655, 5
        %v742 = vsel %vm700, %v740, %v741
        %v743 = vrot.slane %v656, 5
        %v744 = vrot.slane %v743, 4
        %v745 = vrot.slane %v657, 5
        %v746 = vsel %vm700, %v744, %v745
        %v747 = vrot.slane %v745, 4
        %v748 = vrot.slane %v658, 5
        %v749 = vsel %vm700, %v747, %v748
        %v750 = vrot.slane %v659, 5
        %v751 = vrot.slane %v750, 4
        %v752 = vrot.slane %v660, 5
        %v753 = vsel %vm700, %v751, %v752
        %v754 = vrot.slane %v752, 4
        %v755 = vrot.slane %v661, 5
        %v756 = vsel %vm700, %v754, %v755
        %v757 = vrot.slane %v662, 5
        %v758 = vrot.slane %v757, 4
        %v759 = vrot.slane %v663, 5
        %v760 = vsel %vm700, %v758, %v759
        %v761 = vrot.slane %v759, 4
        %v762 = vrot.slane %v664, 5
        %v763 = vsel %vm700, %v761, %v762
        %v764 = vrot.slane %v665, 5
        %v765 = vrot.slane %v764, 4
        %v766 = vrot.slane %v666, 5
        %v767 = vsel %vm700, %v765, %v766
        %v768 = vrot.slane %v766, 4
        %v769 = vrot.slane %v667, 5
        %v770 = vsel %vm700, %v768, %v769
        %771 = vrot.lane.b32.xlu0 %v704, 16
        %v772 = vpop.permute.xlu0 %771
        %773 = vrot.lane.b32.xlu0 %v707, 16
        %v774 = vpop.permute.xlu0 %773
        %775 = vrot.lane.b32.xlu0 %v711, 16
        %v776 = vpop.permute.xlu0 %775
        %777 = vrot.lane.b32.xlu0 %v714, 16
        %v778 = vpop.permute.xlu0 %777
        %779 = vrot.lane.b32.xlu0 %v718, 16
        %v780 = vpop.permute.xlu0 %779
        %781 = vrot.lane.b32.xlu0 %v721, 16
        %v782 = vpop.permute.xlu0 %781
        %783 = vrot.lane.b32.xlu0 %v725, 16
        %v784 = vpop.permute.xlu0 %783
        %785 = vrot.lane.b32.xlu0 %v728, 16
        %v786 = vpop.permute.xlu0 %785
        %787 = vrot.lane.b32.xlu0 %v732, 16
        %v788 = vpop.permute.xlu0 %787
        %789 = vrot.lane.b32.xlu0 %v735, 16
        %v790 = vpop.permute.xlu0 %789
        %791 = vrot.lane.b32.xlu0 %v739, 16
        %v792 = vpop.permute.xlu0 %791
        %793 = vrot.lane.b32.xlu0 %v742, 16
        %v794 = vpop.permute.xlu0 %793
        %795 = vrot.lane.b32.xlu0 %v746, 16
        %v796 = vpop.permute.xlu0 %795
        %797 = vrot.lane.b32.xlu0 %v749, 16
        %v798 = vpop.permute.xlu0 %797
        %799 = vrot.lane.b32.xlu0 %v753, 16
        %v800 = vpop.permute.xlu0 %799
        %801 = vrot.lane.b32.xlu0 %v756, 16
        %v802 = vpop.permute.xlu0 %801
        %803 = vrot.lane.b32.xlu0 %v760, 16
        %v804 = vpop.permute.xlu0 %803
        %805 = vrot.lane.b32.xlu0 %v763, 16
        %v806 = vpop.permute.xlu0 %805
        %807 = vrot.lane.b32.xlu0 %v767, 16
        %v808 = vpop.permute.xlu0 %807
        %809 = vrot.lane.b32.xlu0 %v770, 16
        %v810 = vpop.permute.xlu0 %809
        %vm831 = vcmask 191616
        %832 = vst.msk [vmem:[#allocation3] sm:$0xf] %vm831, %v772
        %833 = vst.msk [vmem:[#allocation3 + $0x4] sm:$0xf] %vm831, %v774
        %834 = vst.msk [vmem:[#allocation3 + $0x8] sm:$0xf] %vm831, %v776
        %835 = vst.msk [vmem:[#allocation3 + $0xc] sm:$0xf] %vm831, %v778
        %836 = vst.msk [vmem:[#allocation3 + $0x10] sm:$0xf] %vm831, %v780
        %837 = vst.msk [vmem:[#allocation3 + $0x14] sm:$0xf] %vm831, %v782
        %838 = vst.msk [vmem:[#allocation3 + $0x18] sm:$0xf] %vm831, %v784
        %839 = vst.msk [vmem:[#allocation3 + $0x1c] sm:$0xf] %vm831, %v786
        %840 = vst.msk [vmem:[#allocation3 + $0x20] sm:$0xf] %vm831, %v788
        %841 = vst.msk [vmem:[#allocation3 + $0x24] sm:$0xf] %vm831, %v790
        %842 = vst.msk [vmem:[#allocation3 + $0x28] sm:$0xf] %vm831, %v792
        %843 = vst.msk [vmem:[#allocation3 + $0x2c] sm:$0xf] %vm831, %v794
        %844 = vst.msk [vmem:[#allocation3 + $0x30] sm:$0xf] %vm831, %v796
        %845 = vst.msk [vmem:[#allocation3 + $0x34] sm:$0xf] %vm831, %v798
        %846 = vst.msk [vmem:[#allocation3 + $0x38] sm:$0xf] %vm831, %v800
        %847 = vst.msk [vmem:[#allocation3 + $0x3c] sm:$0xf] %vm831, %v802
        %848 = vst.msk [vmem:[#allocation3 + $0x40] sm:$0xf] %vm831, %v804
        %849 = vst.msk [vmem:[#allocation3 + $0x44] sm:$0xf] %vm831, %v806
        %850 = vst.msk [vmem:[#allocation3 + $0x48] sm:$0xf] %vm831, %v808
        %851 = vst.msk [vmem:[#allocation3 + $0x4c] sm:$0xf] %vm831, %v810
        %s852 = sadd.s32 %s239, 1
        %s853 = smul.u32 %s852, 3
        %s854 = smul.addr %s853, 4
        %s855 = scalar_lea.vmem %s236, %s854
        %v856 = vld [vmem:[%s855] sm:$0xf]
        %v857 = vld [vmem:[%s855 + $0x4] sm:$0xf]
        %v858 = vld [vmem:[%s855 + $0xc] sm:$0xf]
        %v859 = vld [vmem:[%s855 + $0x10] sm:$0xf]
        %v860 = vld [vmem:[%s855 + $0x18] sm:$0xf]
        %v861 = vld [vmem:[%s855 + $0x1c] sm:$0xf]
        %v862 = vld [vmem:[%s855 + $0x24] sm:$0xf]
        %v863 = vld [vmem:[%s855 + $0x28] sm:$0xf]
        %v864 = vld [vmem:[%s855 + $0x30] sm:$0xf]
        %v865 = vld [vmem:[%s855 + $0x34] sm:$0xf]
        %v866 = vld [vmem:[%s855 + $0x3c] sm:$0xf]
        %v867 = vld [vmem:[%s855 + $0x40] sm:$0xf]
        %v868 = vld [vmem:[%s855 + $0x48] sm:$0xf]
        %v869 = vld [vmem:[%s855 + $0x4c] sm:$0xf]
        %v870 = vld [vmem:[%s855 + $0x54] sm:$0xf]
        %v871 = vld [vmem:[%s855 + $0x58] sm:$0xf]
        %v872 = vld [vmem:[%s855 + $0x60] sm:$0xf]
        %v873 = vld [vmem:[%s855 + $0x64] sm:$0xf]
        %v874 = vld [vmem:[%s855 + $0x6c] sm:$0xf]
        %v875 = vld [vmem:[%s855 + $0x70] sm:$0xf]
        %896 = vrot.lane.b32.xlu0 %v856, 24
        %v897 = vpop.permute.xlu0 %896
        %898 = vrot.lane.b32.xlu0 %v857, 24
        %v899 = vpop.permute.xlu0 %898
        %900 = vrot.lane.b32.xlu0 %v858, 24
        %v901 = vpop.permute.xlu0 %900
        %902 = vrot.lane.b32.xlu0 %v859, 24
        %v903 = vpop.permute.xlu0 %902
        %904 = vrot.lane.b32.xlu0 %v860, 24
        %v905 = vpop.permute.xlu0 %904
        %906 = vrot.lane.b32.xlu0 %v861, 24
        %v907 = vpop.permute.xlu0 %906
        %908 = vrot.lane.b32.xlu0 %v862, 24
        %v909 = vpop.permute.xlu0 %908
        %910 = vrot.lane.b32.xlu0 %v863, 24
        %v911 = vpop.permute.xlu0 %910
        %912 = vrot.lane.b32.xlu0 %v864, 24
        %v913 = vpop.permute.xlu0 %912
        %914 = vrot.lane.b32.xlu0 %v865, 24
        %v915 = vpop.permute.xlu0 %914
        %916 = vrot.lane.b32.xlu0 %v866, 24
        %v917 = vpop.permute.xlu0 %916
        %918 = vrot.lane.b32.xlu0 %v867, 24
        %v919 = vpop.permute.xlu0 %918
        %920 = vrot.lane.b32.xlu0 %v868, 24
        %v921 = vpop.permute.xlu0 %920
        %922 = vrot.lane.b32.xlu0 %v869, 24
        %v923 = vpop.permute.xlu0 %922
        %924 = vrot.lane.b32.xlu0 %v870, 24
        %v925 = vpop.permute.xlu0 %924
        %926 = vrot.lane.b32.xlu0 %v871, 24
        %v927 = vpop.permute.xlu0 %926
        %928 = vrot.lane.b32.xlu0 %v872, 24
        %v929 = vpop.permute.xlu0 %928
        %930 = vrot.lane.b32.xlu0 %v873, 24
        %v931 = vpop.permute.xlu0 %930
        %932 = vrot.lane.b32.xlu0 %v874, 24
        %v933 = vpop.permute.xlu0 %932
        %934 = vrot.lane.b32.xlu0 %v875, 24
        %v935 = vpop.permute.xlu0 %934
        %vm956 = vcmask 257216
        %957 = vst.msk [vmem:[#allocation3] sm:$0xf] %vm956, %v897
        %958 = vst.msk [vmem:[#allocation3 + $0x4] sm:$0xf] %vm956, %v899
        %959 = vst.msk [vmem:[#allocation3 + $0x8] sm:$0xf] %vm956, %v901
        %960 = vst.msk [vmem:[#allocation3 + $0xc] sm:$0xf] %vm956, %v903
        %961 = vst.msk [vmem:[#allocation3 + $0x10] sm:$0xf] %vm956, %v905
        %962 = vst.msk [vmem:[#allocation3 + $0x14] sm:$0xf] %vm956, %v907
        %963 = vst.msk [vmem:[#allocation3 + $0x18] sm:$0xf] %vm956, %v909
        %964 = vst.msk [vmem:[#allocation3 + $0x1c] sm:$0xf] %vm956, %v911
        %965 = vst.msk [vmem:[#allocation3 + $0x20] sm:$0xf] %vm956, %v913
        %966 = vst.msk [vmem:[#allocation3 + $0x24] sm:$0xf] %vm956, %v915
        %967 = vst.msk [vmem:[#allocation3 + $0x28] sm:$0xf] %vm956, %v917
        %968 = vst.msk [vmem:[#allocation3 + $0x2c] sm:$0xf] %vm956, %v919
        %969 = vst.msk [vmem:[#allocation3 + $0x30] sm:$0xf] %vm956, %v921
        %970 = vst.msk [vmem:[#allocation3 + $0x34] sm:$0xf] %vm956, %v923
        %971 = vst.msk [vmem:[#allocation3 + $0x38] sm:$0xf] %vm956, %v925
        %972 = vst.msk [vmem:[#allocation3 + $0x3c] sm:$0xf] %vm956, %v927
        %973 = vst.msk [vmem:[#allocation3 + $0x40] sm:$0xf] %vm956, %v929
        %974 = vst.msk [vmem:[#allocation3 + $0x44] sm:$0xf] %vm956, %v931
        %975 = vst.msk [vmem:[#allocation3 + $0x48] sm:$0xf] %vm956, %v933
        %976 = vst.msk [vmem:[#allocation3 + $0x4c] sm:$0xf] %vm956, %v935
        %v977 = vld [vmem:[%s855] sm:$0xf]
        %v978 = vld [vmem:[%s855 + $0x4] sm:$0xf]
        %v979 = vld [vmem:[%s855 + $0x8] sm:$0x1]
        %v980 = vld [vmem:[%s855 + $0xc] sm:$0xf]
        %v981 = vld [vmem:[%s855 + $0x10] sm:$0xf]
        %v982 = vld [vmem:[%s855 + $0x14] sm:$0x1]
        %v983 = vld [vmem:[%s855 + $0x18] sm:$0xf]
        %v984 = vld [vmem:[%s855 + $0x1c] sm:$0xf]
        %v985 = vld [vmem:[%s855 + $0x20] sm:$0x1]
        %v986 = vld [vmem:[%s855 + $0x24] sm:$0xf]
        %v987 = vld [vmem:[%s855 + $0x28] sm:$0xf]
        %v988 = vld [vmem:[%s855 + $0x2c] sm:$0x1]
        %v989 = vld [vmem:[%s855 + $0x30] sm:$0xf]
        %v990 = vld [vmem:[%s855 + $0x34] sm:$0xf]
        %v991 = vld [vmem:[%s855 + $0x38] sm:$0x1]
        %v992 = vld [vmem:[%s855 + $0x3c] sm:$0xf]
        %v993 = vld [vmem:[%s855 + $0x40] sm:$0xf]
        %v994 = vld [vmem:[%s855 + $0x44] sm:$0x1]
        %v995 = vld [vmem:[%s855 + $0x48] sm:$0xf]
        %v996 = vld [vmem:[%s855 + $0x4c] sm:$0xf]
        %v997 = vld [vmem:[%s855 + $0x50] sm:$0x1]
        %v998 = vld [vmem:[%s855 + $0x54] sm:$0xf]
        %v999 = vld [vmem:[%s855 + $0x58] sm:$0xf]
        %v1000 = vld [vmem:[%s855 + $0x5c] sm:$0x1]
        %v1001 = vld [vmem:[%s855 + $0x60] sm:$0xf]
        %v1002 = vld [vmem:[%s855 + $0x64] sm:$0xf]
        %v1003 = vld [vmem:[%s855 + $0x68] sm:$0x1]
        %v1004 = vld [vmem:[%s855 + $0x6c] sm:$0xf]
        %v1005 = vld [vmem:[%s855 + $0x70] sm:$0xf]
        %v1006 = vld [vmem:[%s855 + $0x74] sm:$0x1]
        %v1008 = vshrl.u32 %v977, 16
        %v1010 = vrot.slane %v1008, 4
        %v1011 = vshll.u32 %v977, 16
        %v1013 = vrot.slane %v1011, 5
        %v1014 = vor.u32 %v1010, %v1013
        %v1015 = vrot.slane %v1014, 4
        %v1017 = vshll.u32 %v978, 16
        %v1019 = vrot.slane %v1017, 5
        %v1020 = vsel %vm316, %v1015, %v1019
        %v1021 = vshrl.u32 %v978, 16
        %v1023 = vrot.slane %v1021, 4
        %v1024 = vor.u32 %v1023, %v1019
        %v1025 = vrot.slane %v1024, 4
        %v1027 = vshll.u32 %v979, 16
        %v1029 = vrot.slane %v1027, 5
        %v1030 = vsel %vm316, %v1025, %v1029
        %v1032 = vshrl.u32 %v980, 16
        %v1034 = vrot.slane %v1032, 4
        %v1035 = vshll.u32 %v980, 16
        %v1037 = vrot.slane %v1035, 5
        %v1038 = vor.u32 %v1034, %v1037
        %v1039 = vrot.slane %v1038, 4
        %v1041 = vshll.u32 %v981, 16
        %v1043 = vrot.slane %v1041, 5
        %v1044 = vsel %vm316, %v1039, %v1043
        %v1045 = vshrl.u32 %v981, 16
        %v1047 = vrot.slane %v1045, 4
        %v1048 = vor.u32 %v1047, %v1043
        %v1049 = vrot.slane %v1048, 4
        %v1051 = vshll.u32 %v982, 16
        %v1053 = vrot.slane %v1051, 5
        %v1054 = vsel %vm316, %v1049, %v1053
        %v1056 = vshrl.u32 %v983, 16
        %v1058 = vrot.slane %v1056, 4
        %v1059 = vshll.u32 %v983, 16
        %v1061 = vrot.slane %v1059, 5
        %v1062 = vor.u32 %v1058, %v1061
        %v1063 = vrot.slane %v1062, 4
        %v1065 = vshll.u32 %v984, 16
        %v1067 = vrot.slane %v1065, 5
        %v1068 = vsel %vm316, %v1063, %v1067
        %v1069 = vshrl.u32 %v984, 16
        %v1071 = vrot.slane %v1069, 4
        %v1072 = vor.u32 %v1071, %v1067
        %v1073 = vrot.slane %v1072, 4
        %v1075 = vshll.u32 %v985, 16
        %v1077 = vrot.slane %v1075, 5
        %v1078 = vsel %vm316, %v1073, %v1077
        %v1080 = vshrl.u32 %v986, 16
        %v1082 = vrot.slane %v1080, 4
        %v1083 = vshll.u32 %v986, 16
        %v1085 = vrot.slane %v1083, 5
        %v1086 = vor.u32 %v1082, %v1085
        %v1087 = vrot.slane %v1086, 4
        %v1089 = vshll.u32 %v987, 16
        %v1091 = vrot.slane %v1089, 5
        %v1092 = vsel %vm316, %v1087, %v1091
        %v1093 = vshrl.u32 %v987, 16
        %v1095 = vrot.slane %v1093, 4
        %v1096 = vor.u32 %v1095, %v1091
        %v1097 = vrot.slane %v1096, 4
        %v1099 = vshll.u32 %v988, 16
        %v1101 = vrot.slane %v1099, 5
        %v1102 = vsel %vm316, %v1097, %v1101
        %v1104 = vshrl.u32 %v989, 16
        %v1106 = vrot.slane %v1104, 4
        %v1107 = vshll.u32 %v989, 16
        %v1109 = vrot.slane %v1107, 5
        %v1110 = vor.u32 %v1106, %v1109
        %v1111 = vrot.slane %v1110, 4
        %v1113 = vshll.u32 %v990, 16
        %v1115 = vrot.slane %v1113, 5
        %v1116 = vsel %vm316, %v1111, %v1115
        %v1117 = vshrl.u32 %v990, 16
        %v1119 = vrot.slane %v1117, 4
        %v1120 = vor.u32 %v1119, %v1115
        %v1121 = vrot.slane %v1120, 4
        %v1123 = vshll.u32 %v991, 16
        %v1125 = vrot.slane %v1123, 5
        %v1126 = vsel %vm316, %v1121, %v1125
        %v1128 = vshrl.u32 %v992, 16
        %v1130 = vrot.slane %v1128, 4
        %v1131 = vshll.u32 %v992, 16
        %v1133 = vrot.slane %v1131, 5
        %v1134 = vor.u32 %v1130, %v1133
        %v1135 = vrot.slane %v1134, 4
        %v1137 = vshll.u32 %v993, 16
        %v1139 = vrot.slane %v1137, 5
        %v1140 = vsel %vm316, %v1135, %v1139
        %v1141 = vshrl.u32 %v993, 16
        %v1143 = vrot.slane %v1141, 4
        %v1144 = vor.u32 %v1143, %v1139
        %v1145 = vrot.slane %v1144, 4
        %v1147 = vshll.u32 %v994, 16
        %v1149 = vrot.slane %v1147, 5
        %v1150 = vsel %vm316, %v1145, %v1149
        %v1152 = vshrl.u32 %v995, 16
        %v1154 = vrot.slane %v1152, 4
        %v1155 = vshll.u32 %v995, 16
        %v1157 = vrot.slane %v1155, 5
        %v1158 = vor.u32 %v1154, %v1157
        %v1159 = vrot.slane %v1158, 4
        %v1161 = vshll.u32 %v996, 16
        %v1163 = vrot.slane %v1161, 5
        %v1164 = vsel %vm316, %v1159, %v1163
        %v1165 = vshrl.u32 %v996, 16
        %v1167 = vrot.slane %v1165, 4
        %v1168 = vor.u32 %v1167, %v1163
        %v1169 = vrot.slane %v1168, 4
        %v1171 = vshll.u32 %v997, 16
        %v1173 = vrot.slane %v1171, 5
        %v1174 = vsel %vm316, %v1169, %v1173
        %v1176 = vshrl.u32 %v998, 16
        %v1178 = vrot.slane %v1176, 4
        %v1179 = vshll.u32 %v998, 16
        %v1181 = vrot.slane %v1179, 5
        %v1182 = vor.u32 %v1178, %v1181
        %v1183 = vrot.slane %v1182, 4
        %v1185 = vshll.u32 %v999, 16
        %v1187 = vrot.slane %v1185, 5
        %v1188 = vsel %vm316, %v1183, %v1187
        %v1189 = vshrl.u32 %v999, 16
        %v1191 = vrot.slane %v1189, 4
        %v1192 = vor.u32 %v1191, %v1187
        %v1193 = vrot.slane %v1192, 4
        %v1195 = vshll.u32 %v1000, 16
        %v1197 = vrot.slane %v1195, 5
        %v1198 = vsel %vm316, %v1193, %v1197
        %v1200 = vshrl.u32 %v1001, 16
        %v1202 = vrot.slane %v1200, 4
        %v1203 = vshll.u32 %v1001, 16
        %v1205 = vrot.slane %v1203, 5
        %v1206 = vor.u32 %v1202, %v1205
        %v1207 = vrot.slane %v1206, 4
        %v1209 = vshll.u32 %v1002, 16
        %v1211 = vrot.slane %v1209, 5
        %v1212 = vsel %vm316, %v1207, %v1211
        %v1213 = vshrl.u32 %v1002, 16
        %v1215 = vrot.slane %v1213, 4
        %v1216 = vor.u32 %v1215, %v1211
        %v1217 = vrot.slane %v1216, 4
        %v1219 = vshll.u32 %v1003, 16
        %v1221 = vrot.slane %v1219, 5
        %v1222 = vsel %vm316, %v1217, %v1221
        %v1224 = vshrl.u32 %v1004, 16
        %v1226 = vrot.slane %v1224, 4
        %v1227 = vshll.u32 %v1004, 16
        %v1229 = vrot.slane %v1227, 5
        %v1230 = vor.u32 %v1226, %v1229
        %v1231 = vrot.slane %v1230, 4
        %v1233 = vshll.u32 %v1005, 16
        %v1235 = vrot.slane %v1233, 5
        %v1236 = vsel %vm316, %v1231, %v1235
        %v1237 = vshrl.u32 %v1005, 16
        %v1239 = vrot.slane %v1237, 4
        %v1240 = vor.u32 %v1239, %v1235
        %v1241 = vrot.slane %v1240, 4
        %v1243 = vshll.u32 %v1006, 16
        %v1245 = vrot.slane %v1243, 5
        %v1246 = vsel %vm316, %v1241, %v1245
        %1247 = vrot.lane.b32.xlu0 %v1020, 32
        %v1248 = vpop.permute.xlu0 %1247
        %1249 = vrot.lane.b32.xlu0 %v1030, 32
        %v1250 = vpop.permute.xlu0 %1249
        %1251 = vrot.lane.b32.xlu0 %v1044, 32
        %v1252 = vpop.permute.xlu0 %1251
        %1253 = vrot.lane.b32.xlu0 %v1054, 32
        %v1254 = vpop.permute.xlu0 %1253
        %1255 = vrot.lane.b32.xlu0 %v1068, 32
        %v1256 = vpop.permute.xlu0 %1255
        %1257 = vrot.lane.b32.xlu0 %v1078, 32
        %v1258 = vpop.permute.xlu0 %1257
        %1259 = vrot.lane.b32.xlu0 %v1092, 32
        %v1260 = vpop.permute.xlu0 %1259
        %1261 = vrot.lane.b32.xlu0 %v1102, 32
        %v1262 = vpop.permute.xlu0 %1261
        %1263 = vrot.lane.b32.xlu0 %v1116, 32
        %v1264 = vpop.permute.xlu0 %1263
        %1265 = vrot.lane.b32.xlu0 %v1126, 32
        %v1266 = vpop.permute.xlu0 %1265
        %1267 = vrot.lane.b32.xlu0 %v1140, 32
        %v1268 = vpop.permute.xlu0 %1267
        %1269 = vrot.lane.b32.xlu0 %v1150, 32
        %v1270 = vpop.permute.xlu0 %1269
        %1271 = vrot.lane.b32.xlu0 %v1164, 32
        %v1272 = vpop.permute.xlu0 %1271
        %1273 = vrot.lane.b32.xlu0 %v1174, 32
        %v1274 = vpop.permute.xlu0 %1273
        %1275 = vrot.lane.b32.xlu0 %v1188, 32
        %v1276 = vpop.permute.xlu0 %1275
        %1277 = vrot.lane.b32.xlu0 %v1198, 32
        %v1278 = vpop.permute.xlu0 %1277
        %1279 = vrot.lane.b32.xlu0 %v1212, 32
        %v1280 = vpop.permute.xlu0 %1279
        %1281 = vrot.lane.b32.xlu0 %v1222, 32
        %v1282 = vpop.permute.xlu0 %1281
        %1283 = vrot.lane.b32.xlu0 %v1236, 32
        %v1284 = vpop.permute.xlu0 %1283
        %1285 = vrot.lane.b32.xlu0 %v1246, 32
        %v1286 = vpop.permute.xlu0 %1285
        %vm1307 = vcmask 322816
        %1308 = vst.msk [vmem:[#allocation3] sm:$0xf] %vm1307, %v1248
        %1309 = vst.msk [vmem:[#allocation3 + $0x4] sm:$0xf] %vm1307, %v1250
        %1310 = vst.msk [vmem:[#allocation3 + $0x8] sm:$0xf] %vm1307, %v1252
        %1311 = vst.msk [vmem:[#allocation3 + $0xc] sm:$0xf] %vm1307, %v1254
        %1312 = vst.msk [vmem:[#allocation3 + $0x10] sm:$0xf] %vm1307, %v1256
        %1313 = vst.msk [vmem:[#allocation3 + $0x14] sm:$0xf] %vm1307, %v1258
        %1314 = vst.msk [vmem:[#allocation3 + $0x18] sm:$0xf] %vm1307, %v1260
        %1315 = vst.msk [vmem:[#allocation3 + $0x1c] sm:$0xf] %vm1307, %v1262
        %1316 = vst.msk [vmem:[#allocation3 + $0x20] sm:$0xf] %vm1307, %v1264
        %1317 = vst.msk [vmem:[#allocation3 + $0x24] sm:$0xf] %vm1307, %v1266
        %1318 = vst.msk [vmem:[#allocation3 + $0x28] sm:$0xf] %vm1307, %v1268
        %1319 = vst.msk [vmem:[#allocation3 + $0x2c] sm:$0xf] %vm1307, %v1270
        %1320 = vst.msk [vmem:[#allocation3 + $0x30] sm:$0xf] %vm1307, %v1272
        %1321 = vst.msk [vmem:[#allocation3 + $0x34] sm:$0xf] %vm1307, %v1274
        %1322 = vst.msk [vmem:[#allocation3 + $0x38] sm:$0xf] %vm1307, %v1276
        %1323 = vst.msk [vmem:[#allocation3 + $0x3c] sm:$0xf] %vm1307, %v1278
        %1324 = vst.msk [vmem:[#allocation3 + $0x40] sm:$0xf] %vm1307, %v1280
        %1325 = vst.msk [vmem:[#allocation3 + $0x44] sm:$0xf] %vm1307, %v1282
        %1326 = vst.msk [vmem:[#allocation3 + $0x48] sm:$0xf] %vm1307, %v1284
        %1327 = vst.msk [vmem:[#allocation3 + $0x4c] sm:$0xf] %vm1307, %v1286
        %v1328 = vld [vmem:[%s855] sm:$0xe]
        %v1329 = vld [vmem:[%s855 + $0x4] sm:$0xf]
        %v1330 = vld [vmem:[%s855 + $0x8] sm:$0x1]
        %v1331 = vld [vmem:[%s855 + $0xc] sm:$0xe]
        %v1332 = vld [vmem:[%s855 + $0x10] sm:$0xf]
        %v1333 = vld [vmem:[%s855 + $0x14] sm:$0x1]
        %v1334 = vld [vmem:[%s855 + $0x18] sm:$0xe]
        %v1335 = vld [vmem:[%s855 + $0x1c] sm:$0xf]
        %v1336 = vld [vmem:[%s855 + $0x20] sm:$0x1]
        %v1337 = vld [vmem:[%s855 + $0x24] sm:$0xe]
        %v1338 = vld [vmem:[%s855 + $0x28] sm:$0xf]
        %v1339 = vld [vmem:[%s855 + $0x2c] sm:$0x1]
        %v1340 = vld [vmem:[%s855 + $0x30] sm:$0xe]
        %v1341 = vld [vmem:[%s855 + $0x34] sm:$0xf]
        %v1342 = vld [vmem:[%s855 + $0x38] sm:$0x1]
        %v1343 = vld [vmem:[%s855 + $0x3c] sm:$0xe]
        %v1344 = vld [vmem:[%s855 + $0x40] sm:$0xf]
        %v1345 = vld [vmem:[%s855 + $0x44] sm:$0x1]
        %v1346 = vld [vmem:[%s855 + $0x48] sm:$0xe]
        %v1347 = vld [vmem:[%s855 + $0x4c] sm:$0xf]
        %v1348 = vld [vmem:[%s855 + $0x50] sm:$0x1]
        %v1349 = vld [vmem:[%s855 + $0x54] sm:$0xe]
        %v1350 = vld [vmem:[%s855 + $0x58] sm:$0xf]
        %v1351 = vld [vmem:[%s855 + $0x5c] sm:$0x1]
        %v1352 = vld [vmem:[%s855 + $0x60] sm:$0xe]
        %v1353 = vld [vmem:[%s855 + $0x64] sm:$0xf]
        %v1354 = vld [vmem:[%s855 + $0x68] sm:$0x1]
        %v1355 = vld [vmem:[%s855 + $0x6c] sm:$0xe]
        %v1356 = vld [vmem:[%s855 + $0x70] sm:$0xf]
        %v1357 = vld [vmem:[%s855 + $0x74] sm:$0x1]
        %v1388 = vrot.slane %v1328, 5
        %v1389 = vrot.slane %v1388, 4
        %v1390 = vrot.slane %v1329, 5
        %v1391 = vsel %vm700, %v1389, %v1390
        %v1392 = vrot.slane %v1390, 4
        %v1393 = vrot.slane %v1330, 5
        %v1394 = vsel %vm700, %v1392, %v1393
        %v1395 = vrot.slane %v1331, 5
        %v1396 = vrot.slane %v1395, 4
        %v1397 = vrot.slane %v1332, 5
        %v1398 = vsel %vm700, %v1396, %v1397
        %v1399 = vrot.slane %v1397, 4
        %v1400 = vrot.slane %v1333, 5
        %v1401 = vsel %vm700, %v1399, %v1400
        %v1402 = vrot.slane %v1334, 5
        %v1403 = vrot.slane %v1402, 4
        %v1404 = vrot.slane %v1335, 5
        %v1405 = vsel %vm700, %v1403, %v1404
        %v1406 = vrot.slane %v1404, 4
        %v1407 = vrot.slane %v1336, 5
        %v1408 = vsel %vm700, %v1406, %v1407
        %v1409 = vrot.slane %v1337, 5
        %v1410 = vrot.slane %v1409, 4
        %v1411 = vrot.slane %v1338, 5
        %v1412 = vsel %vm700, %v1410, %v1411
        %v1413 = vrot.slane %v1411, 4
        %v1414 = vrot.slane %v1339, 5
        %v1415 = vsel %vm700, %v1413, %v1414
        %v1416 = vrot.slane %v1340, 5
        %v1417 = vrot.slane %v1416, 4
        %v1418 = vrot.slane %v1341, 5
        %v1419 = vsel %vm700, %v1417, %v1418
        %v1420 = vrot.slane %v1418, 4
        %v1421 = vrot.slane %v1342, 5
        %v1422 = vsel %vm700, %v1420, %v1421
        %v1423 = vrot.slane %v1343, 5
        %v1424 = vrot.slane %v1423, 4
        %v1425 = vrot.slane %v1344, 5
        %v1426 = vsel %vm700, %v1424, %v1425
        %v1427 = vrot.slane %v1425, 4
        %v1428 = vrot.slane %v1345, 5
        %v1429 = vsel %vm700, %v1427, %v1428
        %v1430 = vrot.slane %v1346, 5
        %v1431 = vrot.slane %v1430, 4
        %v1432 = vrot.slane %v1347, 5
        %v1433 = vsel %vm700, %v1431, %v1432
        %v1434 = vrot.slane %v1432, 4
        %v1435 = vrot.slane %v1348, 5
        %v1436 = vsel %vm700, %v1434, %v1435
        %v1437 = vrot.slane %v1349, 5
        %v1438 = vrot.slane %v1437, 4
        %v1439 = vrot.slane %v1350, 5
        %v1440 = vsel %vm700, %v1438, %v1439
        %v1441 = vrot.slane %v1439, 4
        %v1442 = vrot.slane %v1351, 5
        %v1443 = vsel %vm700, %v1441, %v1442
        %v1444 = vrot.slane %v1352, 5
        %v1445 = vrot.slane %v1444, 4
        %v1446 = vrot.slane %v1353, 5
        %v1447 = vsel %vm700, %v1445, %v1446
        %v1448 = vrot.slane %v1446, 4
        %v1449 = vrot.slane %v1354, 5
        %v1450 = vsel %vm700, %v1448, %v1449
        %v1451 = vrot.slane %v1355, 5
        %v1452 = vrot.slane %v1451, 4
        %v1453 = vrot.slane %v1356, 5
        %v1454 = vsel %vm700, %v1452, %v1453
        %v1455 = vrot.slane %v1453, 4
        %v1456 = vrot.slane %v1357, 5
        %v1457 = vsel %vm700, %v1455, %v1456
        %1458 = vrot.lane.b32.xlu0 %v1391, 40
        %v1459 = vpop.permute.xlu0 %1458
        %1460 = vrot.lane.b32.xlu0 %v1394, 40
        %v1461 = vpop.permute.xlu0 %1460
        %1462 = vrot.lane.b32.xlu0 %v1398, 40
        %v1463 = vpop.permute.xlu0 %1462
        %1464 = vrot.lane.b32.xlu0 %v1401, 40
        %v1465 = vpop.permute.xlu0 %1464
        %1466 = vrot.lane.b32.xlu0 %v1405, 40
        %v1467 = vpop.permute.xlu0 %1466
        %1468 = vrot.lane.b32.xlu0 %v1408, 40
        %v1469 = vpop.permute.xlu0 %1468
        %1470 = vrot.lane.b32.xlu0 %v1412, 40
        %v1471 = vpop.permute.xlu0 %1470
        %1472 = vrot.lane.b32.xlu0 %v1415, 40
        %v1473 = vpop.permute.xlu0 %1472
        %1474 = vrot.lane.b32.xlu0 %v1419, 40
        %v1475 = vpop.permute.xlu0 %1474
        %1476 = vrot.lane.b32.xlu0 %v1422, 40
        %v1477 = vpop.permute.xlu0 %1476
        %1478 = vrot.lane.b32.xlu0 %v1426, 40
        %v1479 = vpop.permute.xlu0 %1478
        %1480 = vrot.lane.b32.xlu0 %v1429, 40
        %v1481 = vpop.permute.xlu0 %1480
        %1482 = vrot.lane.b32.xlu0 %v1433, 40
        %v1483 = vpop.permute.xlu0 %1482
        %1484 = vrot.lane.b32.xlu0 %v1436, 40
        %v1485 = vpop.permute.xlu0 %1484
        %1486 = vrot.lane.b32.xlu0 %v1440, 40
        %v1487 = vpop.permute.xlu0 %1486
        %1488 = vrot.lane.b32.xlu0 %v1443, 40
        %v1489 = vpop.permute.xlu0 %1488
        %1490 = vrot.lane.b32.xlu0 %v1447, 40
        %v1491 = vpop.permute.xlu0 %1490
        %1492 = vrot.lane.b32.xlu0 %v1450, 40
        %v1493 = vpop.permute.xlu0 %1492
        %1494 = vrot.lane.b32.xlu0 %v1454, 40
        %v1495 = vpop.permute.xlu0 %1494
        %1496 = vrot.lane.b32.xlu0 %v1457, 40
        %v1497 = vpop.permute.xlu0 %1496
        %vm1518 = vcmask 388416
        %1519 = vst.msk [vmem:[#allocation3] sm:$0xf] %vm1518, %v1459
        %1520 = vst.msk [vmem:[#allocation3 + $0x4] sm:$0xf] %vm1518, %v1461
        %1521 = vst.msk [vmem:[#allocation3 + $0x8] sm:$0xf] %vm1518, %v1463
        %1522 = vst.msk [vmem:[#allocation3 + $0xc] sm:$0xf] %vm1518, %v1465
        %1523 = vst.msk [vmem:[#allocation3 + $0x10] sm:$0xf] %vm1518, %v1467
        %1524 = vst.msk [vmem:[#allocation3 + $0x14] sm:$0xf] %vm1518, %v1469
        %1525 = vst.msk [vmem:[#allocation3 + $0x18] sm:$0xf] %vm1518, %v1471
        %1526 = vst.msk [vmem:[#allocation3 + $0x1c] sm:$0xf] %vm1518, %v1473
        %1527 = vst.msk [vmem:[#allocation3 + $0x20] sm:$0xf] %vm1518, %v1475
        %1528 = vst.msk [vmem:[#allocation3 + $0x24] sm:$0xf] %vm1518, %v1477
        %1529 = vst.msk [vmem:[#allocation3 + $0x28] sm:$0xf] %vm1518, %v1479
        %1530 = vst.msk [vmem:[#allocation3 + $0x2c] sm:$0xf] %vm1518, %v1481
        %1531 = vst.msk [vmem:[#allocation3 + $0x30] sm:$0xf] %vm1518, %v1483
        %1532 = vst.msk [vmem:[#allocation3 + $0x34] sm:$0xf] %vm1518, %v1485
        %1533 = vst.msk [vmem:[#allocation3 + $0x38] sm:$0xf] %vm1518, %v1487
        %1534 = vst.msk [vmem:[#allocation3 + $0x3c] sm:$0xf] %vm1518, %v1489
        %1535 = vst.msk [vmem:[#allocation3 + $0x40] sm:$0xf] %vm1518, %v1491
        %1536 = vst.msk [vmem:[#allocation3 + $0x44] sm:$0xf] %vm1518, %v1493
        %1537 = vst.msk [vmem:[#allocation3 + $0x48] sm:$0xf] %vm1518, %v1495
        %1538 = vst.msk [vmem:[#allocation3 + $0x4c] sm:$0xf] %vm1518, %v1497
        %s1539 = sadd.s32 %s239, 2
        %s1540 = smul.u32 %s1539, 3
        %s1541 = smul.addr %s1540, 4
        %s1542 = scalar_lea.vmem %s236, %s1541
        %v1543 = vld [vmem:[%s1542] sm:$0xf]
        %v1544 = vld [vmem:[%s1542 + $0x4] sm:$0xf]
        %v1545 = vld [vmem:[%s1542 + $0xc] sm:$0xf]
        %v1546 = vld [vmem:[%s1542 + $0x10] sm:$0xf]
        %v1547 = vld [vmem:[%s1542 + $0x18] sm:$0xf]
        %v1548 = vld [vmem:[%s1542 + $0x1c] sm:$0xf]
        %v1549 = vld [vmem:[%s1542 + $0x24] sm:$0xf]
        %v1550 = vld [vmem:[%s1542 + $0x28] sm:$0xf]
        %v1551 = vld [vmem:[%s1542 + $0x30] sm:$0xf]
        %v1552 = vld [vmem:[%s1542 + $0x34] sm:$0xf]
        %v1553 = vld [vmem:[%s1542 + $0x3c] sm:$0xf]
        %v1554 = vld [vmem:[%s1542 + $0x40] sm:$0xf]
        %v1555 = vld [vmem:[%s1542 + $0x48] sm:$0xf]
        %v1556 = vld [vmem:[%s1542 + $0x4c] sm:$0xf]
        %v1557 = vld [vmem:[%s1542 + $0x54] sm:$0xf]
        %v1558 = vld [vmem:[%s1542 + $0x58] sm:$0xf]
        %v1559 = vld [vmem:[%s1542 + $0x60] sm:$0xf]
        %v1560 = vld [vmem:[%s1542 + $0x64] sm:$0xf]
        %v1561 = vld [vmem:[%s1542 + $0x6c] sm:$0xf]
        %v1562 = vld [vmem:[%s1542 + $0x70] sm:$0xf]
        %1583 = vrot.lane.b32.xlu0 %v1543, 48
        %v1584 = vpop.permute.xlu0 %1583
        %1585 = vrot.lane.b32.xlu0 %v1544, 48
        %v1586 = vpop.permute.xlu0 %1585
        %1587 = vrot.lane.b32.xlu0 %v1545, 48
        %v1588 = vpop.permute.xlu0 %1587
        %1589 = vrot.lane.b32.xlu0 %v1546, 48
        %v1590 = vpop.permute.xlu0 %1589
        %1591 = vrot.lane.b32.xlu0 %v1547, 48
        %v1592 = vpop.permute.xlu0 %1591
        %1593 = vrot.lane.b32.xlu0 %v1548, 48
        %v1594 = vpop.permute.xlu0 %1593
        %1595 = vrot.lane.b32.xlu0 %v1549, 48
        %v1596 = vpop.permute.xlu0 %1595
        %1597 = vrot.lane.b32.xlu0 %v1550, 48
        %v1598 = vpop.permute.xlu0 %1597
        %1599 = vrot.lane.b32.xlu0 %v1551, 48
        %v1600 = vpop.permute.xlu0 %1599
        %1601 = vrot.lane.b32.xlu0 %v1552, 48
        %v1602 = vpop.permute.xlu0 %1601
        %1603 = vrot.lane.b32.xlu0 %v1553, 48
        %v1604 = vpop.permute.xlu0 %1603
        %1605 = vrot.lane.b32.xlu0 %v1554, 48
        %v1606 = vpop.permute.xlu0 %1605
        %1607 = vrot.lane.b32.xlu0 %v1555, 48
        %v1608 = vpop.permute.xlu0 %1607
        %1609 = vrot.lane.b32.xlu0 %v1556, 48
        %v1610 = vpop.permute.xlu0 %1609
        %1611 = vrot.lane.b32.xlu0 %v1557, 48
        %v1612 = vpop.permute.xlu0 %1611
        %1613 = vrot.lane.b32.xlu0 %v1558, 48
        %v1614 = vpop.permute.xlu0 %1613
        %1615 = vrot.lane.b32.xlu0 %v1559, 48
        %v1616 = vpop.permute.xlu0 %1615
        %1617 = vrot.lane.b32.xlu0 %v1560, 48
        %v1618 = vpop.permute.xlu0 %1617
        %1619 = vrot.lane.b32.xlu0 %v1561, 48
        %v1620 = vpop.permute.xlu0 %1619
        %1621 = vrot.lane.b32.xlu0 %v1562, 48
        %v1622 = vpop.permute.xlu0 %1621
        %vm1643 = vcmask 454016
        %1644 = vst.msk [vmem:[#allocation3] sm:$0xf] %vm1643, %v1584
        %1645 = vst.msk [vmem:[#allocation3 + $0x4] sm:$0xf] %vm1643, %v1586
        %1646 = vst.msk [vmem:[#allocation3 + $0x8] sm:$0xf] %vm1643, %v1588
        %1647 = vst.msk [vmem:[#allocation3 + $0xc] sm:$0xf] %vm1643, %v1590
        %1648 = vst.msk [vmem:[#allocation3 + $0x10] sm:$0xf] %vm1643, %v1592
        %1649 = vst.msk [vmem:[#allocation3 + $0x14] sm:$0xf] %vm1643, %v1594
        %1650 = vst.msk [vmem:[#allocation3 + $0x18] sm:$0xf] %vm1643, %v1596
        %1651 = vst.msk [vmem:[#allocation3 + $0x1c] sm:$0xf] %vm1643, %v1598
        %1652 = vst.msk [vmem:[#allocation3 + $0x20] sm:$0xf] %vm1643, %v1600
        %1653 = vst.msk [vmem:[#allocation3 + $0x24] sm:$0xf] %vm1643, %v1602
        %1654 = vst.msk [vmem:[#allocation3 + $0x28] sm:$0xf] %vm1643, %v1604
        %1655 = vst.msk [vmem:[#allocation3 + $0x2c] sm:$0xf] %vm1643, %v1606
        %1656 = vst.msk [vmem:[#allocation3 + $0x30] sm:$0xf] %vm1643, %v1608
        %1657 = vst.msk [vmem:[#allocation3 + $0x34] sm:$0xf] %vm1643, %v1610
        %1658 = vst.msk [vmem:[#allocation3 + $0x38] sm:$0xf] %vm1643, %v1612
        %1659 = vst.msk [vmem:[#allocation3 + $0x3c] sm:$0xf] %vm1643, %v1614
        %1660 = vst.msk [vmem:[#allocation3 + $0x40] sm:$0xf] %vm1643, %v1616
        %1661 = vst.msk [vmem:[#allocation3 + $0x44] sm:$0xf] %vm1643, %v1618
        %1662 = vst.msk [vmem:[#allocation3 + $0x48] sm:$0xf] %vm1643, %v1620
        %1663 = vst.msk [vmem:[#allocation3 + $0x4c] sm:$0xf] %vm1643, %v1622
        %v1664 = vld [vmem:[%s1542] sm:$0xf]
        %v1665 = vld [vmem:[%s1542 + $0x4] sm:$0xf]
        %v1666 = vld [vmem:[%s1542 + $0x8] sm:$0x1]
        %v1667 = vld [vmem:[%s1542 + $0xc] sm:$0xf]
        %v1668 = vld [vmem:[%s1542 + $0x10] sm:$0xf]
        %v1669 = vld [vmem:[%s1542 + $0x14] sm:$0x1]
        %v1670 = vld [vmem:[%s1542 + $0x18] sm:$0xf]
        %v1671 = vld [vmem:[%s1542 + $0x1c] sm:$0xf]
        %v1672 = vld [vmem:[%s1542 + $0x20] sm:$0x1]
        %v1673 = vld [vmem:[%s1542 + $0x24] sm:$0xf]
        %v1674 = vld [vmem:[%s1542 + $0x28] sm:$0xf]
        %v1675 = vld [vmem:[%s1542 + $0x2c] sm:$0x1]
        %v1676 = vld [vmem:[%s1542 + $0x30] sm:$0xf]
        %v1677 = vld [vmem:[%s1542 + $0x34] sm:$0xf]
        %v1678 = vld [vmem:[%s1542 + $0x38] sm:$0x1]
        %v1679 = vld [vmem:[%s1542 + $0x3c] sm:$0xf]
        %v1680 = vld [vmem:[%s1542 + $0x40] sm:$0xf]
        %v1681 = vld [vmem:[%s1542 + $0x44] sm:$0x1]
        %v1682 = vld [vmem:[%s1542 + $0x48] sm:$0xf]
        %v1683 = vld [vmem:[%s1542 + $0x4c] sm:$0xf]
        %v1684 = vld [vmem:[%s1542 + $0x50] sm:$0x1]
        %v1685 = vld [vmem:[%s1542 + $0x54] sm:$0xf]
        %v1686 = vld [vmem:[%s1542 + $0x58] sm:$0xf]
        %v1687 = vld [vmem:[%s1542 + $0x5c] sm:$0x1]
        %v1688 = vld [vmem:[%s1542 + $0x60] sm:$0xf]
        %v1689 = vld [vmem:[%s1542 + $0x64] sm:$0xf]
        %v1690 = vld [vmem:[%s1542 + $0x68] sm:$0x1]
        %v1691 = vld [vmem:[%s1542 + $0x6c] sm:$0xf]
        %v1692 = vld [vmem:[%s1542 + $0x70] sm:$0xf]
        %v1693 = vld [vmem:[%s1542 + $0x74] sm:$0x1]
        %v1695 = vshrl.u32 %v1664, 16
        %v1697 = vrot.slane %v1695, 4
        %v1698 = vshll.u32 %v1664, 16
        %v1700 = vrot.slane %v1698, 5
        %v1701 = vor.u32 %v1697, %v1700
        %v1702 = vrot.slane %v1701, 4
        %v1704 = vshll.u32 %v1665, 16
        %v1706 = vrot.slane %v1704, 5
        %v1707 = vsel %vm316, %v1702, %v1706
        %v1708 = vshrl.u32 %v1665, 16
        %v1710 = vrot.slane %v1708, 4
        %v1711 = vor.u32 %v1710, %v1706
        %v1712 = vrot.slane %v1711, 4
        %v1714 = vshll.u32 %v1666, 16
        %v1716 = vrot.slane %v1714, 5
        %v1717 = vsel %vm316, %v1712, %v1716
        %v1719 = vshrl.u32 %v1667, 16
        %v1721 = vrot.slane %v1719, 4
        %v1722 = vshll.u32 %v1667, 16
        %v1724 = vrot.slane %v1722, 5
        %v1725 = vor.u32 %v1721, %v1724
        %v1726 = vrot.slane %v1725, 4
        %v1728 = vshll.u32 %v1668, 16
        %v1730 = vrot.slane %v1728, 5
        %v1731 = vsel %vm316, %v1726, %v1730
        %v1732 = vshrl.u32 %v1668, 16
        %v1734 = vrot.slane %v1732, 4
        %v1735 = vor.u32 %v1734, %v1730
        %v1736 = vrot.slane %v1735, 4
        %v1738 = vshll.u32 %v1669, 16
        %v1740 = vrot.slane %v1738, 5
        %v1741 = vsel %vm316, %v1736, %v1740
        %v1743 = vshrl.u32 %v1670, 16
        %v1745 = vrot.slane %v1743, 4
        %v1746 = vshll.u32 %v1670, 16
        %v1748 = vrot.slane %v1746, 5
        %v1749 = vor.u32 %v1745, %v1748
        %v1750 = vrot.slane %v1749, 4
        %v1752 = vshll.u32 %v1671, 16
        %v1754 = vrot.slane %v1752, 5
        %v1755 = vsel %vm316, %v1750, %v1754
        %v1756 = vshrl.u32 %v1671, 16
        %v1758 = vrot.slane %v1756, 4
        %v1759 = vor.u32 %v1758, %v1754
        %v1760 = vrot.slane %v1759, 4
        %v1762 = vshll.u32 %v1672, 16
        %v1764 = vrot.slane %v1762, 5
        %v1765 = vsel %vm316, %v1760, %v1764
        %v1767 = vshrl.u32 %v1673, 16
        %v1769 = vrot.slane %v1767, 4
        %v1770 = vshll.u32 %v1673, 16
        %v1772 = vrot.slane %v1770, 5
        %v1773 = vor.u32 %v1769, %v1772
        %v1774 = vrot.slane %v1773, 4
        %v1776 = vshll.u32 %v1674, 16
        %v1778 = vrot.slane %v1776, 5
        %v1779 = vsel %vm316, %v1774, %v1778
        %v1780 = vshrl.u32 %v1674, 16
        %v1782 = vrot.slane %v1780, 4
        %v1783 = vor.u32 %v1782, %v1778
        %v1784 = vrot.slane %v1783, 4
        %v1786 = vshll.u32 %v1675, 16
        %v1788 = vrot.slane %v1786, 5
        %v1789 = vsel %vm316, %v1784, %v1788
        %v1791 = vshrl.u32 %v1676, 16
        %v1793 = vrot.slane %v1791, 4
        %v1794 = vshll.u32 %v1676, 16
        %v1796 = vrot.slane %v1794, 5
        %v1797 = vor.u32 %v1793, %v1796
        %v1798 = vrot.slane %v1797, 4
        %v1800 = vshll.u32 %v1677, 16
        %v1802 = vrot.slane %v1800, 5
        %v1803 = vsel %vm316, %v1798, %v1802
        %v1804 = vshrl.u32 %v1677, 16
        %v1806 = vrot.slane %v1804, 4
        %v1807 = vor.u32 %v1806, %v1802
        %v1808 = vrot.slane %v1807, 4
        %v1810 = vshll.u32 %v1678, 16
        %v1812 = vrot.slane %v1810, 5
        %v1813 = vsel %vm316, %v1808, %v1812
        %v1815 = vshrl.u32 %v1679, 16
        %v1817 = vrot.slane %v1815, 4
        %v1818 = vshll.u32 %v1679, 16
        %v1820 = vrot.slane %v1818, 5
        %v1821 = vor.u32 %v1817, %v1820
        %v1822 = vrot.slane %v1821, 4
        %v1824 = vshll.u32 %v1680, 16
        %v1826 = vrot.slane %v1824, 5
        %v1827 = vsel %vm316, %v1822, %v1826
        %v1828 = vshrl.u32 %v1680, 16
        %v1830 = vrot.slane %v1828, 4
        %v1831 = vor.u32 %v1830, %v1826
        %v1832 = vrot.slane %v1831, 4
        %v1834 = vshll.u32 %v1681, 16
        %v1836 = vrot.slane %v1834, 5
        %v1837 = vsel %vm316, %v1832, %v1836
        %v1839 = vshrl.u32 %v1682, 16
        %v1841 = vrot.slane %v1839, 4
        %v1842 = vshll.u32 %v1682, 16
        %v1844 = vrot.slane %v1842, 5
        %v1845 = vor.u32 %v1841, %v1844
        %v1846 = vrot.slane %v1845, 4
        %v1848 = vshll.u32 %v1683, 16
        %v1850 = vrot.slane %v1848, 5
        %v1851 = vsel %vm316, %v1846, %v1850
        %v1852 = vshrl.u32 %v1683, 16
        %v1854 = vrot.slane %v1852, 4
        %v1855 = vor.u32 %v1854, %v1850
        %v1856 = vrot.slane %v1855, 4
        %v1858 = vshll.u32 %v1684, 16
        %v1860 = vrot.slane %v1858, 5
        %v1861 = vsel %vm316, %v1856, %v1860
        %v1863 = vshrl.u32 %v1685, 16
        %v1865 = vrot.slane %v1863, 4
        %v1866 = vshll.u32 %v1685, 16
        %v1868 = vrot.slane %v1866, 5
        %v1869 = vor.u32 %v1865, %v1868
        %v1870 = vrot.slane %v1869, 4
        %v1872 = vshll.u32 %v1686, 16
        %v1874 = vrot.slane %v1872, 5
        %v1875 = vsel %vm316, %v1870, %v1874
        %v1876 = vshrl.u32 %v1686, 16
        %v1878 = vrot.slane %v1876, 4
        %v1879 = vor.u32 %v1878, %v1874
        %v1880 = vrot.slane %v1879, 4
        %v1882 = vshll.u32 %v1687, 16
        %v1884 = vrot.slane %v1882, 5
        %v1885 = vsel %vm316, %v1880, %v1884
        %v1887 = vshrl.u32 %v1688, 16
        %v1889 = vrot.slane %v1887, 4
        %v1890 = vshll.u32 %v1688, 16
        %v1892 = vrot.slane %v1890, 5
        %v1893 = vor.u32 %v1889, %v1892
        %v1894 = vrot.slane %v1893, 4
        %v1896 = vshll.u32 %v1689, 16
        %v1898 = vrot.slane %v1896, 5
        %v1899 = vsel %vm316, %v1894, %v1898
        %v1900 = vshrl.u32 %v1689, 16
        %v1902 = vrot.slane %v1900, 4
        %v1903 = vor.u32 %v1902, %v1898
        %v1904 = vrot.slane %v1903, 4
        %v1906 = vshll.u32 %v1690, 16
        %v1908 = vrot.slane %v1906, 5
        %v1909 = vsel %vm316, %v1904, %v1908
        %v1911 = vshrl.u32 %v1691, 16
        %v1913 = vrot.slane %v1911, 4
        %v1914 = vshll.u32 %v1691, 16
        %v1916 = vrot.slane %v1914, 5
        %v1917 = vor.u32 %v1913, %v1916
        %v1918 = vrot.slane %v1917, 4
        %v1920 = vshll.u32 %v1692, 16
        %v1922 = vrot.slane %v1920, 5
        %v1923 = vsel %vm316, %v1918, %v1922
        %v1924 = vshrl.u32 %v1692, 16
        %v1926 = vrot.slane %v1924, 4
        %v1927 = vor.u32 %v1926, %v1922
        %v1928 = vrot.slane %v1927, 4
        %v1930 = vshll.u32 %v1693, 16
        %v1932 = vrot.slane %v1930, 5
        %v1933 = vsel %vm316, %v1928, %v1932
        %1934 = vrot.lane.b32.xlu0 %v1707, 56
        %v1935 = vpop.permute.xlu0 %1934
        %1936 = vrot.lane.b32.xlu0 %v1717, 56
        %v1937 = vpop.permute.xlu0 %1936
        %1938 = vrot.lane.b32.xlu0 %v1731, 56
        %v1939 = vpop.permute.xlu0 %1938
        %1940 = vrot.lane.b32.xlu0 %v1741, 56
        %v1941 = vpop.permute.xlu0 %1940
        %1942 = vrot.lane.b32.xlu0 %v1755, 56
        %v1943 = vpop.permute.xlu0 %1942
        %1944 = vrot.lane.b32.xlu0 %v1765, 56
        %v1945 = vpop.permute.xlu0 %1944
        %1946 = vrot.lane.b32.xlu0 %v1779, 56
        %v1947 = vpop.permute.xlu0 %1946
        %1948 = vrot.lane.b32.xlu0 %v1789, 56
        %v1949 = vpop.permute.xlu0 %1948
        %1950 = vrot.lane.b32.xlu0 %v1803, 56
        %v1951 = vpop.permute.xlu0 %1950
        %1952 = vrot.lane.b32.xlu0 %v1813, 56
        %v1953 = vpop.permute.xlu0 %1952
        %1954 = vrot.lane.b32.xlu0 %v1827, 56
        %v1955 = vpop.permute.xlu0 %1954
        %1956 = vrot.lane.b32.xlu0 %v1837, 56
        %v1957 = vpop.permute.xlu0 %1956
        %1958 = vrot.lane.b32.xlu0 %v1851, 56
        %v1959 = vpop.permute.xlu0 %1958
        %1960 = vrot.lane.b32.xlu0 %v1861, 56
        %v1961 = vpop.permute.xlu0 %1960
        %1962 = vrot.lane.b32.xlu0 %v1875, 56
        %v1963 = vpop.permute.xlu0 %1962
        %1964 = vrot.lane.b32.xlu0 %v1885, 56
        %v1965 = vpop.permute.xlu0 %1964
        %1966 = vrot.lane.b32.xlu0 %v1899, 56
        %v1967 = vpop.permute.xlu0 %1966
        %1968 = vrot.lane.b32.xlu0 %v1909, 56
        %v1969 = vpop.permute.xlu0 %1968
        %1970 = vrot.lane.b32.xlu0 %v1923, 56
        %v1971 = vpop.permute.xlu0 %1970
        %1972 = vrot.lane.b32.xlu0 %v1933, 56
        %v1973 = vpop.permute.xlu0 %1972
        %vm1994 = vcmask 519616
        %1995 = vst.msk [vmem:[#allocation3] sm:$0xf] %vm1994, %v1935
        %1996 = vst.msk [vmem:[#allocation3 + $0x4] sm:$0xf] %vm1994, %v1937
        %1997 = vst.msk [vmem:[#allocation3 + $0x8] sm:$0xf] %vm1994, %v1939
        %1998 = vst.msk [vmem:[#allocation3 + $0xc] sm:$0xf] %vm1994, %v1941
        %1999 = vst.msk [vmem:[#allocation3 + $0x10] sm:$0xf] %vm1994, %v1943
        %2000 = vst.msk [vmem:[#allocation3 + $0x14] sm:$0xf] %vm1994, %v1945
        %2001 = vst.msk [vmem:[#allocation3 + $0x18] sm:$0xf] %vm1994, %v1947
        %2002 = vst.msk [vmem:[#allocation3 + $0x1c] sm:$0xf] %vm1994, %v1949
        %2003 = vst.msk [vmem:[#allocation3 + $0x20] sm:$0xf] %vm1994, %v1951
        %2004 = vst.msk [vmem:[#allocation3 + $0x24] sm:$0xf] %vm1994, %v1953
        %2005 = vst.msk [vmem:[#allocation3 + $0x28] sm:$0xf] %vm1994, %v1955
        %2006 = vst.msk [vmem:[#allocation3 + $0x2c] sm:$0xf] %vm1994, %v1957
        %2007 = vst.msk [vmem:[#allocation3 + $0x30] sm:$0xf] %vm1994, %v1959
        %2008 = vst.msk [vmem:[#allocation3 + $0x34] sm:$0xf] %vm1994, %v1961
        %2009 = vst.msk [vmem:[#allocation3 + $0x38] sm:$0xf] %vm1994, %v1963
        %2010 = vst.msk [vmem:[#allocation3 + $0x3c] sm:$0xf] %vm1994, %v1965
        %2011 = vst.msk [vmem:[#allocation3 + $0x40] sm:$0xf] %vm1994, %v1967
        %2012 = vst.msk [vmem:[#allocation3 + $0x44] sm:$0xf] %vm1994, %v1969
        %2013 = vst.msk [vmem:[#allocation3 + $0x48] sm:$0xf] %vm1994, %v1971
        %2014 = vst.msk [vmem:[#allocation3 + $0x4c] sm:$0xf] %vm1994, %v1973
        %v2015 = vld [vmem:[%s1542] sm:$0xe]
        %v2016 = vld [vmem:[%s1542 + $0x4] sm:$0xf]
        %v2017 = vld [vmem:[%s1542 + $0x8] sm:$0x1]
        %v2018 = vld [vmem:[%s1542 + $0xc] sm:$0xe]
        %v2019 = vld [vmem:[%s1542 + $0x10] sm:$0xf]
        %v2020 = vld [vmem:[%s1542 + $0x14] sm:$0x1]
        %v2021 = vld [vmem:[%s1542 + $0x18] sm:$0xe]
        %v2022 = vld [vmem:[%s1542 + $0x1c] sm:$0xf]
        %v2023 = vld [vmem:[%s1542 + $0x20] sm:$0x1]
        %v2024 = vld [vmem:[%s1542 + $0x24] sm:$0xe]
        %v2025 = vld [vmem:[%s1542 + $0x28] sm:$0xf]
        %v2026 = vld [vmem:[%s1542 + $0x2c] sm:$0x1]
        %v2027 = vld [vmem:[%s1542 + $0x30] sm:$0xe]
        %v2028 = vld [vmem:[%s1542 + $0x34] sm:$0xf]
        %v2029 = vld [vmem:[%s1542 + $0x38] sm:$0x1]
        %v2030 = vld [vmem:[%s1542 + $0x3c] sm:$0xe]
        %v2031 = vld [vmem:[%s1542 + $0x40] sm:$0xf]
        %v2032 = vld [vmem:[%s1542 + $0x44] sm:$0x1]
        %v2033 = vld [vmem:[%s1542 + $0x48] sm:$0xe]
        %v2034 = vld [vmem:[%s1542 + $0x4c] sm:$0xf]
        %v2035 = vld [vmem:[%s1542 + $0x50] sm:$0x1]
        %v2036 = vld [vmem:[%s1542 + $0x54] sm:$0xe]
        %v2037 = vld [vmem:[%s1542 + $0x58] sm:$0xf]
        %v2038 = vld [vmem:[%s1542 + $0x5c] sm:$0x1]
        %v2039 = vld [vmem:[%s1542 + $0x60] sm:$0xe]
        %v2040 = vld [vmem:[%s1542 + $0x64] sm:$0xf]
        %v2041 = vld [vmem:[%s1542 + $0x68] sm:$0x1]
        %v2042 = vld [vmem:[%s1542 + $0x6c] sm:$0xe]
        %v2043 = vld [vmem:[%s1542 + $0x70] sm:$0xf]
        %v2044 = vld [vmem:[%s1542 + $0x74] sm:$0x1]
        %v2075 = vrot.slane %v2015, 5
        %v2076 = vrot.slane %v2075, 4
        %v2077 = vrot.slane %v2016, 5
        %v2078 = vsel %vm700, %v2076, %v2077
        %v2079 = vrot.slane %v2077, 4
        %v2080 = vrot.slane %v2017, 5
        %v2081 = vsel %vm700, %v2079, %v2080
        %v2082 = vrot.slane %v2018, 5
        %v2083 = vrot.slane %v2082, 4
        %v2084 = vrot.slane %v2019, 5
        %v2085 = vsel %vm700, %v2083, %v2084
        %v2086 = vrot.slane %v2084, 4
        %v2087 = vrot.slane %v2020, 5
        %v2088 = vsel %vm700, %v2086, %v2087
        %v2089 = vrot.slane %v2021, 5
        %v2090 = vrot.slane %v2089, 4
        %v2091 = vrot.slane %v2022, 5
        %v2092 = vsel %vm700, %v2090, %v2091
        %v2093 = vrot.slane %v2091, 4
        %v2094 = vrot.slane %v2023, 5
        %v2095 = vsel %vm700, %v2093, %v2094
        %v2096 = vrot.slane %v2024, 5
        %v2097 = vrot.slane %v2096, 4
        %v2098 = vrot.slane %v2025, 5
        %v2099 = vsel %vm700, %v2097, %v2098
        %v2100 = vrot.slane %v2098, 4
        %v2101 = vrot.slane %v2026, 5
        %v2102 = vsel %vm700, %v2100, %v2101
        %v2103 = vrot.slane %v2027, 5
        %v2104 = vrot.slane %v2103, 4
        %v2105 = vrot.slane %v2028, 5
        %v2106 = vsel %vm700, %v2104, %v2105
        %v2107 = vrot.slane %v2105, 4
        %v2108 = vrot.slane %v2029, 5
        %v2109 = vsel %vm700, %v2107, %v2108
        %v2110 = vrot.slane %v2030, 5
        %v2111 = vrot.slane %v2110, 4
        %v2112 = vrot.slane %v2031, 5
        %v2113 = vsel %vm700, %v2111, %v2112
        %v2114 = vrot.slane %v2112, 4
        %v2115 = vrot.slane %v2032, 5
        %v2116 = vsel %vm700, %v2114, %v2115
        %v2117 = vrot.slane %v2033, 5
        %v2118 = vrot.slane %v2117, 4
        %v2119 = vrot.slane %v2034, 5
        %v2120 = vsel %vm700, %v2118, %v2119
        %v2121 = vrot.slane %v2119, 4
        %v2122 = vrot.slane %v2035, 5
        %v2123 = vsel %vm700, %v2121, %v2122
        %v2124 = vrot.slane %v2036, 5
        %v2125 = vrot.slane %v2124, 4
        %v2126 = vrot.slane %v2037, 5
        %v2127 = vsel %vm700, %v2125, %v2126
        %v2128 = vrot.slane %v2126, 4
        %v2129 = vrot.slane %v2038, 5
        %v2130 = vsel %vm700, %v2128, %v2129
        %v2131 = vrot.slane %v2039, 5
        %v2132 = vrot.slane %v2131, 4
        %v2133 = vrot.slane %v2040, 5
        %v2134 = vsel %vm700, %v2132, %v2133
        %v2135 = vrot.slane %v2133, 4
        %v2136 = vrot.slane %v2041, 5
        %v2137 = vsel %vm700, %v2135, %v2136
        %v2138 = vrot.slane %v2042, 5
        %v2139 = vrot.slane %v2138, 4
        %v2140 = vrot.slane %v2043, 5
        %v2141 = vsel %vm700, %v2139, %v2140
        %v2142 = vrot.slane %v2140, 4
        %v2143 = vrot.slane %v2044, 5
        %v2144 = vsel %vm700, %v2142, %v2143
        %2145 = vrot.lane.b32.xlu0 %v2078, 64
        %v2146 = vpop.permute.xlu0 %2145
        %2147 = vrot.lane.b32.xlu0 %v2081, 64
        %v2148 = vpop.permute.xlu0 %2147
        %2149 = vrot.lane.b32.xlu0 %v2085, 64
        %v2150 = vpop.permute.xlu0 %2149
        %2151 = vrot.lane.b32.xlu0 %v2088, 64
        %v2152 = vpop.permute.xlu0 %2151
        %2153 = vrot.lane.b32.xlu0 %v2092, 64
        %v2154 = vpop.permute.xlu0 %2153
        %2155 = vrot.lane.b32.xlu0 %v2095, 64
        %v2156 = vpop.permute.xlu0 %2155
        %2157 = vrot.lane.b32.xlu0 %v2099, 64
        %v2158 = vpop.permute.xlu0 %2157
        %2159 = vrot.lane.b32.xlu0 %v2102, 64
        %v2160 = vpop.permute.xlu0 %2159
        %2161 = vrot.lane.b32.xlu0 %v2106, 64
        %v2162 = vpop.permute.xlu0 %2161
        %2163 = vrot.lane.b32.xlu0 %v2109, 64
        %v2164 = vpop.permute.xlu0 %2163
        %2165 = vrot.lane.b32.xlu0 %v2113, 64
        %v2166 = vpop.permute.xlu0 %2165
        %2167 = vrot.lane.b32.xlu0 %v2116, 64
        %v2168 = vpop.permute.xlu0 %2167
        %2169 = vrot.lane.b32.xlu0 %v2120, 64
        %v2170 = vpop.permute.xlu0 %2169
        %2171 = vrot.lane.b32.xlu0 %v2123, 64
        %v2172 = vpop.permute.xlu0 %2171
        %2173 = vrot.lane.b32.xlu0 %v2127, 64
        %v2174 = vpop.permute.xlu0 %2173
        %2175 = vrot.lane.b32.xlu0 %v2130, 64
        %v2176 = vpop.permute.xlu0 %2175
        %2177 = vrot.lane.b32.xlu0 %v2134, 64
        %v2178 = vpop.permute.xlu0 %2177
        %2179 = vrot.lane.b32.xlu0 %v2137, 64
        %v2180 = vpop.permute.xlu0 %2179
        %2181 = vrot.lane.b32.xlu0 %v2141, 64
        %v2182 = vpop.permute.xlu0 %2181
        %2183 = vrot.lane.b32.xlu0 %v2144, 64
        %v2184 = vpop.permute.xlu0 %2183
        %vm2205 = vcmask 585216
        %2206 = vst.msk [vmem:[#allocation3] sm:$0xf] %vm2205, %v2146
        %2207 = vst.msk [vmem:[#allocation3 + $0x4] sm:$0xf] %vm2205, %v2148
        %2208 = vst.msk [vmem:[#allocation3 + $0x8] sm:$0xf] %vm2205, %v2150
        %2209 = vst.msk [vmem:[#allocation3 + $0xc] sm:$0xf] %vm2205, %v2152
        %2210 = vst.msk [vmem:[#allocation3 + $0x10] sm:$0xf] %vm2205, %v2154
        %2211 = vst.msk [vmem:[#allocation3 + $0x14] sm:$0xf] %vm2205, %v2156
        %2212 = vst.msk [vmem:[#allocation3 + $0x18] sm:$0xf] %vm2205, %v2158
        %2213 = vst.msk [vmem:[#allocation3 + $0x1c] sm:$0xf] %vm2205, %v2160
        %2214 = vst.msk [vmem:[#allocation3 + $0x20] sm:$0xf] %vm2205, %v2162
        %2215 = vst.msk [vmem:[#allocation3 + $0x24] sm:$0xf] %vm2205, %v2164
        %2216 = vst.msk [vmem:[#allocation3 + $0x28] sm:$0xf] %vm2205, %v2166
        %2217 = vst.msk [vmem:[#allocation3 + $0x2c] sm:$0xf] %vm2205, %v2168
        %2218 = vst.msk [vmem:[#allocation3 + $0x30] sm:$0xf] %vm2205, %v2170
        %2219 = vst.msk [vmem:[#allocation3 + $0x34] sm:$0xf] %vm2205, %v2172
        %2220 = vst.msk [vmem:[#allocation3 + $0x38] sm:$0xf] %vm2205, %v2174
        %2221 = vst.msk [vmem:[#allocation3 + $0x3c] sm:$0xf] %vm2205, %v2176
        %2222 = vst.msk [vmem:[#allocation3 + $0x40] sm:$0xf] %vm2205, %v2178
        %2223 = vst.msk [vmem:[#allocation3 + $0x44] sm:$0xf] %vm2205, %v2180
        %2224 = vst.msk [vmem:[#allocation3 + $0x48] sm:$0xf] %vm2205, %v2182
        %2225 = vst.msk [vmem:[#allocation3 + $0x4c] sm:$0xf] %vm2205, %v2184
        %v2226 = vld [vmem:[#allocation3] sm:$0xf]
        %v2227 = vld [vmem:[#allocation3 + $0x4] sm:$0xf]
        %v2228 = vld [vmem:[#allocation3 + $0x8] sm:$0xf]
        %v2229 = vld [vmem:[#allocation3 + $0xc] sm:$0xf]
        %v2230 = vld [vmem:[#allocation3 + $0x10] sm:$0xf]
        %v2231 = vld [vmem:[#allocation3 + $0x14] sm:$0xf]
        %v2232 = vld [vmem:[#allocation3 + $0x18] sm:$0xf]
        %v2233 = vld [vmem:[#allocation3 + $0x1c] sm:$0xf]
        %v2234 = vld [vmem:[#allocation3 + $0x20] sm:$0xf]
        %v2235 = vld [vmem:[#allocation3 + $0x24] sm:$0xf]
        %v2236 = vld [vmem:[#allocation3 + $0x28] sm:$0xf]
        %v2237 = vld [vmem:[#allocation3 + $0x2c] sm:$0xf]
        %v2238 = vld [vmem:[#allocation3 + $0x30] sm:$0xf]
        %v2239 = vld [vmem:[#allocation3 + $0x34] sm:$0xf]
        %v2240 = vld [vmem:[#allocation3 + $0x38] sm:$0xf]
        %v2241 = vld [vmem:[#allocation3 + $0x3c] sm:$0xf]
        %v2242 = vld [vmem:[#allocation3 + $0x40] sm:$0xf]
        %v2243 = vld [vmem:[#allocation3 + $0x44] sm:$0xf]
        %v2244 = vld [vmem:[#allocation3 + $0x48] sm:$0xf]
        %v2245 = vld [vmem:[#allocation3 + $0x4c] sm:$0xf]
        %v2246 = vld [vmem:[%s1] sm:$0xf]
        %v2247 = vld [vmem:[%s1 + $0x4] sm:$0xf]
        %v2248 = vld [vmem:[%s1 + $0x8] sm:$0xf]
        %v2249 = vld [vmem:[%s1 + $0xc] sm:$0xf]
        %v2250 = vld [vmem:[%s1 + $0x10] sm:$0xf]
        %v2251 = vld [vmem:[%s1 + $0x14] sm:$0xf]
        %v2252 = vld [vmem:[%s1 + $0x18] sm:$0xf]
        %v2253 = vld [vmem:[%s1 + $0x1c] sm:$0xf]
        %v2254 = vld [vmem:[%s1 + $0x20] sm:$0xf]
        %v2255 = vld [vmem:[%s2] sm:$0x1]
        %v2257 = vperm.slane %v2255, 0
        %v2279 = vunpack.c.l.b16 %v2226
        %v2280 = vunpack.c.l.b16 %v2227
        %v2281 = vunpack.c.l.b16 %v2228
        %v2282 = vunpack.c.l.b16 %v2229
        %v2283 = vunpack.c.l.b16 %v2230
        %v2284 = vunpack.c.l.b16 %v2231
        %v2285 = vunpack.c.l.b16 %v2232
        %v2286 = vunpack.c.l.b16 %v2233
        %v2287 = vunpack.c.l.b16 %v2234
        %v2288 = vunpack.c.l.b16 %v2235
        %v2289 = vunpack.c.l.b16 %v2236
        %v2290 = vunpack.c.l.b16 %v2237
        %v2291 = vunpack.c.l.b16 %v2238
        %v2292 = vunpack.c.l.b16 %v2239
        %v2293 = vunpack.c.l.b16 %v2240
        %v2294 = vunpack.c.l.b16 %v2241
        %v2295 = vunpack.c.l.b16 %v2242
        %v2296 = vunpack.c.l.b16 %v2243
        %v2297 = vunpack.c.l.b16 %v2244
        %v2298 = vunpack.c.l.b16 %v2245
        %v2299 = vpack.c.b16 %v2280, %v2279
        %v2300 = vpack.c.b16 %v2282, %v2281
        %v2301 = vpack.c.b16 %v2284, %v2283
        %v2302 = vpack.c.b16 %v2286, %v2285
        %v2303 = vpack.c.b16 %v2288, %v2287
        %v2304 = vpack.c.b16 %v2290, %v2289
        %v2305 = vpack.c.b16 %v2292, %v2291
        %v2306 = vpack.c.b16 %v2294, %v2293
        %v2307 = vpack.c.b16 %v2296, %v2295
        %v2308 = vpack.c.b16 %v2298, %v2297
        %v2318 = vunpack.c.l.b16 %v2246
        %v2319 = vunpack.c.l.b16 %v2247
        %v2320 = vunpack.c.l.b16 %v2248
        %v2321 = vunpack.c.l.b16 %v2249
        %v2322 = vunpack.c.l.b16 %v2250
        %v2323 = vunpack.c.l.b16 %v2251
        %v2324 = vunpack.c.l.b16 %v2252
        %v2325 = vunpack.c.l.b16 %v2253
        %v2326 = vunpack.c.l.b16 %v2254
        %v2327 = vpack.c.b16 %v2319, %v2318
        %v2328 = vpack.c.b16 %v2321, %v2320
        %v2329 = vpack.c.b16 %v2323, %v2322
        %v2330 = vpack.c.b16 %v2325, %v2324
        %v2331 = vpack.c.b16 %v2326, %v2326
        %vm2336 = vcmask 588800
        %v2338 = vsel %vm2336, %v2299, 0
        %v2341 = vsel %vm2336, %v2300, 0
        %v2344 = vsel %vm2336, %v2301, 0
        %v2347 = vsel %vm2336, %v2302, 0
        %v2350 = vsel %vm2336, %v2303, 0
        %v2353 = vsel %vm2336, %v2304, 0
        %v2356 = vsel %vm2336, %v2305, 0
        %v2359 = vsel %vm2336, %v2306, 0
        %v2362 = vsel %vm2336, %v2307, 0
        %v2365 = vsel %vm2336, %v2308, 0
        %vm2367 = vcmask 1043456
        %v2369 = vsel %vm2367, %v2331, 0
        %2371 = vmatpush.bf16.msra.mxu0 0
        %2372 = vmatpush.bf16.msra.mxu0 0
        %2373 = vmatpush.bf16.msra.mxu0 0
        %2374 = vmatpush.bf16.msra.mxu0 %v2369
        %2375 = vmatpush.bf16.msra.mxu0 %v2330
        %2376 = vmatpush.bf16.msra.mxu0 %v2329
        %2377 = vmatpush.bf16.msra.mxu0 %v2328
        %2378 = vmatpush.bf16.msra.mxu0 %v2327
        %2379 = vmatmul.bf16.gmra.mxu0 %v2338
        %v2380 = vpop.f32.mrf.mxu0
        %v2381 = vadd.f32 %v2257, %v2380
        %v2382 = vpop.f32.mrf.mxu0
        %v2383 = vadd.f32 %v2257, %v2382
        %2384 = vmatmul.bf16.gmra.mxu0 %v2341
        %v2385 = vpop.f32.mrf.mxu0
        %v2386 = vadd.f32 %v2257, %v2385
        %v2387 = vpop.f32.mrf.mxu0
        %v2388 = vadd.f32 %v2257, %v2387
        %2389 = vmatmul.bf16.gmra.mxu0 %v2344
        %v2390 = vpop.f32.mrf.mxu0
        %v2391 = vadd.f32 %v2257, %v2390
        %v2392 = vpop.f32.mrf.mxu0
        %v2393 = vadd.f32 %v2257, %v2392
        %2394 = vmatmul.bf16.gmra.mxu0 %v2347
        %v2395 = vpop.f32.mrf.mxu0
        %v2396 = vadd.f32 %v2257, %v2395
        %v2397 = vpop.f32.mrf.mxu0
        %v2398 = vadd.f32 %v2257, %v2397
        %2399 = vmatmul.bf16.gmra.mxu0 %v2350
        %v2400 = vpop.f32.mrf.mxu0
        %v2401 = vadd.f32 %v2257, %v2400
        %v2402 = vpop.f32.mrf.mxu0
        %v2403 = vadd.f32 %v2257, %v2402
        %2404 = vmatmul.bf16.gmra.mxu0 %v2353
        %v2405 = vpop.f32.mrf.mxu0
        %v2406 = vadd.f32 %v2257, %v2405
        %v2407 = vpop.f32.mrf.mxu0
        %v2408 = vadd.f32 %v2257, %v2407
        %2409 = vmatmul.bf16.gmra.mxu0 %v2356
        %v2410 = vpop.f32.mrf.mxu0
        %v2411 = vadd.f32 %v2257, %v2410
        %v2412 = vpop.f32.mrf.mxu0
        %v2413 = vadd.f32 %v2257, %v2412
        %2414 = vmatmul.bf16.gmra.mxu0 %v2359
        %v2415 = vpop.f32.mrf.mxu0
        %v2416 = vadd.f32 %v2257, %v2415
        %v2417 = vpop.f32.mrf.mxu0
        %v2418 = vadd.f32 %v2257, %v2417
        %2419 = vmatmul.bf16.gmra.mxu0 %v2362
        %v2420 = vpop.f32.mrf.mxu0
        %v2421 = vadd.f32 %v2257, %v2420
        %v2422 = vpop.f32.mrf.mxu0
        %v2423 = vadd.f32 %v2257, %v2422
        %2424 = vmatmul.bf16.gmra.mxu0 %v2365
        %v2425 = vpop.f32.mrf.mxu0
        %v2426 = vadd.f32 %v2257, %v2425
        %v2427 = vpop.f32.mrf.mxu0
        %v2428 = vadd.f32 %v2257, %v2427
        %2429 = vdwg.mxu0
        %v2430 = vmax.f32 %v2381, 0.0
        %v2431 = vmax.f32 %v2383, 0.0
        %v2432 = vmax.f32 %v2386, 0.0
        %v2433 = vmax.f32 %v2388, 0.0
        %v2434 = vmax.f32 %v2391, 0.0
        %v2435 = vmax.f32 %v2393, 0.0
        %v2436 = vmax.f32 %v2396, 0.0
        %v2437 = vmax.f32 %v2398, 0.0
        %v2438 = vmax.f32 %v2401, 0.0
        %v2439 = vmax.f32 %v2403, 0.0
        %v2440 = vmax.f32 %v2406, 0.0
        %v2441 = vmax.f32 %v2408, 0.0
        %v2442 = vmax.f32 %v2411, 0.0
        %v2443 = vmax.f32 %v2413, 0.0
        %v2444 = vmax.f32 %v2416, 0.0
        %v2445 = vmax.f32 %v2418, 0.0
        %v2446 = vmax.f32 %v2421, 0.0
        %v2447 = vmax.f32 %v2423, 0.0
        %v2448 = vmax.f32 %v2426, 0.0
        %v2449 = vmax.f32 %v2428, 0.0
        %s2450 = ssub.s32 %s239, 1
        %v2451 = vstv %s2450
        %v2452 = vadd.s32 %v2451, 1
        %v2453 = vadd.s32 %v2451, 2
        %v2454 = vadd.s32 %v2451, 3
        %v2455 = vadd.s32 %v2451, 4
        %v2456 = vadd.s32 %v2451, 5
        %v2457 = vadd.s32 %v2451, 6
        %v2458 = vadd.s32 %v2451, 7
        %v2459 = vadd.s32 %v2451, 8
        %v2460 = vadd.s32 %v2451, 9
        %vm2461 = vcmp.ge.s32.totalorder %v2451, 0
        %vm2462 = vcmp.ge.s32.totalorder %v2452, 0
        %vm2463 = vcmp.ge.s32.totalorder %v2453, 0
        %vm2464 = vcmp.ge.s32.totalorder %v2454, 0
        %vm2465 = vcmp.ge.s32.totalorder %v2455, 0
        %vm2466 = vcmp.ge.s32.totalorder %v2456, 0
        %vm2467 = vcmp.ge.s32.totalorder %v2457, 0
        %vm2468 = vcmp.ge.s32.totalorder %v2458, 0
        %vm2469 = vcmp.ge.s32.totalorder %v2459, 0
        %vm2470 = vcmp.ge.s32.totalorder %v2460, 0
        %vm2471 = vcmp.lt.s32.totalorder %v2451, 16
        %vm2472 = vcmp.lt.s32.totalorder %v2452, 16
        %vm2473 = vcmp.lt.s32.totalorder %v2453, 16
        %vm2474 = vcmp.lt.s32.totalorder %v2454, 16
        %vm2475 = vcmp.lt.s32.totalorder %v2455, 16
        %vm2476 = vcmp.lt.s32.totalorder %v2456, 16
        %vm2477 = vcmp.lt.s32.totalorder %v2457, 16
        %vm2478 = vcmp.lt.s32.totalorder %v2458, 16
        %vm2479 = vcmp.lt.s32.totalorder %v2459, 16
        %vm2480 = vcmp.lt.s32.totalorder %v2460, 16
        %vm2481 = vmand %vm2461, %vm2471
        %vm2482 = vmand %vm2462, %vm2472
        %vm2483 = vmand %vm2463, %vm2473
        %vm2484 = vmand %vm2464, %vm2474
        %vm2485 = vmand %vm2465, %vm2475
        %vm2486 = vmand %vm2466, %vm2476
        %vm2487 = vmand %vm2467, %vm2477
        %vm2488 = vmand %vm2468, %vm2478
        %vm2489 = vmand %vm2469, %vm2479
        %vm2490 = vmand %vm2470, %vm2480
        %v2491 = vsel %vm2481, 1, 0
        %v2492 = vsel %vm2482, 1, 0
        %v2493 = vsel %vm2483, 1, 0
        %v2494 = vsel %vm2484, 1, 0
        %v2495 = vsel %vm2485, 1, 0
        %v2496 = vsel %vm2486, 1, 0
        %v2497 = vsel %vm2487, 1, 0
        %v2498 = vsel %vm2488, 1, 0
        %v2499 = vsel %vm2489, 1, 0
        %v2500 = vsel %vm2490, 1, 0
        %vm2501 = vcmp.eq.s32.totalorder %v2491, 1
        %vm2502 = vcmp.eq.s32.totalorder %v2492, 1
        %vm2503 = vcmp.eq.s32.totalorder %v2493, 1
        %vm2504 = vcmp.eq.s32.totalorder %v2494, 1
        %vm2505 = vcmp.eq.s32.totalorder %v2495, 1
        %vm2506 = vcmp.eq.s32.totalorder %v2496, 1
        %vm2507 = vcmp.eq.s32.totalorder %v2497, 1
        %vm2508 = vcmp.eq.s32.totalorder %v2498, 1
        %vm2509 = vcmp.eq.s32.totalorder %v2499, 1
        %vm2510 = vcmp.eq.s32.totalorder %v2500, 1
        %v2511 = vsel %vm2501, %v2430, 0.0
        %v2512 = vsel %vm2501, %v2431, 0.0
        %v2513 = vsel %vm2502, %v2432, 0.0
        %v2514 = vsel %vm2502, %v2433, 0.0
        %v2515 = vsel %vm2503, %v2434, 0.0
        %v2516 = vsel %vm2503, %v2435, 0.0
        %v2517 = vsel %vm2504, %v2436, 0.0
        %v2518 = vsel %vm2504, %v2437, 0.0
        %v2519 = vsel %vm2505, %v2438, 0.0
        %v2520 = vsel %vm2505, %v2439, 0.0
        %v2521 = vsel %vm2506, %v2440, 0.0
        %v2522 = vsel %vm2506, %v2441, 0.0
        %v2523 = vsel %vm2507, %v2442, 0.0
        %v2524 = vsel %vm2507, %v2443, 0.0
        %v2525 = vsel %vm2508, %v2444, 0.0
        %v2526 = vsel %vm2508, %v2445, 0.0
        %v2527 = vsel %vm2509, %v2446, 0.0
        %v2528 = vsel %vm2509, %v2447, 0.0
        %v2529 = vsel %vm2510, %v2448, 0.0
        %v2530 = vsel %vm2510, %v2449, 0.0
        %v2531 = vpack.c.bf16 %v2511, %v2511
        %v2532 = vpack.c.bf16 %v2512, %v2512
        %v2533 = vpack.c.bf16 %v2513, %v2513
        %v2534 = vpack.c.bf16 %v2514, %v2514
        %v2535 = vpack.c.bf16 %v2515, %v2515
        %v2536 = vpack.c.bf16 %v2516, %v2516
        %v2537 = vpack.c.bf16 %v2517, %v2517
        %v2538 = vpack.c.bf16 %v2518, %v2518
        %v2539 = vpack.c.bf16 %v2519, %v2519
        %v2540 = vpack.c.bf16 %v2520, %v2520
        %v2541 = vpack.c.bf16 %v2521, %v2521
        %v2542 = vpack.c.bf16 %v2522, %v2522
        %v2543 = vpack.c.bf16 %v2523, %v2523
        %v2544 = vpack.c.bf16 %v2524, %v2524
        %v2545 = vpack.c.bf16 %v2525, %v2525
        %v2546 = vpack.c.bf16 %v2526, %v2526
        %v2547 = vpack.c.bf16 %v2527, %v2527
        %v2548 = vpack.c.bf16 %v2528, %v2528
        %v2549 = vpack.c.bf16 %v2529, %v2529
        %v2550 = vpack.c.bf16 %v2530, %v2530
        %vm2551 = vsmask.f32 256
        %vm2552 = vsmask.f32 4368
        %vm2553 = vmor %vm2551, %vm2552
        %v2555 = vshrl.u32 %v2531, 16
        %v2557 = vrot.slane %v2555, 7
        %v2558 = vshll.u32 %v2531, 16
        %v2560 = vor.u32 %v2557, %v2558
        %v2561 = vrot.slane %v2557, 4
        %v2563 = vshrl.u32 %v2532, 16
        %v2565 = vrot.slane %v2563, 7
        %v2566 = vshll.u32 %v2532, 16
        %v2568 = vor.u32 %v2565, %v2566
        %v2569 = vsel %vm2553, %v2561, %v2568
        %v2570 = vrot.slane %v2565, 4
        %v2572 = vshrl.u32 %v2533, 16
        %v2574 = vrot.slane %v2572, 7
        %v2575 = vshll.u32 %v2533, 16
        %v2577 = vor.u32 %v2574, %v2575
        %v2578 = vrot.slane %v2574, 4
        %v2580 = vshrl.u32 %v2534, 16
        %v2582 = vrot.slane %v2580, 7
        %v2583 = vshll.u32 %v2534, 16
        %v2585 = vor.u32 %v2582, %v2583
        %v2586 = vsel %vm2553, %v2578, %v2585
        %v2587 = vrot.slane %v2582, 4
        %v2589 = vshrl.u32 %v2535, 16
        %v2591 = vrot.slane %v2589, 7
        %v2592 = vshll.u32 %v2535, 16
        %v2594 = vor.u32 %v2591, %v2592
        %v2595 = vrot.slane %v2591, 4
        %v2597 = vshrl.u32 %v2536, 16
        %v2599 = vrot.slane %v2597, 7
        %v2600 = vshll.u32 %v2536, 16
        %v2602 = vor.u32 %v2599, %v2600
        %v2603 = vsel %vm2553, %v2595, %v2602
        %v2604 = vrot.slane %v2599, 4
        %v2606 = vshrl.u32 %v2537, 16
        %v2608 = vrot.slane %v2606, 7
        %v2609 = vshll.u32 %v2537, 16
        %v2611 = vor.u32 %v2608, %v2609
        %v2612 = vrot.slane %v2608, 4
        %v2614 = vshrl.u32 %v2538, 16
        %v2616 = vrot.slane %v2614, 7
        %v2617 = vshll.u32 %v2538, 16
        %v2619 = vor.u32 %v2616, %v2617
        %v2620 = vsel %vm2553, %v2612, %v2619
        %v2621 = vrot.slane %v2616, 4
        %v2623 = vshrl.u32 %v2539, 16
        %v2625 = vrot.slane %v2623, 7
        %v2626 = vshll.u32 %v2539, 16
        %v2628 = vor.u32 %v2625, %v2626
        %v2629 = vrot.slane %v2625, 4
        %v2631 = vshrl.u32 %v2540, 16
        %v2633 = vrot.slane %v2631, 7
        %v2634 = vshll.u32 %v2540, 16
        %v2636 = vor.u32 %v2633, %v2634
        %v2637 = vsel %vm2553, %v2629, %v2636
        %v2638 = vrot.slane %v2633, 4
        %v2640 = vshrl.u32 %v2541, 16
        %v2642 = vrot.slane %v2640, 7
        %v2643 = vshll.u32 %v2541, 16
        %v2645 = vor.u32 %v2642, %v2643
        %v2646 = vrot.slane %v2642, 4
        %v2648 = vshrl.u32 %v2542, 16
        %v2650 = vrot.slane %v2648, 7
        %v2651 = vshll.u32 %v2542, 16
        %v2653 = vor.u32 %v2650, %v2651
        %v2654 = vsel %vm2553, %v2646, %v2653
        %v2655 = vrot.slane %v2650, 4
        %v2657 = vshrl.u32 %v2543, 16
        %v2659 = vrot.slane %v2657, 7
        %v2660 = vshll.u32 %v2543, 16
        %v2662 = vor.u32 %v2659, %v2660
        %v2663 = vrot.slane %v2659, 4
        %v2665 = vshrl.u32 %v2544, 16
        %v2667 = vrot.slane %v2665, 7
        %v2668 = vshll.u32 %v2544, 16
        %v2670 = vor.u32 %v2667, %v2668
        %v2671 = vsel %vm2553, %v2663, %v2670
        %v2672 = vrot.slane %v2667, 4
        %v2674 = vshrl.u32 %v2545, 16
        %v2676 = vrot.slane %v2674, 7
        %v2677 = vshll.u32 %v2545, 16
        %v2679 = vor.u32 %v2676, %v2677
        %v2680 = vrot.slane %v2676, 4
        %v2682 = vshrl.u32 %v2546, 16
        %v2684 = vrot.slane %v2682, 7
        %v2685 = vshll.u32 %v2546, 16
        %v2687 = vor.u32 %v2684, %v2685
        %v2688 = vsel %vm2553, %v2680, %v2687
        %v2689 = vrot.slane %v2684, 4
        %v2691 = vshrl.u32 %v2547, 16
        %v2693 = vrot.slane %v2691, 7
        %v2694 = vshll.u32 %v2547, 16
        %v2696 = vor.u32 %v2693, %v2694
        %v2697 = vrot.slane %v2693, 4
        %v2699 = vshrl.u32 %v2548, 16
        %v2701 = vrot.slane %v2699, 7
        %v2702 = vshll.u32 %v2548, 16
        %v2704 = vor.u32 %v2701, %v2702
        %v2705 = vsel %vm2553, %v2697, %v2704
        %v2706 = vrot.slane %v2701, 4
        %v2708 = vshrl.u32 %v2549, 16
        %v2710 = vrot.slane %v2708, 7
        %v2711 = vshll.u32 %v2549, 16
        %v2713 = vor.u32 %v2710, %v2711
        %v2714 = vrot.slane %v2710, 4
        %v2716 = vshrl.u32 %v2550, 16
        %v2718 = vrot.slane %v2716, 7
        %v2719 = vshll.u32 %v2550, 16
        %v2721 = vor.u32 %v2718, %v2719
        %v2722 = vsel %vm2553, %v2714, %v2721
        %v2723 = vrot.slane %v2718, 4
        %vm2754 = vcmask 519168
        %vm2755 = vsmask.f32 7938
        %vm2756 = vmand %vm2754, %vm2755
        %v2757 = vld [vmem:[#allocation2] sm:$0xf]
        %v2758 = vsel %vm2756, %v2560, %v2757
        %2759 = vst [vmem:[#allocation2] sm:$0xf] %v2758
        %vm2760 = vcmask 519168
        %2761 = vst.msk [vmem:[#allocation2 + $0x4] sm:$0xf] %vm2760, %v2569
        %vm2762 = vcmask 516096
        %vm2763 = vmand %vm2762, %vm2551
        %v2764 = vld [vmem:[#allocation2 + $0x8] sm:$0x1]
        %v2765 = vsel %vm2763, %v2570, %v2764
        %2766 = vst [vmem:[#allocation2 + $0x8] sm:$0x1] %v2765
        %v2767 = vld [vmem:[#allocation2 + $0xc] sm:$0xf]
        %v2768 = vsel %vm2756, %v2577, %v2767
        %2769 = vst [vmem:[#allocation2 + $0xc] sm:$0xf] %v2768
        %2770 = vst.msk [vmem:[#allocation2 + $0x10] sm:$0xf] %vm2760, %v2586
        %v2771 = vld [vmem:[#allocation2 + $0x14] sm:$0x1]
        %v2772 = vsel %vm2763, %v2587, %v2771
        %2773 = vst [vmem:[#allocation2 + $0x14] sm:$0x1] %v2772
        %v2774 = vld [vmem:[#allocation2 + $0x18] sm:$0xf]
        %v2775 = vsel %vm2756, %v2594, %v2774
        %2776 = vst [vmem:[#allocation2 + $0x18] sm:$0xf] %v2775
        %2777 = vst.msk [vmem:[#allocation2 + $0x1c] sm:$0xf] %vm2760, %v2603
        %v2778 = vld [vmem:[#allocation2 + $0x20] sm:$0x1]
        %v2779 = vsel %vm2763, %v2604, %v2778
        %2780 = vst [vmem:[#allocation2 + $0x20] sm:$0x1] %v2779
        %v2781 = vld [vmem:[#allocation2 + $0x24] sm:$0xf]
        %v2782 = vsel %vm2756, %v2611, %v2781
        %2783 = vst [vmem:[#allocation2 + $0x24] sm:$0xf] %v2782
        %2784 = vst.msk [vmem:[#allocation2 + $0x28] sm:$0xf] %vm2760, %v2620
        %v2785 = vld [vmem:[#allocation2 + $0x2c] sm:$0x1]
        %v2786 = vsel %vm2763, %v2621, %v2785
        %2787 = vst [vmem:[#allocation2 + $0x2c] sm:$0x1] %v2786
        %v2788 = vld [vmem:[#allocation2 + $0x30] sm:$0xf]
        %v2789 = vsel %vm2756, %v2628, %v2788
        %2790 = vst [vmem:[#allocation2 + $0x30] sm:$0xf] %v2789
        %2791 = vst.msk [vmem:[#allocation2 + $0x34] sm:$0xf] %vm2760, %v2637
        %v2792 = vld [vmem:[#allocation2 + $0x38] sm:$0x1]
        %v2793 = vsel %vm2763, %v2638, %v2792
        %2794 = vst [vmem:[#allocation2 + $0x38] sm:$0x1] %v2793
        %v2795 = vld [vmem:[#allocation2 + $0x3c] sm:$0xf]
        %v2796 = vsel %vm2756, %v2645, %v2795
        %2797 = vst [vmem:[#allocation2 + $0x3c] sm:$0xf] %v2796
        %2798 = vst.msk [vmem:[#allocation2 + $0x40] sm:$0xf] %vm2760, %v2654
        %v2799 = vld [vmem:[#allocation2 + $0x44] sm:$0x1]
        %v2800 = vsel %vm2763, %v2655, %v2799
        %2801 = vst [vmem:[#allocation2 + $0x44] sm:$0x1] %v2800
        %v2802 = vld [vmem:[#allocation2 + $0x48] sm:$0xf]
        %v2803 = vsel %vm2756, %v2662, %v2802
        %2804 = vst [vmem:[#allocation2 + $0x48] sm:$0xf] %v2803
        %2805 = vst.msk [vmem:[#allocation2 + $0x4c] sm:$0xf] %vm2760, %v2671
        %v2806 = vld [vmem:[#allocation2 + $0x50] sm:$0x1]
        %v2807 = vsel %vm2763, %v2672, %v2806
        %2808 = vst [vmem:[#allocation2 + $0x50] sm:$0x1] %v2807
        %v2809 = vld [vmem:[#allocation2 + $0x54] sm:$0xf]
        %v2810 = vsel %vm2756, %v2679, %v2809
        %2811 = vst [vmem:[#allocation2 + $0x54] sm:$0xf] %v2810
        %2812 = vst.msk [vmem:[#allocation2 + $0x58] sm:$0xf] %vm2760, %v2688
        %v2813 = vld [vmem:[#allocation2 + $0x5c] sm:$0x1]
        %v2814 = vsel %vm2763, %v2689, %v2813
        %2815 = vst [vmem:[#allocation2 + $0x5c] sm:$0x1] %v2814
        %v2816 = vld [vmem:[#allocation2 + $0x60] sm:$0xf]
        %v2817 = vsel %vm2756, %v2696, %v2816
        %2818 = vst [vmem:[#allocation2 + $0x60] sm:$0xf] %v2817
        %2819 = vst.msk [vmem:[#allocation2 + $0x64] sm:$0xf] %vm2760, %v2705
        %v2820 = vld [vmem:[#allocation2 + $0x68] sm:$0x1]
        %v2821 = vsel %vm2763, %v2706, %v2820
        %2822 = vst [vmem:[#allocation2 + $0x68] sm:$0x1] %v2821
        %v2823 = vld [vmem:[#allocation2 + $0x6c] sm:$0xf]
        %v2824 = vsel %vm2756, %v2713, %v2823
        %2825 = vst [vmem:[#allocation2 + $0x6c] sm:$0xf] %v2824
        %2826 = vst.msk [vmem:[#allocation2 + $0x70] sm:$0xf] %vm2760, %v2722
        %v2827 = vld [vmem:[#allocation2 + $0x74] sm:$0x1]
        %v2828 = vsel %vm2763, %v2723, %v2827
        %2829 = vst [vmem:[#allocation2 + $0x74] sm:$0x1] %v2828
        %v2830 = vld [vmem:[#allocation2] sm:$0x1]
        %v2831 = vsel %vm2763, 0, %v2830
        %2832 = vst [vmem:[#allocation2] sm:$0x1] %v2831
        %v2833 = vld [vmem:[#allocation2 + $0xc] sm:$0x1]
        %v2834 = vsel %vm2763, 0, %v2833
        %2835 = vst [vmem:[#allocation2 + $0xc] sm:$0x1] %v2834
        %v2836 = vld [vmem:[#allocation2 + $0x18] sm:$0x1]
        %v2837 = vsel %vm2763, 0, %v2836
        %2838 = vst [vmem:[#allocation2 + $0x18] sm:$0x1] %v2837
        %v2839 = vld [vmem:[#allocation2 + $0x24] sm:$0x1]
        %v2840 = vsel %vm2763, 0, %v2839
        %2841 = vst [vmem:[#allocation2 + $0x24] sm:$0x1] %v2840
        %v2842 = vld [vmem:[#allocation2 + $0x30] sm:$0x1]
        %v2843 = vsel %vm2763, 0, %v2842
        %2844 = vst [vmem:[#allocation2 + $0x30] sm:$0x1] %v2843
        %v2845 = vld [vmem:[#allocation2 + $0x3c] sm:$0x1]
        %v2846 = vsel %vm2763, 0, %v2845
        %2847 = vst [vmem:[#allocation2 + $0x3c] sm:$0x1] %v2846
        %v2848 = vld [vmem:[#allocation2 + $0x48] sm:$0x1]
        %v2849 = vsel %vm2763, 0, %v2848
        %2850 = vst [vmem:[#allocation2 + $0x48] sm:$0x1] %v2849
        %v2851 = vld [vmem:[#allocation2 + $0x54] sm:$0x1]
        %v2852 = vsel %vm2763, 0, %v2851
        %2853 = vst [vmem:[#allocation2 + $0x54] sm:$0x1] %v2852
        %v2854 = vld [vmem:[#allocation2 + $0x60] sm:$0x1]
        %v2855 = vsel %vm2763, 0, %v2854
        %2856 = vst [vmem:[#allocation2 + $0x60] sm:$0x1] %v2855
        %v2857 = vld [vmem:[#allocation2 + $0x6c] sm:$0x1]
        %v2858 = vsel %vm2763, 0, %v2857
        %2859 = vst [vmem:[#allocation2 + $0x6c] sm:$0x1] %v2858
        %vm2860 = vmand %vm2762, %vm2755
        %v2861 = vld [vmem:[#allocation2 + $0x8] sm:$0x1]
        %v2862 = vsel %vm2860, 0, %v2861
        %2863 = vst [vmem:[#allocation2 + $0x8] sm:$0x1] %v2862
        %v2864 = vld [vmem:[#allocation2 + $0x14] sm:$0x1]
        %v2865 = vsel %vm2860, 0, %v2864
        %2866 = vst [vmem:[#allocation2 + $0x14] sm:$0x1] %v2865
        %v2867 = vld [vmem:[#allocation2 + $0x20] sm:$0x1]
        %v2868 = vsel %vm2860, 0, %v2867
        %2869 = vst [vmem:[#allocation2 + $0x20] sm:$0x1] %v2868
        %v2870 = vld [vmem:[#allocation2 + $0x2c] sm:$0x1]
        %v2871 = vsel %vm2860, 0, %v2870
        %2872 = vst [vmem:[#allocation2 + $0x2c] sm:$0x1] %v2871
        %v2873 = vld [vmem:[#allocation2 + $0x38] sm:$0x1]
        %v2874 = vsel %vm2860, 0, %v2873
        %2875 = vst [vmem:[#allocation2 + $0x38] sm:$0x1] %v2874
        %v2876 = vld [vmem:[#allocation2 + $0x44] sm:$0x1]
        %v2877 = vsel %vm2860, 0, %v2876
        %2878 = vst [vmem:[#allocation2 + $0x44] sm:$0x1] %v2877
        %v2879 = vld [vmem:[#allocation2 + $0x50] sm:$0x1]
        %v2880 = vsel %vm2860, 0, %v2879
        %2881 = vst [vmem:[#allocation2 + $0x50] sm:$0x1] %v2880
        %v2882 = vld [vmem:[#allocation2 + $0x5c] sm:$0x1]
        %v2883 = vsel %vm2860, 0, %v2882
        %2884 = vst [vmem:[#allocation2 + $0x5c] sm:$0x1] %v2883
        %v2885 = vld [vmem:[#allocation2 + $0x68] sm:$0x1]
        %v2886 = vsel %vm2860, 0, %v2885
        %2887 = vst [vmem:[#allocation2 + $0x68] sm:$0x1] %v2886
        %v2888 = vld [vmem:[#allocation2 + $0x74] sm:$0x1]
        %v2889 = vsel %vm2860, 0, %v2888
        %2890 = vst [vmem:[#allocation2 + $0x74] sm:$0x1] %v2889
        %v2891 = vld [vmem:[#allocation2] sm:$0xf]
        %v2892 = vld [vmem:[#allocation2 + $0x4] sm:$0xf]
        %v2893 = vld [vmem:[#allocation2 + $0xc] sm:$0xf]
        %v2894 = vld [vmem:[#allocation2 + $0x10] sm:$0xf]
        %v2895 = vld [vmem:[#allocation2 + $0x18] sm:$0xf]
        %v2896 = vld [vmem:[#allocation2 + $0x1c] sm:$0xf]
        %v2897 = vld [vmem:[#allocation2 + $0x24] sm:$0xf]
        %v2898 = vld [vmem:[#allocation2 + $0x28] sm:$0xf]
        %v2899 = vld [vmem:[#allocation2 + $0x30] sm:$0xf]
        %v2900 = vld [vmem:[#allocation2 + $0x34] sm:$0xf]
        %v2901 = vld [vmem:[#allocation2 + $0x3c] sm:$0xf]
        %v2902 = vld [vmem:[#allocation2 + $0x40] sm:$0xf]
        %v2903 = vld [vmem:[#allocation2 + $0x48] sm:$0xf]
        %v2904 = vld [vmem:[#allocation2 + $0x4c] sm:$0xf]
        %v2905 = vld [vmem:[#allocation2 + $0x54] sm:$0xf]
        %v2906 = vld [vmem:[#allocation2 + $0x58] sm:$0xf]
        %2907 = vst.msk [vmem:[#allocation4] sm:$0xf] %vm2760, %v2891
        %2908 = vst.msk [vmem:[#allocation4 + $0x14] sm:$0xf] %vm2760, %v2892
        %2909 = vst.msk [vmem:[#allocation4 + $0x28] sm:$0xf] %vm2760, %v2893
        %2910 = vst.msk [vmem:[#allocation4 + $0x3c] sm:$0xf] %vm2760, %v2894
        %2911 = vst.msk [vmem:[#allocation4 + $0x50] sm:$0xf] %vm2760, %v2895
        %2912 = vst.msk [vmem:[#allocation4 + $0x64] sm:$0xf] %vm2760, %v2896
        %2913 = vst.msk [vmem:[#allocation4 + $0x78] sm:$0xf] %vm2760, %v2897
        %2914 = vst.msk [vmem:[#allocation4 + $0x8c] sm:$0xf] %vm2760, %v2898
        %2915 = vst.msk [vmem:[#allocation4 + $0xa0] sm:$0xf] %vm2760, %v2899
        %2916 = vst.msk [vmem:[#allocation4 + $0xb4] sm:$0xf] %vm2760, %v2900
        %2917 = vst.msk [vmem:[#allocation4 + $0xc8] sm:$0xf] %vm2760, %v2901
        %2918 = vst.msk [vmem:[#allocation4 + $0xdc] sm:$0xf] %vm2760, %v2902
        %2919 = vst.msk [vmem:[#allocation4 + $0xf0] sm:$0xf] %vm2760, %v2903
        %2920 = vst.msk [vmem:[#allocation4 + $0x104] sm:$0xf] %vm2760, %v2904
        %2921 = vst.msk [vmem:[#allocation4 + $0x118] sm:$0xf] %vm2760, %v2905
        %2922 = vst.msk [vmem:[#allocation4 + $0x12c] sm:$0xf] %vm2760, %v2906
        %v2923 = vld [vmem:[#allocation2] sm:$0xf]
        %v2924 = vld [vmem:[#allocation2 + $0x4] sm:$0xf]
        %v2925 = vld [vmem:[#allocation2 + $0x8] sm:$0x1]
        %v2926 = vld [vmem:[#allocation2 + $0xc] sm:$0xf]
        %v2927 = vld [vmem:[#allocation2 + $0x10] sm:$0xf]
        %v2928 = vld [vmem:[#allocation2 + $0x14] sm:$0x1]
        %v2929 = vld [vmem:[#allocation2 + $0x18] sm:$0xf]
        %v2930 = vld [vmem:[#allocation2 + $0x1c] sm:$0xf]
        %v2931 = vld [vmem:[#allocation2 + $0x20] sm:$0x1]
        %v2932 = vld [vmem:[#allocation2 + $0x24] sm:$0xf]
        %v2933 = vld [vmem:[#allocation2 + $0x28] sm:$0xf]
        %v2934 = vld [vmem:[#allocation2 + $0x2c] sm:$0x1]
        %v2935 = vld [vmem:[#allocation2 + $0x30] sm:$0xf]
        %v2936 = vld [vmem:[#allocation2 + $0x34] sm:$0xf]
        %v2937 = vld [vmem:[#allocation2 + $0x38] sm:$0x1]
        %v2938 = vld [vmem:[#allocation2 + $0x3c] sm:$0xf]
        %v2939 = vld [vmem:[#allocation2 + $0x40] sm:$0xf]
        %v2940 = vld [vmem:[#allocation2 + $0x44] sm:$0x1]
        %v2941 = vld [vmem:[#allocation2 + $0x48] sm:$0xf]
        %v2942 = vld [vmem:[#allocation2 + $0x4c] sm:$0xf]
        %v2943 = vld [vmem:[#allocation2 + $0x50] sm:$0x1]
        %v2944 = vld [vmem:[#allocation2 + $0x54] sm:$0xf]
        %v2945 = vld [vmem:[#allocation2 + $0x58] sm:$0xf]
        %v2946 = vld [vmem:[#allocation2 + $0x5c] sm:$0x1]
        %v2948 = vshrl.u32 %v2923, 16
        %v2950 = vrot.slane %v2948, 4
        %v2951 = vshll.u32 %v2923, 16
        %v2953 = vrot.slane %v2951, 5
        %v2954 = vor.u32 %v2950, %v2953
        %v2955 = vrot.slane %v2954, 4
        %v2957 = vshll.u32 %v2924, 16
        %v2959 = vrot.slane %v2957, 5
        %v2960 = vsel %vm316, %v2955, %v2959
        %v2961 = vshrl.u32 %v2924, 16
        %v2963 = vrot.slane %v2961, 4
        %v2964 = vor.u32 %v2963, %v2959
        %v2965 = vrot.slane %v2964, 4
        %v2967 = vshll.u32 %v2925, 16
        %v2969 = vrot.slane %v2967, 5
        %v2970 = vsel %vm316, %v2965, %v2969
        %v2972 = vshrl.u32 %v2926, 16
        %v2974 = vrot.slane %v2972, 4
        %v2975 = vshll.u32 %v2926, 16
        %v2977 = vrot.slane %v2975, 5
        %v2978 = vor.u32 %v2974, %v2977
        %v2979 = vrot.slane %v2978, 4
        %v2981 = vshll.u32 %v2927, 16
        %v2983 = vrot.slane %v2981, 5
        %v2984 = vsel %vm316, %v2979, %v2983
        %v2985 = vshrl.u32 %v2927, 16
        %v2987 = vrot.slane %v2985, 4
        %v2988 = vor.u32 %v2987, %v2983
        %v2989 = vrot.slane %v2988, 4
        %v2991 = vshll.u32 %v2928, 16
        %v2993 = vrot.slane %v2991, 5
        %v2994 = vsel %vm316, %v2989, %v2993
        %v2996 = vshrl.u32 %v2929, 16
        %v2998 = vrot.slane %v2996, 4
        %v2999 = vshll.u32 %v2929, 16
        %v3001 = vrot.slane %v2999, 5
        %v3002 = vor.u32 %v2998, %v3001
        %v3003 = vrot.slane %v3002, 4
        %v3005 = vshll.u32 %v2930, 16
        %v3007 = vrot.slane %v3005, 5
        %v3008 = vsel %vm316, %v3003, %v3007
        %v3009 = vshrl.u32 %v2930, 16
        %v3011 = vrot.slane %v3009, 4
        %v3012 = vor.u32 %v3011, %v3007
        %v3013 = vrot.slane %v3012, 4
        %v3015 = vshll.u32 %v2931, 16
        %v3017 = vrot.slane %v3015, 5
        %v3018 = vsel %vm316, %v3013, %v3017
        %v3020 = vshrl.u32 %v2932, 16
        %v3022 = vrot.slane %v3020, 4
        %v3023 = vshll.u32 %v2932, 16
        %v3025 = vrot.slane %v3023, 5
        %v3026 = vor.u32 %v3022, %v3025
        %v3027 = vrot.slane %v3026, 4
        %v3029 = vshll.u32 %v2933, 16
        %v3031 = vrot.slane %v3029, 5
        %v3032 = vsel %vm316, %v3027, %v3031
        %v3033 = vshrl.u32 %v2933, 16
        %v3035 = vrot.slane %v3033, 4
        %v3036 = vor.u32 %v3035, %v3031
        %v3037 = vrot.slane %v3036, 4
        %v3039 = vshll.u32 %v2934, 16
        %v3041 = vrot.slane %v3039, 5
        %v3042 = vsel %vm316, %v3037, %v3041
        %v3044 = vshrl.u32 %v2935, 16
        %v3046 = vrot.slane %v3044, 4
        %v3047 = vshll.u32 %v2935, 16
        %v3049 = vrot.slane %v3047, 5
        %v3050 = vor.u32 %v3046, %v3049
        %v3051 = vrot.slane %v3050, 4
        %v3053 = vshll.u32 %v2936, 16
        %v3055 = vrot.slane %v3053, 5
        %v3056 = vsel %vm316, %v3051, %v3055
        %v3057 = vshrl.u32 %v2936, 16
        %v3059 = vrot.slane %v3057, 4
        %v3060 = vor.u32 %v3059, %v3055
        %v3061 = vrot.slane %v3060, 4
        %v3063 = vshll.u32 %v2937, 16
        %v3065 = vrot.slane %v3063, 5
        %v3066 = vsel %vm316, %v3061, %v3065
        %v3068 = vshrl.u32 %v2938, 16
        %v3070 = vrot.slane %v3068, 4
        %v3071 = vshll.u32 %v2938, 16
        %v3073 = vrot.slane %v3071, 5
        %v3074 = vor.u32 %v3070, %v3073
        %v3075 = vrot.slane %v3074, 4
        %v3077 = vshll.u32 %v2939, 16
        %v3079 = vrot.slane %v3077, 5
        %v3080 = vsel %vm316, %v3075, %v3079
        %v3081 = vshrl.u32 %v2939, 16
        %v3083 = vrot.slane %v3081, 4
        %v3084 = vor.u32 %v3083, %v3079
        %v3085 = vrot.slane %v3084, 4
        %v3087 = vshll.u32 %v2940, 16
        %v3089 = vrot.slane %v3087, 5
        %v3090 = vsel %vm316, %v3085, %v3089
        %v3092 = vshrl.u32 %v2941, 16
        %v3094 = vrot.slane %v3092, 4
        %v3095 = vshll.u32 %v2941, 16
        %v3097 = vrot.slane %v3095, 5
        %v3098 = vor.u32 %v3094, %v3097
        %v3099 = vrot.slane %v3098, 4
        %v3101 = vshll.u32 %v2942, 16
        %v3103 = vrot.slane %v3101, 5
        %v3104 = vsel %vm316, %v3099, %v3103
        %v3105 = vshrl.u32 %v2942, 16
        %v3107 = vrot.slane %v3105, 4
        %v3108 = vor.u32 %v3107, %v3103
        %v3109 = vrot.slane %v3108, 4
        %v3111 = vshll.u32 %v2943, 16
        %v3113 = vrot.slane %v3111, 5
        %v3114 = vsel %vm316, %v3109, %v3113
        %v3116 = vshrl.u32 %v2944, 16
        %v3118 = vrot.slane %v3116, 4
        %v3119 = vshll.u32 %v2944, 16
        %v3121 = vrot.slane %v3119, 5
        %v3122 = vor.u32 %v3118, %v3121
        %v3123 = vrot.slane %v3122, 4
        %v3125 = vshll.u32 %v2945, 16
        %v3127 = vrot.slane %v3125, 5
        %v3128 = vsel %vm316, %v3123, %v3127
        %v3129 = vshrl.u32 %v2945, 16
        %v3131 = vrot.slane %v3129, 4
        %v3132 = vor.u32 %v3131, %v3127
        %v3133 = vrot.slane %v3132, 4
        %v3135 = vshll.u32 %v2946, 16
        %v3137 = vrot.slane %v3135, 5
        %v3138 = vsel %vm316, %v3133, %v3137
        %3139 = vrot.lane.b32.xlu0 %v2960, 64
        %v3140 = vpop.permute.xlu0 %3139
        %3141 = vrot.lane.b32.xlu0 %v2970, 64
        %v3142 = vpop.permute.xlu0 %3141
        %3143 = vrot.lane.b32.xlu0 %v2984, 64
        %v3144 = vpop.permute.xlu0 %3143
        %3145 = vrot.lane.b32.xlu0 %v2994, 64
        %v3146 = vpop.permute.xlu0 %3145
        %3147 = vrot.lane.b32.xlu0 %v3008, 64
        %v3148 = vpop.permute.xlu0 %3147
        %3149 = vrot.lane.b32.xlu0 %v3018, 64
        %v3150 = vpop.permute.xlu0 %3149
        %3151 = vrot.lane.b32.xlu0 %v3032, 64
        %v3152 = vpop.permute.xlu0 %3151
        %3153 = vrot.lane.b32.xlu0 %v3042, 64
        %v3154 = vpop.permute.xlu0 %3153
        %3155 = vrot.lane.b32.xlu0 %v3056, 64
        %v3156 = vpop.permute.xlu0 %3155
        %3157 = vrot.lane.b32.xlu0 %v3066, 64
        %v3158 = vpop.permute.xlu0 %3157
        %3159 = vrot.lane.b32.xlu0 %v3080, 64
        %v3160 = vpop.permute.xlu0 %3159
        %3161 = vrot.lane.b32.xlu0 %v3090, 64
        %v3162 = vpop.permute.xlu0 %3161
        %3163 = vrot.lane.b32.xlu0 %v3104, 64
        %v3164 = vpop.permute.xlu0 %3163
        %3165 = vrot.lane.b32.xlu0 %v3114, 64
        %v3166 = vpop.permute.xlu0 %3165
        %3167 = vrot.lane.b32.xlu0 %v3128, 64
        %v3168 = vpop.permute.xlu0 %3167
        %3169 = vrot.lane.b32.xlu0 %v3138, 64
        %v3170 = vpop.permute.xlu0 %3169
        %vm3187 = vcmask 1043968
        %3188 = vst.msk [vmem:[#allocation4] sm:$0xf] %vm3187, %v3140
        %3189 = vst.msk [vmem:[#allocation4 + $0x14] sm:$0xf] %vm3187, %v3142
        %3190 = vst.msk [vmem:[#allocation4 + $0x28] sm:$0xf] %vm3187, %v3144
        %3191 = vst.msk [vmem:[#allocation4 + $0x3c] sm:$0xf] %vm3187, %v3146
        %3192 = vst.msk [vmem:[#allocation4 + $0x50] sm:$0xf] %vm3187, %v3148
        %3193 = vst.msk [vmem:[#allocation4 + $0x64] sm:$0xf] %vm3187, %v3150
        %3194 = vst.msk [vmem:[#allocation4 + $0x78] sm:$0xf] %vm3187, %v3152
        %3195 = vst.msk [vmem:[#allocation4 + $0x8c] sm:$0xf] %vm3187, %v3154
        %3196 = vst.msk [vmem:[#allocation4 + $0xa0] sm:$0xf] %vm3187, %v3156
        %3197 = vst.msk [vmem:[#allocation4 + $0xb4] sm:$0xf] %vm3187, %v3158
        %3198 = vst.msk [vmem:[#allocation4 + $0xc8] sm:$0xf] %vm3187, %v3160
        %3199 = vst.msk [vmem:[#allocation4 + $0xdc] sm:$0xf] %vm3187, %v3162
        %3200 = vst.msk [vmem:[#allocation4 + $0xf0] sm:$0xf] %vm3187, %v3164
        %3201 = vst.msk [vmem:[#allocation4 + $0x104] sm:$0xf] %vm3187, %v3166
        %3202 = vst.msk [vmem:[#allocation4 + $0x118] sm:$0xf] %vm3187, %v3168
        %3203 = vst.msk [vmem:[#allocation4 + $0x12c] sm:$0xf] %vm3187, %v3170
        %v3204 = vld [vmem:[#allocation2] sm:$0xe]
        %v3205 = vld [vmem:[#allocation2 + $0x4] sm:$0xf]
        %v3206 = vld [vmem:[#allocation2 + $0x8] sm:$0x1]
        %v3207 = vld [vmem:[#allocation2 + $0xc] sm:$0xe]
        %v3208 = vld [vmem:[#allocation2 + $0x10] sm:$0xf]
        %v3209 = vld [vmem:[#allocation2 + $0x14] sm:$0x1]
        %v3210 = vld [vmem:[#allocation2 + $0x18] sm:$0xe]
        %v3211 = vld [vmem:[#allocation2 + $0x1c] sm:$0xf]
        %v3212 = vld [vmem:[#allocation2 + $0x20] sm:$0x1]
        %v3213 = vld [vmem:[#allocation2 + $0x24] sm:$0xe]
        %v3214 = vld [vmem:[#allocation2 + $0x28] sm:$0xf]
        %v3215 = vld [vmem:[#allocation2 + $0x2c] sm:$0x1]
        %v3216 = vld [vmem:[#allocation2 + $0x30] sm:$0xe]
        %v3217 = vld [vmem:[#allocation2 + $0x34] sm:$0xf]
        %v3218 = vld [vmem:[#allocation2 + $0x38] sm:$0x1]
        %v3219 = vld [vmem:[#allocation2 + $0x3c] sm:$0xe]
        %v3220 = vld [vmem:[#allocation2 + $0x40] sm:$0xf]
        %v3221 = vld [vmem:[#allocation2 + $0x44] sm:$0x1]
        %v3222 = vld [vmem:[#allocation2 + $0x48] sm:$0xe]
        %v3223 = vld [vmem:[#allocation2 + $0x4c] sm:$0xf]
        %v3224 = vld [vmem:[#allocation2 + $0x50] sm:$0x1]
        %v3225 = vld [vmem:[#allocation2 + $0x54] sm:$0xe]
        %v3226 = vld [vmem:[#allocation2 + $0x58] sm:$0xf]
        %v3227 = vld [vmem:[#allocation2 + $0x5c] sm:$0x1]
        %v3252 = vrot.slane %v3204, 5
        %v3253 = vrot.slane %v3252, 4
        %v3254 = vrot.slane %v3205, 5
        %v3255 = vsel %vm700, %v3253, %v3254
        %v3256 = vrot.slane %v3254, 4
        %v3257 = vrot.slane %v3206, 5
        %v3258 = vsel %vm700, %v3256, %v3257
        %v3259 = vrot.slane %v3207, 5
        %v3260 = vrot.slane %v3259, 4
        %v3261 = vrot.slane %v3208, 5
        %v3262 = vsel %vm700, %v3260, %v3261
        %v3263 = vrot.slane %v3261, 4
        %v3264 = vrot.slane %v3209, 5
        %v3265 = vsel %vm700, %v3263, %v3264
        %v3266 = vrot.slane %v3210, 5
        %v3267 = vrot.slane %v3266, 4
        %v3268 = vrot.slane %v3211, 5
        %v3269 = vsel %vm700, %v3267, %v3268
        %v3270 = vrot.slane %v3268, 4
        %v3271 = vrot.slane %v3212, 5
        %v3272 = vsel %vm700, %v3270, %v3271
        %v3273 = vrot.slane %v3213, 5
        %v3274 = vrot.slane %v3273, 4
        %v3275 = vrot.slane %v3214, 5
        %v3276 = vsel %vm700, %v3274, %v3275
        %v3277 = vrot.slane %v3275, 4
        %v3278 = vrot.slane %v3215, 5
        %v3279 = vsel %vm700, %v3277, %v3278
        %v3280 = vrot.slane %v3216, 5
        %v3281 = vrot.slane %v3280, 4
        %v3282 = vrot.slane %v3217, 5
        %v3283 = vsel %vm700, %v3281, %v3282
        %v3284 = vrot.slane %v3282, 4
        %v3285 = vrot.slane %v3218, 5
        %v3286 = vsel %vm700, %v3284, %v3285
        %v3287 = vrot.slane %v3219, 5
        %v3288 = vrot.slane %v3287, 4
        %v3289 = vrot.slane %v3220, 5
        %v3290 = vsel %vm700, %v3288, %v3289
        %v3291 = vrot.slane %v3289, 4
        %v3292 = vrot.slane %v3221, 5
        %v3293 = vsel %vm700, %v3291, %v3292
        %v3294 = vrot.slane %v3222, 5
        %v3295 = vrot.slane %v3294, 4
        %v3296 = vrot.slane %v3223, 5
        %v3297 = vsel %vm700, %v3295, %v3296
        %v3298 = vrot.slane %v3296, 4
        %v3299 = vrot.slane %v3224, 5
        %v3300 = vsel %vm700, %v3298, %v3299
        %v3301 = vrot.slane %v3225, 5
        %v3302 = vrot.slane %v3301, 4
        %v3303 = vrot.slane %v3226, 5
        %v3304 = vsel %vm700, %v3302, %v3303
        %v3305 = vrot.slane %v3303, 4
        %v3306 = vrot.slane %v3227, 5
        %v3307 = vsel %vm700, %v3305, %v3306
        %3324 = vst.msk [vmem:[#allocation4 + $0x4] sm:$0xf] %vm2760, %v3255
        %3325 = vst.msk [vmem:[#allocation4 + $0x18] sm:$0xf] %vm2760, %v3258
        %3326 = vst.msk [vmem:[#allocation4 + $0x2c] sm:$0xf] %vm2760, %v3262
        %3327 = vst.msk [vmem:[#allocation4 + $0x40] sm:$0xf] %vm2760, %v3265
        %3328 = vst.msk [vmem:[#allocation4 + $0x54] sm:$0xf] %vm2760, %v3269
        %3329 = vst.msk [vmem:[#allocation4 + $0x68] sm:$0xf] %vm2760, %v3272
        %3330 = vst.msk [vmem:[#allocation4 + $0x7c] sm:$0xf] %vm2760, %v3276
        %3331 = vst.msk [vmem:[#allocation4 + $0x90] sm:$0xf] %vm2760, %v3279
        %3332 = vst.msk [vmem:[#allocation4 + $0xa4] sm:$0xf] %vm2760, %v3283
        %3333 = vst.msk [vmem:[#allocation4 + $0xb8] sm:$0xf] %vm2760, %v3286
        %3334 = vst.msk [vmem:[#allocation4 + $0xcc] sm:$0xf] %vm2760, %v3290
        %3335 = vst.msk [vmem:[#allocation4 + $0xe0] sm:$0xf] %vm2760, %v3293
        %3336 = vst.msk [vmem:[#allocation4 + $0xf4] sm:$0xf] %vm2760, %v3297
        %3337 = vst.msk [vmem:[#allocation4 + $0x108] sm:$0xf] %vm2760, %v3300
        %3338 = vst.msk [vmem:[#allocation4 + $0x11c] sm:$0xf] %vm2760, %v3304
        %3339 = vst.msk [vmem:[#allocation4 + $0x130] sm:$0xf] %vm2760, %v3307
        %s3340 = scalar_lea.vmem [#allocation2], 12
        %v3341 = vld [vmem:[%s3340] sm:$0xf]
        %v3342 = vld [vmem:[%s3340 + $0x4] sm:$0xf]
        %v3343 = vld [vmem:[%s3340 + $0xc] sm:$0xf]
        %v3344 = vld [vmem:[%s3340 + $0x10] sm:$0xf]
        %v3345 = vld [vmem:[%s3340 + $0x18] sm:$0xf]
        %v3346 = vld [vmem:[%s3340 + $0x1c] sm:$0xf]
        %v3347 = vld [vmem:[%s3340 + $0x24] sm:$0xf]
        %v3348 = vld [vmem:[%s3340 + $0x28] sm:$0xf]
        %v3349 = vld [vmem:[%s3340 + $0x30] sm:$0xf]
        %v3350 = vld [vmem:[%s3340 + $0x34] sm:$0xf]
        %v3351 = vld [vmem:[%s3340 + $0x3c] sm:$0xf]
        %v3352 = vld [vmem:[%s3340 + $0x40] sm:$0xf]
        %v3353 = vld [vmem:[%s3340 + $0x48] sm:$0xf]
        %v3354 = vld [vmem:[%s3340 + $0x4c] sm:$0xf]
        %v3355 = vld [vmem:[%s3340 + $0x54] sm:$0xf]
        %v3356 = vld [vmem:[%s3340 + $0x58] sm:$0xf]
        %3373 = vrot.lane.b32.xlu0 %v3341, 64
        %v3374 = vpop.permute.xlu0 %3373
        %3375 = vrot.lane.b32.xlu0 %v3342, 64
        %v3376 = vpop.permute.xlu0 %3375
        %3377 = vrot.lane.b32.xlu0 %v3343, 64
        %v3378 = vpop.permute.xlu0 %3377
        %3379 = vrot.lane.b32.xlu0 %v3344, 64
        %v3380 = vpop.permute.xlu0 %3379
        %3381 = vrot.lane.b32.xlu0 %v3345, 64
        %v3382 = vpop.permute.xlu0 %3381
        %3383 = vrot.lane.b32.xlu0 %v3346, 64
        %v3384 = vpop.permute.xlu0 %3383
        %3385 = vrot.lane.b32.xlu0 %v3347, 64
        %v3386 = vpop.permute.xlu0 %3385
        %3387 = vrot.lane.b32.xlu0 %v3348, 64
        %v3388 = vpop.permute.xlu0 %3387
        %3389 = vrot.lane.b32.xlu0 %v3349, 64
        %v3390 = vpop.permute.xlu0 %3389
        %3391 = vrot.lane.b32.xlu0 %v3350, 64
        %v3392 = vpop.permute.xlu0 %3391
        %3393 = vrot.lane.b32.xlu0 %v3351, 64
        %v3394 = vpop.permute.xlu0 %3393
        %3395 = vrot.lane.b32.xlu0 %v3352, 64
        %v3396 = vpop.permute.xlu0 %3395
        %3397 = vrot.lane.b32.xlu0 %v3353, 64
        %v3398 = vpop.permute.xlu0 %3397
        %3399 = vrot.lane.b32.xlu0 %v3354, 64
        %v3400 = vpop.permute.xlu0 %3399
        %3401 = vrot.lane.b32.xlu0 %v3355, 64
        %v3402 = vpop.permute.xlu0 %3401
        %3403 = vrot.lane.b32.xlu0 %v3356, 64
        %v3404 = vpop.permute.xlu0 %3403
        %3421 = vst.msk [vmem:[#allocation4 + $0x4] sm:$0xf] %vm3187, %v3374
        %3422 = vst.msk [vmem:[#allocation4 + $0x18] sm:$0xf] %vm3187, %v3376
        %3423 = vst.msk [vmem:[#allocation4 + $0x2c] sm:$0xf] %vm3187, %v3378
        %3424 = vst.msk [vmem:[#allocation4 + $0x40] sm:$0xf] %vm3187, %v3380
        %3425 = vst.msk [vmem:[#allocation4 + $0x54] sm:$0xf] %vm3187, %v3382
        %3426 = vst.msk [vmem:[#allocation4 + $0x68] sm:$0xf] %vm3187, %v3384
        %3427 = vst.msk [vmem:[#allocation4 + $0x7c] sm:$0xf] %vm3187, %v3386
        %3428 = vst.msk [vmem:[#allocation4 + $0x90] sm:$0xf] %vm3187, %v3388
        %3429 = vst.msk [vmem:[#allocation4 + $0xa4] sm:$0xf] %vm3187, %v3390
        %3430 = vst.msk [vmem:[#allocation4 + $0xb8] sm:$0xf] %vm3187, %v3392
        %3431 = vst.msk [vmem:[#allocation4 + $0xcc] sm:$0xf] %vm3187, %v3394
        %3432 = vst.msk [vmem:[#allocation4 + $0xe0] sm:$0xf] %vm3187, %v3396
        %3433 = vst.msk [vmem:[#allocation4 + $0xf4] sm:$0xf] %vm3187, %v3398
        %3434 = vst.msk [vmem:[#allocation4 + $0x108] sm:$0xf] %vm3187, %v3400
        %3435 = vst.msk [vmem:[#allocation4 + $0x11c] sm:$0xf] %vm3187, %v3402
        %3436 = vst.msk [vmem:[#allocation4 + $0x130] sm:$0xf] %vm3187, %v3404
        %v3437 = vld [vmem:[%s3340] sm:$0xf]
        %v3438 = vld [vmem:[%s3340 + $0x4] sm:$0xf]
        %v3439 = vld [vmem:[%s3340 + $0x8] sm:$0x1]
        %v3440 = vld [vmem:[%s3340 + $0xc] sm:$0xf]
        %v3441 = vld [vmem:[%s3340 + $0x10] sm:$0xf]
        %v3442 = vld [vmem:[%s3340 + $0x14] sm:$0x1]
        %v3443 = vld [vmem:[%s3340 + $0x18] sm:$0xf]
        %v3444 = vld [vmem:[%s3340 + $0x1c] sm:$0xf]
        %v3445 = vld [vmem:[%s3340 + $0x20] sm:$0x1]
        %v3446 = vld [vmem:[%s3340 + $0x24] sm:$0xf]
        %v3447 = vld [vmem:[%s3340 + $0x28] sm:$0xf]
        %v3448 = vld [vmem:[%s3340 + $0x2c] sm:$0x1]
        %v3449 = vld [vmem:[%s3340 + $0x30] sm:$0xf]
        %v3450 = vld [vmem:[%s3340 + $0x34] sm:$0xf]
        %v3451 = vld [vmem:[%s3340 + $0x38] sm:$0x1]
        %v3452 = vld [vmem:[%s3340 + $0x3c] sm:$0xf]
        %v3453 = vld [vmem:[%s3340 + $0x40] sm:$0xf]
        %v3454 = vld [vmem:[%s3340 + $0x44] sm:$0x1]
        %v3455 = vld [vmem:[%s3340 + $0x48] sm:$0xf]
        %v3456 = vld [vmem:[%s3340 + $0x4c] sm:$0xf]
        %v3457 = vld [vmem:[%s3340 + $0x50] sm:$0x1]
        %v3458 = vld [vmem:[%s3340 + $0x54] sm:$0xf]
        %v3459 = vld [vmem:[%s3340 + $0x58] sm:$0xf]
        %v3460 = vld [vmem:[%s3340 + $0x5c] sm:$0x1]
        %v3462 = vshrl.u32 %v3437, 16
        %v3464 = vrot.slane %v3462, 4
        %v3465 = vshll.u32 %v3437, 16
        %v3467 = vrot.slane %v3465, 5
        %v3468 = vor.u32 %v3464, %v3467
        %v3469 = vrot.slane %v3468, 4
        %v3471 = vshll.u32 %v3438, 16
        %v3473 = vrot.slane %v3471, 5
        %v3474 = vsel %vm316, %v3469, %v3473
        %v3475 = vshrl.u32 %v3438, 16
        %v3477 = vrot.slane %v3475, 4
        %v3478 = vor.u32 %v3477, %v3473
        %v3479 = vrot.slane %v3478, 4
        %v3481 = vshll.u32 %v3439, 16
        %v3483 = vrot.slane %v3481, 5
        %v3484 = vsel %vm316, %v3479, %v3483
        %v3486 = vshrl.u32 %v3440, 16
        %v3488 = vrot.slane %v3486, 4
        %v3489 = vshll.u32 %v3440, 16
        %v3491 = vrot.slane %v3489, 5
        %v3492 = vor.u32 %v3488, %v3491
        %v3493 = vrot.slane %v3492, 4
        %v3495 = vshll.u32 %v3441, 16
        %v3497 = vrot.slane %v3495, 5
        %v3498 = vsel %vm316, %v3493, %v3497
        %v3499 = vshrl.u32 %v3441, 16
        %v3501 = vrot.slane %v3499, 4
        %v3502 = vor.u32 %v3501, %v3497
        %v3503 = vrot.slane %v3502, 4
        %v3505 = vshll.u32 %v3442, 16
        %v3507 = vrot.slane %v3505, 5
        %v3508 = vsel %vm316, %v3503, %v3507
        %v3510 = vshrl.u32 %v3443, 16
        %v3512 = vrot.slane %v3510, 4
        %v3513 = vshll.u32 %v3443, 16
        %v3515 = vrot.slane %v3513, 5
        %v3516 = vor.u32 %v3512, %v3515
        %v3517 = vrot.slane %v3516, 4
        %v3519 = vshll.u32 %v3444, 16
        %v3521 = vrot.slane %v3519, 5
        %v3522 = vsel %vm316, %v3517, %v3521
        %v3523 = vshrl.u32 %v3444, 16
        %v3525 = vrot.slane %v3523, 4
        %v3526 = vor.u32 %v3525, %v3521
        %v3527 = vrot.slane %v3526, 4
        %v3529 = vshll.u32 %v3445, 16
        %v3531 = vrot.slane %v3529, 5
        %v3532 = vsel %vm316, %v3527, %v3531
        %v3534 = vshrl.u32 %v3446, 16
        %v3536 = vrot.slane %v3534, 4
        %v3537 = vshll.u32 %v3446, 16
        %v3539 = vrot.slane %v3537, 5
        %v3540 = vor.u32 %v3536, %v3539
        %v3541 = vrot.slane %v3540, 4
        %v3543 = vshll.u32 %v3447, 16
        %v3545 = vrot.slane %v3543, 5
        %v3546 = vsel %vm316, %v3541, %v3545
        %v3547 = vshrl.u32 %v3447, 16
        %v3549 = vrot.slane %v3547, 4
        %v3550 = vor.u32 %v3549, %v3545
        %v3551 = vrot.slane %v3550, 4
        %v3553 = vshll.u32 %v3448, 16
        %v3555 = vrot.slane %v3553, 5
        %v3556 = vsel %vm316, %v3551, %v3555
        %v3558 = vshrl.u32 %v3449, 16
        %v3560 = vrot.slane %v3558, 4
        %v3561 = vshll.u32 %v3449, 16
        %v3563 = vrot.slane %v3561, 5
        %v3564 = vor.u32 %v3560, %v3563
        %v3565 = vrot.slane %v3564, 4
        %v3567 = vshll.u32 %v3450, 16
        %v3569 = vrot.slane %v3567, 5
        %v3570 = vsel %vm316, %v3565, %v3569
        %v3571 = vshrl.u32 %v3450, 16
        %v3573 = vrot.slane %v3571, 4
        %v3574 = vor.u32 %v3573, %v3569
        %v3575 = vrot.slane %v3574, 4
        %v3577 = vshll.u32 %v3451, 16
        %v3579 = vrot.slane %v3577, 5
        %v3580 = vsel %vm316, %v3575, %v3579
        %v3582 = vshrl.u32 %v3452, 16
        %v3584 = vrot.slane %v3582, 4
        %v3585 = vshll.u32 %v3452, 16
        %v3587 = vrot.slane %v3585, 5
        %v3588 = vor.u32 %v3584, %v3587
        %v3589 = vrot.slane %v3588, 4
        %v3591 = vshll.u32 %v3453, 16
        %v3593 = vrot.slane %v3591, 5
        %v3594 = vsel %vm316, %v3589, %v3593
        %v3595 = vshrl.u32 %v3453, 16
        %v3597 = vrot.slane %v3595, 4
        %v3598 = vor.u32 %v3597, %v3593
        %v3599 = vrot.slane %v3598, 4
        %v3601 = vshll.u32 %v3454, 16
        %v3603 = vrot.slane %v3601, 5
        %v3604 = vsel %vm316, %v3599, %v3603
        %v3606 = vshrl.u32 %v3455, 16
        %v3608 = vrot.slane %v3606, 4
        %v3609 = vshll.u32 %v3455, 16
        %v3611 = vrot.slane %v3609, 5
        %v3612 = vor.u32 %v3608, %v3611
        %v3613 = vrot.slane %v3612, 4
        %v3615 = vshll.u32 %v3456, 16
        %v3617 = vrot.slane %v3615, 5
        %v3618 = vsel %vm316, %v3613, %v3617
        %v3619 = vshrl.u32 %v3456, 16
        %v3621 = vrot.slane %v3619, 4
        %v3622 = vor.u32 %v3621, %v3617
        %v3623 = vrot.slane %v3622, 4
        %v3625 = vshll.u32 %v3457, 16
        %v3627 = vrot.slane %v3625, 5
        %v3628 = vsel %vm316, %v3623, %v3627
        %v3630 = vshrl.u32 %v3458, 16
        %v3632 = vrot.slane %v3630, 4
        %v3633 = vshll.u32 %v3458, 16
        %v3635 = vrot.slane %v3633, 5
        %v3636 = vor.u32 %v3632, %v3635
        %v3637 = vrot.slane %v3636, 4
        %v3639 = vshll.u32 %v3459, 16
        %v3641 = vrot.slane %v3639, 5
        %v3642 = vsel %vm316, %v3637, %v3641
        %v3643 = vshrl.u32 %v3459, 16
        %v3645 = vrot.slane %v3643, 4
        %v3646 = vor.u32 %v3645, %v3641
        %v3647 = vrot.slane %v3646, 4
        %v3649 = vshll.u32 %v3460, 16
        %v3651 = vrot.slane %v3649, 5
        %v3652 = vsel %vm316, %v3647, %v3651
        %3669 = vst.msk [vmem:[#allocation4 + $0x8] sm:$0xf] %vm2760, %v3474
        %3670 = vst.msk [vmem:[#allocation4 + $0x1c] sm:$0xf] %vm2760, %v3484
        %3671 = vst.msk [vmem:[#allocation4 + $0x30] sm:$0xf] %vm2760, %v3498
        %3672 = vst.msk [vmem:[#allocation4 + $0x44] sm:$0xf] %vm2760, %v3508
        %3673 = vst.msk [vmem:[#allocation4 + $0x58] sm:$0xf] %vm2760, %v3522
        %3674 = vst.msk [vmem:[#allocation4 + $0x6c] sm:$0xf] %vm2760, %v3532
        %3675 = vst.msk [vmem:[#allocation4 + $0x80] sm:$0xf] %vm2760, %v3546
        %3676 = vst.msk [vmem:[#allocation4 + $0x94] sm:$0xf] %vm2760, %v3556
        %3677 = vst.msk [vmem:[#allocation4 + $0xa8] sm:$0xf] %vm2760, %v3570
        %3678 = vst.msk [vmem:[#allocation4 + $0xbc] sm:$0xf] %vm2760, %v3580
        %3679 = vst.msk [vmem:[#allocation4 + $0xd0] sm:$0xf] %vm2760, %v3594
        %3680 = vst.msk [vmem:[#allocation4 + $0xe4] sm:$0xf] %vm2760, %v3604
        %3681 = vst.msk [vmem:[#allocation4 + $0xf8] sm:$0xf] %vm2760, %v3618
        %3682 = vst.msk [vmem:[#allocation4 + $0x10c] sm:$0xf] %vm2760, %v3628
        %3683 = vst.msk [vmem:[#allocation4 + $0x120] sm:$0xf] %vm2760, %v3642
        %3684 = vst.msk [vmem:[#allocation4 + $0x134] sm:$0xf] %vm2760, %v3652
        %v3685 = vld [vmem:[%s3340] sm:$0xe]
        %v3686 = vld [vmem:[%s3340 + $0x4] sm:$0xf]
        %v3687 = vld [vmem:[%s3340 + $0x8] sm:$0x1]
        %v3688 = vld [vmem:[%s3340 + $0xc] sm:$0xe]
        %v3689 = vld [vmem:[%s3340 + $0x10] sm:$0xf]
        %v3690 = vld [vmem:[%s3340 + $0x14] sm:$0x1]
        %v3691 = vld [vmem:[%s3340 + $0x18] sm:$0xe]
        %v3692 = vld [vmem:[%s3340 + $0x1c] sm:$0xf]
        %v3693 = vld [vmem:[%s3340 + $0x20] sm:$0x1]
        %v3694 = vld [vmem:[%s3340 + $0x24] sm:$0xe]
        %v3695 = vld [vmem:[%s3340 + $0x28] sm:$0xf]
        %v3696 = vld [vmem:[%s3340 + $0x2c] sm:$0x1]
        %v3697 = vld [vmem:[%s3340 + $0x30] sm:$0xe]
        %v3698 = vld [vmem:[%s3340 + $0x34] sm:$0xf]
        %v3699 = vld [vmem:[%s3340 + $0x38] sm:$0x1]
        %v3700 = vld [vmem:[%s3340 + $0x3c] sm:$0xe]
        %v3701 = vld [vmem:[%s3340 + $0x40] sm:$0xf]
        %v3702 = vld [vmem:[%s3340 + $0x44] sm:$0x1]
        %v3703 = vld [vmem:[%s3340 + $0x48] sm:$0xe]
        %v3704 = vld [vmem:[%s3340 + $0x4c] sm:$0xf]
        %v3705 = vld [vmem:[%s3340 + $0x50] sm:$0x1]
        %v3706 = vld [vmem:[%s3340 + $0x54] sm:$0xe]
        %v3707 = vld [vmem:[%s3340 + $0x58] sm:$0xf]
        %v3708 = vld [vmem:[%s3340 + $0x5c] sm:$0x1]
        %v3733 = vrot.slane %v3685, 5
        %v3734 = vrot.slane %v3733, 4
        %v3735 = vrot.slane %v3686, 5
        %v3736 = vsel %vm700, %v3734, %v3735
        %v3737 = vrot.slane %v3735, 4
        %v3738 = vrot.slane %v3687, 5
        %v3739 = vsel %vm700, %v3737, %v3738
        %v3740 = vrot.slane %v3688, 5
        %v3741 = vrot.slane %v3740, 4
        %v3742 = vrot.slane %v3689, 5
        %v3743 = vsel %vm700, %v3741, %v3742
        %v3744 = vrot.slane %v3742, 4
        %v3745 = vrot.slane %v3690, 5
        %v3746 = vsel %vm700, %v3744, %v3745
        %v3747 = vrot.slane %v3691, 5
        %v3748 = vrot.slane %v3747, 4
        %v3749 = vrot.slane %v3692, 5
        %v3750 = vsel %vm700, %v3748, %v3749
        %v3751 = vrot.slane %v3749, 4
        %v3752 = vrot.slane %v3693, 5
        %v3753 = vsel %vm700, %v3751, %v3752
        %v3754 = vrot.slane %v3694, 5
        %v3755 = vrot.slane %v3754, 4
        %v3756 = vrot.slane %v3695, 5
        %v3757 = vsel %vm700, %v3755, %v3756
        %v3758 = vrot.slane %v3756, 4
        %v3759 = vrot.slane %v3696, 5
        %v3760 = vsel %vm700, %v3758, %v3759
        %v3761 = vrot.slane %v3697, 5
        %v3762 = vrot.slane %v3761, 4
        %v3763 = vrot.slane %v3698, 5
        %v3764 = vsel %vm700, %v3762, %v3763
        %v3765 = vrot.slane %v3763, 4
        %v3766 = vrot.slane %v3699, 5
        %v3767 = vsel %vm700, %v3765, %v3766
        %v3768 = vrot.slane %v3700, 5
        %v3769 = vrot.slane %v3768, 4
        %v3770 = vrot.slane %v3701, 5
        %v3771 = vsel %vm700, %v3769, %v3770
        %v3772 = vrot.slane %v3770, 4
        %v3773 = vrot.slane %v3702, 5
        %v3774 = vsel %vm700, %v3772, %v3773
        %v3775 = vrot.slane %v3703, 5
        %v3776 = vrot.slane %v3775, 4
        %v3777 = vrot.slane %v3704, 5
        %v3778 = vsel %vm700, %v3776, %v3777
        %v3779 = vrot.slane %v3777, 4
        %v3780 = vrot.slane %v3705, 5
        %v3781 = vsel %vm700, %v3779, %v3780
        %v3782 = vrot.slane %v3706, 5
        %v3783 = vrot.slane %v3782, 4
        %v3784 = vrot.slane %v3707, 5
        %v3785 = vsel %vm700, %v3783, %v3784
        %v3786 = vrot.slane %v3784, 4
        %v3787 = vrot.slane %v3708, 5
        %v3788 = vsel %vm700, %v3786, %v3787
        %3789 = vrot.lane.b32.xlu0 %v3736, 64
        %v3790 = vpop.permute.xlu0 %3789
        %3791 = vrot.lane.b32.xlu0 %v3739, 64
        %v3792 = vpop.permute.xlu0 %3791
        %3793 = vrot.lane.b32.xlu0 %v3743, 64
        %v3794 = vpop.permute.xlu0 %3793
        %3795 = vrot.lane.b32.xlu0 %v3746, 64
        %v3796 = vpop.permute.xlu0 %3795
        %3797 = vrot.lane.b32.xlu0 %v3750, 64
        %v3798 = vpop.permute.xlu0 %3797
        %3799 = vrot.lane.b32.xlu0 %v3753, 64
        %v3800 = vpop.permute.xlu0 %3799
        %3801 = vrot.lane.b32.xlu0 %v3757, 64
        %v3802 = vpop.permute.xlu0 %3801
        %3803 = vrot.lane.b32.xlu0 %v3760, 64
        %v3804 = vpop.permute.xlu0 %3803
        %3805 = vrot.lane.b32.xlu0 %v3764, 64
        %v3806 = vpop.permute.xlu0 %3805
        %3807 = vrot.lane.b32.xlu0 %v3767, 64
        %v3808 = vpop.permute.xlu0 %3807
        %3809 = vrot.lane.b32.xlu0 %v3771, 64
        %v3810 = vpop.permute.xlu0 %3809
        %3811 = vrot.lane.b32.xlu0 %v3774, 64
        %v3812 = vpop.permute.xlu0 %3811
        %3813 = vrot.lane.b32.xlu0 %v3778, 64
        %v3814 = vpop.permute.xlu0 %3813
        %3815 = vrot.lane.b32.xlu0 %v3781, 64
        %v3816 = vpop.permute.xlu0 %3815
        %3817 = vrot.lane.b32.xlu0 %v3785, 64
        %v3818 = vpop.permute.xlu0 %3817
        %3819 = vrot.lane.b32.xlu0 %v3788, 64
        %v3820 = vpop.permute.xlu0 %3819
        %3837 = vst.msk [vmem:[#allocation4 + $0x8] sm:$0xf] %vm3187, %v3790
        %3838 = vst.msk [vmem:[#allocation4 + $0x1c] sm:$0xf] %vm3187, %v3792
        %3839 = vst.msk [vmem:[#allocation4 + $0x30] sm:$0xf] %vm3187, %v3794
        %3840 = vst.msk [vmem:[#allocation4 + $0x44] sm:$0xf] %vm3187, %v3796
        %3841 = vst.msk [vmem:[#allocation4 + $0x58] sm:$0xf] %vm3187, %v3798
        %3842 = vst.msk [vmem:[#allocation4 + $0x6c] sm:$0xf] %vm3187, %v3800
        %3843 = vst.msk [vmem:[#allocation4 + $0x80] sm:$0xf] %vm3187, %v3802
        %3844 = vst.msk [vmem:[#allocation4 + $0x94] sm:$0xf] %vm3187, %v3804
        %3845 = vst.msk [vmem:[#allocation4 + $0xa8] sm:$0xf] %vm3187, %v3806
        %3846 = vst.msk [vmem:[#allocation4 + $0xbc] sm:$0xf] %vm3187, %v3808
        %3847 = vst.msk [vmem:[#allocation4 + $0xd0] sm:$0xf] %vm3187, %v3810
        %3848 = vst.msk [vmem:[#allocation4 + $0xe4] sm:$0xf] %vm3187, %v3812
        %3849 = vst.msk [vmem:[#allocation4 + $0xf8] sm:$0xf] %vm3187, %v3814
        %3850 = vst.msk [vmem:[#allocation4 + $0x10c] sm:$0xf] %vm3187, %v3816
        %3851 = vst.msk [vmem:[#allocation4 + $0x120] sm:$0xf] %vm3187, %v3818
        %3852 = vst.msk [vmem:[#allocation4 + $0x134] sm:$0xf] %vm3187, %v3820
        %s3853 = scalar_lea.vmem [#allocation2], 24
        %v3854 = vld [vmem:[%s3853] sm:$0xf]
        %v3855 = vld [vmem:[%s3853 + $0x4] sm:$0xf]
        %v3856 = vld [vmem:[%s3853 + $0xc] sm:$0xf]
        %v3857 = vld [vmem:[%s3853 + $0x10] sm:$0xf]
        %v3858 = vld [vmem:[%s3853 + $0x18] sm:$0xf]
        %v3859 = vld [vmem:[%s3853 + $0x1c] sm:$0xf]
        %v3860 = vld [vmem:[%s3853 + $0x24] sm:$0xf]
        %v3861 = vld [vmem:[%s3853 + $0x28] sm:$0xf]
        %v3862 = vld [vmem:[%s3853 + $0x30] sm:$0xf]
        %v3863 = vld [vmem:[%s3853 + $0x34] sm:$0xf]
        %v3864 = vld [vmem:[%s3853 + $0x3c] sm:$0xf]
        %v3865 = vld [vmem:[%s3853 + $0x40] sm:$0xf]
        %v3866 = vld [vmem:[%s3853 + $0x48] sm:$0xf]
        %v3867 = vld [vmem:[%s3853 + $0x4c] sm:$0xf]
        %v3868 = vld [vmem:[%s3853 + $0x54] sm:$0xf]
        %v3869 = vld [vmem:[%s3853 + $0x58] sm:$0xf]
        %3870 = vst.msk [vmem:[#allocation4 + $0xc] sm:$0xf] %vm2760, %v3854
        %3871 = vst.msk [vmem:[#allocation4 + $0x20] sm:$0xf] %vm2760, %v3855
        %3872 = vst.msk [vmem:[#allocation4 + $0x34] sm:$0xf] %vm2760, %v3856
        %3873 = vst.msk [vmem:[#allocation4 + $0x48] sm:$0xf] %vm2760, %v3857
        %3874 = vst.msk [vmem:[#allocation4 + $0x5c] sm:$0xf] %vm2760, %v3858
        %3875 = vst.msk [vmem:[#allocation4 + $0x70] sm:$0xf] %vm2760, %v3859
        %3876 = vst.msk [vmem:[#allocation4 + $0x84] sm:$0xf] %vm2760, %v3860
        %3877 = vst.msk [vmem:[#allocation4 + $0x98] sm:$0xf] %vm2760, %v3861
        %3878 = vst.msk [vmem:[#allocation4 + $0xac] sm:$0xf] %vm2760, %v3862
        %3879 = vst.msk [vmem:[#allocation4 + $0xc0] sm:$0xf] %vm2760, %v3863
        %3880 = vst.msk [vmem:[#allocation4 + $0xd4] sm:$0xf] %vm2760, %v3864
        %3881 = vst.msk [vmem:[#allocation4 + $0xe8] sm:$0xf] %vm2760, %v3865
        %3882 = vst.msk [vmem:[#allocation4 + $0xfc] sm:$0xf] %vm2760, %v3866
        %3883 = vst.msk [vmem:[#allocation4 + $0x110] sm:$0xf] %vm2760, %v3867
        %3884 = vst.msk [vmem:[#allocation4 + $0x124] sm:$0xf] %vm2760, %v3868
        %3885 = vst.msk [vmem:[#allocation4 + $0x138] sm:$0xf] %vm2760, %v3869
        %v3886 = vld [vmem:[%s3853] sm:$0xf]
        %v3887 = vld [vmem:[%s3853 + $0x4] sm:$0xf]
        %v3888 = vld [vmem:[%s3853 + $0x8] sm:$0x1]
        %v3889 = vld [vmem:[%s3853 + $0xc] sm:$0xf]
        %v3890 = vld [vmem:[%s3853 + $0x10] sm:$0xf]
        %v3891 = vld [vmem:[%s3853 + $0x14] sm:$0x1]
        %v3892 = vld [vmem:[%s3853 + $0x18] sm:$0xf]
        %v3893 = vld [vmem:[%s3853 + $0x1c] sm:$0xf]
        %v3894 = vld [vmem:[%s3853 + $0x20] sm:$0x1]
        %v3895 = vld [vmem:[%s3853 + $0x24] sm:$0xf]
        %v3896 = vld [vmem:[%s3853 + $0x28] sm:$0xf]
        %v3897 = vld [vmem:[%s3853 + $0x2c] sm:$0x1]
        %v3898 = vld [vmem:[%s3853 + $0x30] sm:$0xf]
        %v3899 = vld [vmem:[%s3853 + $0x34] sm:$0xf]
        %v3900 = vld [vmem:[%s3853 + $0x38] sm:$0x1]
        %v3901 = vld [vmem:[%s3853 + $0x3c] sm:$0xf]
        %v3902 = vld [vmem:[%s3853 + $0x40] sm:$0xf]
        %v3903 = vld [vmem:[%s3853 + $0x44] sm:$0x1]
        %v3904 = vld [vmem:[%s3853 + $0x48] sm:$0xf]
        %v3905 = vld [vmem:[%s3853 + $0x4c] sm:$0xf]
        %v3906 = vld [vmem:[%s3853 + $0x50] sm:$0x1]
        %v3907 = vld [vmem:[%s3853 + $0x54] sm:$0xf]
        %v3908 = vld [vmem:[%s3853 + $0x58] sm:$0xf]
        %v3909 = vld [vmem:[%s3853 + $0x5c] sm:$0x1]
        %v3911 = vshrl.u32 %v3886, 16
        %v3913 = vrot.slane %v3911, 4
        %v3914 = vshll.u32 %v3886, 16
        %v3916 = vrot.slane %v3914, 5
        %v3917 = vor.u32 %v3913, %v3916
        %v3918 = vrot.slane %v3917, 4
        %v3920 = vshll.u32 %v3887, 16
        %v3922 = vrot.slane %v3920, 5
        %v3923 = vsel %vm316, %v3918, %v3922
        %v3924 = vshrl.u32 %v3887, 16
        %v3926 = vrot.slane %v3924, 4
        %v3927 = vor.u32 %v3926, %v3922
        %v3928 = vrot.slane %v3927, 4
        %v3930 = vshll.u32 %v3888, 16
        %v3932 = vrot.slane %v3930, 5
        %v3933 = vsel %vm316, %v3928, %v3932
        %v3935 = vshrl.u32 %v3889, 16
        %v3937 = vrot.slane %v3935, 4
        %v3938 = vshll.u32 %v3889, 16
        %v3940 = vrot.slane %v3938, 5
        %v3941 = vor.u32 %v3937, %v3940
        %v3942 = vrot.slane %v3941, 4
        %v3944 = vshll.u32 %v3890, 16
        %v3946 = vrot.slane %v3944, 5
        %v3947 = vsel %vm316, %v3942, %v3946
        %v3948 = vshrl.u32 %v3890, 16
        %v3950 = vrot.slane %v3948, 4
        %v3951 = vor.u32 %v3950, %v3946
        %v3952 = vrot.slane %v3951, 4
        %v3954 = vshll.u32 %v3891, 16
        %v3956 = vrot.slane %v3954, 5
        %v3957 = vsel %vm316, %v3952, %v3956
        %v3959 = vshrl.u32 %v3892, 16
        %v3961 = vrot.slane %v3959, 4
        %v3962 = vshll.u32 %v3892, 16
        %v3964 = vrot.slane %v3962, 5
        %v3965 = vor.u32 %v3961, %v3964
        %v3966 = vrot.slane %v3965, 4
        %v3968 = vshll.u32 %v3893, 16
        %v3970 = vrot.slane %v3968, 5
        %v3971 = vsel %vm316, %v3966, %v3970
        %v3972 = vshrl.u32 %v3893, 16
        %v3974 = vrot.slane %v3972, 4
        %v3975 = vor.u32 %v3974, %v3970
        %v3976 = vrot.slane %v3975, 4
        %v3978 = vshll.u32 %v3894, 16
        %v3980 = vrot.slane %v3978, 5
        %v3981 = vsel %vm316, %v3976, %v3980
        %v3983 = vshrl.u32 %v3895, 16
        %v3985 = vrot.slane %v3983, 4
        %v3986 = vshll.u32 %v3895, 16
        %v3988 = vrot.slane %v3986, 5
        %v3989 = vor.u32 %v3985, %v3988
        %v3990 = vrot.slane %v3989, 4
        %v3992 = vshll.u32 %v3896, 16
        %v3994 = vrot.slane %v3992, 5
        %v3995 = vsel %vm316, %v3990, %v3994
        %v3996 = vshrl.u32 %v3896, 16
        %v3998 = vrot.slane %v3996, 4
        %v3999 = vor.u32 %v3998, %v3994
        %v4000 = vrot.slane %v3999, 4
        %v4002 = vshll.u32 %v3897, 16
        %v4004 = vrot.slane %v4002, 5
        %v4005 = vsel %vm316, %v4000, %v4004
        %v4007 = vshrl.u32 %v3898, 16
        %v4009 = vrot.slane %v4007, 4
        %v4010 = vshll.u32 %v3898, 16
        %v4012 = vrot.slane %v4010, 5
        %v4013 = vor.u32 %v4009, %v4012
        %v4014 = vrot.slane %v4013, 4
        %v4016 = vshll.u32 %v3899, 16
        %v4018 = vrot.slane %v4016, 5
        %v4019 = vsel %vm316, %v4014, %v4018
        %v4020 = vshrl.u32 %v3899, 16
        %v4022 = vrot.slane %v4020, 4
        %v4023 = vor.u32 %v4022, %v4018
        %v4024 = vrot.slane %v4023, 4
        %v4026 = vshll.u32 %v3900, 16
        %v4028 = vrot.slane %v4026, 5
        %v4029 = vsel %vm316, %v4024, %v4028
        %v4031 = vshrl.u32 %v3901, 16
        %v4033 = vrot.slane %v4031, 4
        %v4034 = vshll.u32 %v3901, 16
        %v4036 = vrot.slane %v4034, 5
        %v4037 = vor.u32 %v4033, %v4036
        %v4038 = vrot.slane %v4037, 4
        %v4040 = vshll.u32 %v3902, 16
        %v4042 = vrot.slane %v4040, 5
        %v4043 = vsel %vm316, %v4038, %v4042
        %v4044 = vshrl.u32 %v3902, 16
        %v4046 = vrot.slane %v4044, 4
        %v4047 = vor.u32 %v4046, %v4042
        %v4048 = vrot.slane %v4047, 4
        %v4050 = vshll.u32 %v3903, 16
        %v4052 = vrot.slane %v4050, 5
        %v4053 = vsel %vm316, %v4048, %v4052
        %v4055 = vshrl.u32 %v3904, 16
        %v4057 = vrot.slane %v4055, 4
        %v4058 = vshll.u32 %v3904, 16
        %v4060 = vrot.slane %v4058, 5
        %v4061 = vor.u32 %v4057, %v4060
        %v4062 = vrot.slane %v4061, 4
        %v4064 = vshll.u32 %v3905, 16
        %v4066 = vrot.slane %v4064, 5
        %v4067 = vsel %vm316, %v4062, %v4066
        %v4068 = vshrl.u32 %v3905, 16
        %v4070 = vrot.slane %v4068, 4
        %v4071 = vor.u32 %v4070, %v4066
        %v4072 = vrot.slane %v4071, 4
        %v4074 = vshll.u32 %v3906, 16
        %v4076 = vrot.slane %v4074, 5
        %v4077 = vsel %vm316, %v4072, %v4076
        %v4079 = vshrl.u32 %v3907, 16
        %v4081 = vrot.slane %v4079, 4
        %v4082 = vshll.u32 %v3907, 16
        %v4084 = vrot.slane %v4082, 5
        %v4085 = vor.u32 %v4081, %v4084
        %v4086 = vrot.slane %v4085, 4
        %v4088 = vshll.u32 %v3908, 16
        %v4090 = vrot.slane %v4088, 5
        %v4091 = vsel %vm316, %v4086, %v4090
        %v4092 = vshrl.u32 %v3908, 16
        %v4094 = vrot.slane %v4092, 4
        %v4095 = vor.u32 %v4094, %v4090
        %v4096 = vrot.slane %v4095, 4
        %v4098 = vshll.u32 %v3909, 16
        %v4100 = vrot.slane %v4098, 5
        %v4101 = vsel %vm316, %v4096, %v4100
        %4102 = vrot.lane.b32.xlu0 %v3923, 64
        %v4103 = vpop.permute.xlu0 %4102
        %4104 = vrot.lane.b32.xlu0 %v3933, 64
        %v4105 = vpop.permute.xlu0 %4104
        %4106 = vrot.lane.b32.xlu0 %v3947, 64
        %v4107 = vpop.permute.xlu0 %4106
        %4108 = vrot.lane.b32.xlu0 %v3957, 64
        %v4109 = vpop.permute.xlu0 %4108
        %4110 = vrot.lane.b32.xlu0 %v3971, 64
        %v4111 = vpop.permute.xlu0 %4110
        %4112 = vrot.lane.b32.xlu0 %v3981, 64
        %v4113 = vpop.permute.xlu0 %4112
        %4114 = vrot.lane.b32.xlu0 %v3995, 64
        %v4115 = vpop.permute.xlu0 %4114
        %4116 = vrot.lane.b32.xlu0 %v4005, 64
        %v4117 = vpop.permute.xlu0 %4116
        %4118 = vrot.lane.b32.xlu0 %v4019, 64
        %v4119 = vpop.permute.xlu0 %4118
        %4120 = vrot.lane.b32.xlu0 %v4029, 64
        %v4121 = vpop.permute.xlu0 %4120
        %4122 = vrot.lane.b32.xlu0 %v4043, 64
        %v4123 = vpop.permute.xlu0 %4122
        %4124 = vrot.lane.b32.xlu0 %v4053, 64
        %v4125 = vpop.permute.xlu0 %4124
        %4126 = vrot.lane.b32.xlu0 %v4067, 64
        %v4127 = vpop.permute.xlu0 %4126
        %4128 = vrot.lane.b32.xlu0 %v4077, 64
        %v4129 = vpop.permute.xlu0 %4128
        %4130 = vrot.lane.b32.xlu0 %v4091, 64
        %v4131 = vpop.permute.xlu0 %4130
        %4132 = vrot.lane.b32.xlu0 %v4101, 64
        %v4133 = vpop.permute.xlu0 %4132
        %4150 = vst.msk [vmem:[#allocation4 + $0xc] sm:$0xf] %vm3187, %v4103
        %4151 = vst.msk [vmem:[#allocation4 + $0x20] sm:$0xf] %vm3187, %v4105
        %4152 = vst.msk [vmem:[#allocation4 + $0x34] sm:$0xf] %vm3187, %v4107
        %4153 = vst.msk [vmem:[#allocation4 + $0x48] sm:$0xf] %vm3187, %v4109
        %4154 = vst.msk [vmem:[#allocation4 + $0x5c] sm:$0xf] %vm3187, %v4111
        %4155 = vst.msk [vmem:[#allocation4 + $0x70] sm:$0xf] %vm3187, %v4113
        %4156 = vst.msk [vmem:[#allocation4 + $0x84] sm:$0xf] %vm3187, %v4115
        %4157 = vst.msk [vmem:[#allocation4 + $0x98] sm:$0xf] %vm3187, %v4117
        %4158 = vst.msk [vmem:[#allocation4 + $0xac] sm:$0xf] %vm3187, %v4119
        %4159 = vst.msk [vmem:[#allocation4 + $0xc0] sm:$0xf] %vm3187, %v4121
        %4160 = vst.msk [vmem:[#allocation4 + $0xd4] sm:$0xf] %vm3187, %v4123
        %4161 = vst.msk [vmem:[#allocation4 + $0xe8] sm:$0xf] %vm3187, %v4125
        %4162 = vst.msk [vmem:[#allocation4 + $0xfc] sm:$0xf] %vm3187, %v4127
        %4163 = vst.msk [vmem:[#allocation4 + $0x110] sm:$0xf] %vm3187, %v4129
        %4164 = vst.msk [vmem:[#allocation4 + $0x124] sm:$0xf] %vm3187, %v4131
        %4165 = vst.msk [vmem:[#allocation4 + $0x138] sm:$0xf] %vm3187, %v4133
        %v4166 = vld [vmem:[%s3853] sm:$0xe]
        %v4167 = vld [vmem:[%s3853 + $0x4] sm:$0xf]
        %v4168 = vld [vmem:[%s3853 + $0x8] sm:$0x1]
        %v4169 = vld [vmem:[%s3853 + $0xc] sm:$0xe]
        %v4170 = vld [vmem:[%s3853 + $0x10] sm:$0xf]
        %v4171 = vld [vmem:[%s3853 + $0x14] sm:$0x1]
        %v4172 = vld [vmem:[%s3853 + $0x18] sm:$0xe]
        %v4173 = vld [vmem:[%s3853 + $0x1c] sm:$0xf]
        %v4174 = vld [vmem:[%s3853 + $0x20] sm:$0x1]
        %v4175 = vld [vmem:[%s3853 + $0x24] sm:$0xe]
        %v4176 = vld [vmem:[%s3853 + $0x28] sm:$0xf]
        %v4177 = vld [vmem:[%s3853 + $0x2c] sm:$0x1]
        %v4178 = vld [vmem:[%s3853 + $0x30] sm:$0xe]
        %v4179 = vld [vmem:[%s3853 + $0x34] sm:$0xf]
        %v4180 = vld [vmem:[%s3853 + $0x38] sm:$0x1]
        %v4181 = vld [vmem:[%s3853 + $0x3c] sm:$0xe]
        %v4182 = vld [vmem:[%s3853 + $0x40] sm:$0xf]
        %v4183 = vld [vmem:[%s3853 + $0x44] sm:$0x1]
        %v4184 = vld [vmem:[%s3853 + $0x48] sm:$0xe]
        %v4185 = vld [vmem:[%s3853 + $0x4c] sm:$0xf]
        %v4186 = vld [vmem:[%s3853 + $0x50] sm:$0x1]
        %v4187 = vld [vmem:[%s3853 + $0x54] sm:$0xe]
        %v4188 = vld [vmem:[%s3853 + $0x58] sm:$0xf]
        %v4189 = vld [vmem:[%s3853 + $0x5c] sm:$0x1]
        %v4214 = vrot.slane %v4166, 5
        %v4215 = vrot.slane %v4214, 4
        %v4216 = vrot.slane %v4167, 5
        %v4217 = vsel %vm700, %v4215, %v4216
        %v4218 = vrot.slane %v4216, 4
        %v4219 = vrot.slane %v4168, 5
        %v4220 = vsel %vm700, %v4218, %v4219
        %v4221 = vrot.slane %v4169, 5
        %v4222 = vrot.slane %v4221, 4
        %v4223 = vrot.slane %v4170, 5
        %v4224 = vsel %vm700, %v4222, %v4223
        %v4225 = vrot.slane %v4223, 4
        %v4226 = vrot.slane %v4171, 5
        %v4227 = vsel %vm700, %v4225, %v4226
        %v4228 = vrot.slane %v4172, 5
        %v4229 = vrot.slane %v4228, 4
        %v4230 = vrot.slane %v4173, 5
        %v4231 = vsel %vm700, %v4229, %v4230
        %v4232 = vrot.slane %v4230, 4
        %v4233 = vrot.slane %v4174, 5
        %v4234 = vsel %vm700, %v4232, %v4233
        %v4235 = vrot.slane %v4175, 5
        %v4236 = vrot.slane %v4235, 4
        %v4237 = vrot.slane %v4176, 5
        %v4238 = vsel %vm700, %v4236, %v4237
        %v4239 = vrot.slane %v4237, 4
        %v4240 = vrot.slane %v4177, 5
        %v4241 = vsel %vm700, %v4239, %v4240
        %v4242 = vrot.slane %v4178, 5
        %v4243 = vrot.slane %v4242, 4
        %v4244 = vrot.slane %v4179, 5
        %v4245 = vsel %vm700, %v4243, %v4244
        %v4246 = vrot.slane %v4244, 4
        %v4247 = vrot.slane %v4180, 5
        %v4248 = vsel %vm700, %v4246, %v4247
        %v4249 = vrot.slane %v4181, 5
        %v4250 = vrot.slane %v4249, 4
        %v4251 = vrot.slane %v4182, 5
        %v4252 = vsel %vm700, %v4250, %v4251
        %v4253 = vrot.slane %v4251, 4
        %v4254 = vrot.slane %v4183, 5
        %v4255 = vsel %vm700, %v4253, %v4254
        %v4256 = vrot.slane %v4184, 5
        %v4257 = vrot.slane %v4256, 4
        %v4258 = vrot.slane %v4185, 5
        %v4259 = vsel %vm700, %v4257, %v4258
        %v4260 = vrot.slane %v4258, 4
        %v4261 = vrot.slane %v4186, 5
        %v4262 = vsel %vm700, %v4260, %v4261
        %v4263 = vrot.slane %v4187, 5
        %v4264 = vrot.slane %v4263, 4
        %v4265 = vrot.slane %v4188, 5
        %v4266 = vsel %vm700, %v4264, %v4265
        %v4267 = vrot.slane %v4265, 4
        %v4268 = vrot.slane %v4189, 5
        %v4269 = vsel %vm700, %v4267, %v4268
        %4286 = vst.msk [vmem:[#allocation4 + $0x10] sm:$0xf] %vm2760, %v4217
        %4287 = vst.msk [vmem:[#allocation4 + $0x24] sm:$0xf] %vm2760, %v4220
        %4288 = vst.msk [vmem:[#allocation4 + $0x38] sm:$0xf] %vm2760, %v4224
        %4289 = vst.msk [vmem:[#allocation4 + $0x4c] sm:$0xf] %vm2760, %v4227
        %4290 = vst.msk [vmem:[#allocation4 + $0x60] sm:$0xf] %vm2760, %v4231
        %4291 = vst.msk [vmem:[#allocation4 + $0x74] sm:$0xf] %vm2760, %v4234
        %4292 = vst.msk [vmem:[#allocation4 + $0x88] sm:$0xf] %vm2760, %v4238
        %4293 = vst.msk [vmem:[#allocation4 + $0x9c] sm:$0xf] %vm2760, %v4241
        %4294 = vst.msk [vmem:[#allocation4 + $0xb0] sm:$0xf] %vm2760, %v4245
        %4295 = vst.msk [vmem:[#allocation4 + $0xc4] sm:$0xf] %vm2760, %v4248
        %4296 = vst.msk [vmem:[#allocation4 + $0xd8] sm:$0xf] %vm2760, %v4252
        %4297 = vst.msk [vmem:[#allocation4 + $0xec] sm:$0xf] %vm2760, %v4255
        %4298 = vst.msk [vmem:[#allocation4 + $0x100] sm:$0xf] %vm2760, %v4259
        %4299 = vst.msk [vmem:[#allocation4 + $0x114] sm:$0xf] %vm2760, %v4262
        %4300 = vst.msk [vmem:[#allocation4 + $0x128] sm:$0xf] %vm2760, %v4266
        %4301 = vst.msk [vmem:[#allocation4 + $0x13c] sm:$0xf] %vm2760, %v4269
        %v4302 = vld [vmem:[#allocation4] sm:$0xff]
        %v4303 = vld [vmem:[#allocation4 + $0x8] sm:$0xff]
        %v4304 = vld [vmem:[#allocation4 + $0x10] sm:$0xf]
        %v4305 = vld [vmem:[#allocation4 + $0x14] sm:$0xff]
        %v4306 = vld [vmem:[#allocation4 + $0x1c] sm:$0xff]
        %v4307 = vld [vmem:[#allocation4 + $0x24] sm:$0xf]
        %v4308 = vld [vmem:[#allocation4 + $0x28] sm:$0xff]
        %v4309 = vld [vmem:[#allocation4 + $0x30] sm:$0xff]
        %v4310 = vld [vmem:[#allocation4 + $0x38] sm:$0xf]
        %v4311 = vld [vmem:[#allocation4 + $0x3c] sm:$0xff]
        %v4312 = vld [vmem:[#allocation4 + $0x44] sm:$0xff]
        %v4313 = vld [vmem:[#allocation4 + $0x4c] sm:$0xf]
        %v4314 = vld [vmem:[#allocation4 + $0x50] sm:$0xff]
        %v4315 = vld [vmem:[#allocation4 + $0x58] sm:$0xff]
        %v4316 = vld [vmem:[#allocation4 + $0x60] sm:$0xf]
        %v4317 = vld [vmem:[#allocation4 + $0x64] sm:$0xff]
        %v4318 = vld [vmem:[#allocation4 + $0x6c] sm:$0xff]
        %v4319 = vld [vmem:[#allocation4 + $0x74] sm:$0xf]
        %v4320 = vld [vmem:[#allocation4 + $0x78] sm:$0xff]
        %v4321 = vld [vmem:[#allocation4 + $0x80] sm:$0xff]
        %v4322 = vld [vmem:[#allocation4 + $0x88] sm:$0xf]
        %v4323 = vld [vmem:[#allocation4 + $0x8c] sm:$0xff]
        %v4324 = vld [vmem:[#allocation4 + $0x94] sm:$0xff]
        %v4325 = vld [vmem:[#allocation4 + $0x9c] sm:$0xf]
        %v4326 = vld [vmem:[#allocation4 + $0xa0] sm:$0xff]
        %v4327 = vld [vmem:[#allocation4 + $0xa8] sm:$0xff]
        %v4328 = vld [vmem:[#allocation4 + $0xb0] sm:$0xf]
        %v4329 = vld [vmem:[#allocation4 + $0xb4] sm:$0xff]
        %v4330 = vld [vmem:[#allocation4 + $0xbc] sm:$0xff]
        %v4331 = vld [vmem:[#allocation4 + $0xc4] sm:$0xf]
        %v4332 = vld [vmem:[#allocation4 + $0xc8] sm:$0xff]
        %v4333 = vld [vmem:[#allocation4 + $0xd0] sm:$0xff]
        %v4334 = vld [vmem:[#allocation4 + $0xd8] sm:$0xf]
        %v4335 = vld [vmem:[#allocation4 + $0xdc] sm:$0xff]
        %v4336 = vld [vmem:[#allocation4 + $0xe4] sm:$0xff]
        %v4337 = vld [vmem:[#allocation4 + $0xec] sm:$0xf]
        %v4338 = vld [vmem:[#allocation4 + $0xf0] sm:$0xff]
        %v4339 = vld [vmem:[#allocation4 + $0xf8] sm:$0xff]
        %v4340 = vld [vmem:[#allocation4 + $0x100] sm:$0xf]
        %v4341 = vld [vmem:[#allocation4 + $0x104] sm:$0xff]
        %v4342 = vld [vmem:[#allocation4 + $0x10c] sm:$0xff]
        %v4343 = vld [vmem:[#allocation4 + $0x114] sm:$0xf]
        %v4344 = vld [vmem:[#allocation4 + $0x118] sm:$0xff]
        %v4345 = vld [vmem:[#allocation4 + $0x120] sm:$0xff]
        %v4346 = vld [vmem:[#allocation4 + $0x128] sm:$0xf]
        %v4347 = vld [vmem:[#allocation4 + $0x12c] sm:$0xff]
        %v4348 = vld [vmem:[#allocation4 + $0x134] sm:$0xff]
        %v4349 = vld [vmem:[#allocation4 + $0x13c] sm:$0xf]
        %v4350 = vld [vmem:[%s3] sm:$0xf]
        %v4351 = vld [vmem:[%s3 + $0x4] sm:$0xf]
        %v4352 = vld [vmem:[%s3 + $0x8] sm:$0xf]
        %v4353 = vld [vmem:[%s3 + $0xc] sm:$0xf]
        %v4354 = vld [vmem:[%s3 + $0x10] sm:$0xf]
        %v4355 = vld [vmem:[%s3 + $0x14] sm:$0xf]
        %v4356 = vld [vmem:[%s3 + $0x18] sm:$0xf]
        %v4357 = vld [vmem:[%s3 + $0x1c] sm:$0xf]
        %v4358 = vld [vmem:[%s3 + $0x20] sm:$0xf]
        %v4359 = vld [vmem:[%s3 + $0x24] sm:$0xf]
        %v4360 = vld [vmem:[%s3 + $0x28] sm:$0xf]
        %v4361 = vld [vmem:[%s3 + $0x2c] sm:$0xf]
        %v4362 = vld [vmem:[%s3 + $0x30] sm:$0xf]
        %v4363 = vld [vmem:[%s3 + $0x34] sm:$0xf]
        %v4364 = vld [vmem:[%s3 + $0x38] sm:$0xf]
        %v4365 = vld [vmem:[%s3 + $0x3c] sm:$0xf]
        %v4366 = vld [vmem:[%s3 + $0x40] sm:$0xf]
        %v4367 = vld [vmem:[%s3 + $0x44] sm:$0xf]
        %v4368 = vld [vmem:[%s3 + $0x48] sm:$0xf]
        %v4369 = vld [vmem:[%s3 + $0x4c] sm:$0xf]
        %v4370 = vld [vmem:[%s3 + $0x50] sm:$0xf]
        %v4371 = vld [vmem:[%s3 + $0x54] sm:$0xf]
        %v4372 = vld [vmem:[%s3 + $0x58] sm:$0xf]
        %v4373 = vld [vmem:[%s3 + $0x5c] sm:$0xf]
        %v4374 = vld [vmem:[%s3 + $0x60] sm:$0xf]
        %v4375 = vld [vmem:[%s3 + $0x64] sm:$0xf]
        %v4376 = vld [vmem:[%s3 + $0x68] sm:$0xf]
        %v4377 = vld [vmem:[%s3 + $0x6c] sm:$0xf]
        %v4378 = vld [vmem:[%s3 + $0x70] sm:$0xf]
        %v4379 = vld [vmem:[%s3 + $0x74] sm:$0xf]
        %v4380 = vld [vmem:[%s3 + $0x78] sm:$0xf]
        %v4381 = vld [vmem:[%s3 + $0x7c] sm:$0xf]
        %v4382 = vld [vmem:[%s3 + $0x80] sm:$0xf]
        %v4383 = vld [vmem:[%s3 + $0x84] sm:$0xf]
        %v4384 = vld [vmem:[%s3 + $0x88] sm:$0xf]
        %v4385 = vld [vmem:[%s3 + $0x8c] sm:$0xf]
        %v4386 = vld [vmem:[%s3 + $0x90] sm:$0xf]
        %v4387 = vld [vmem:[%s3 + $0x94] sm:$0xf]
        %v4388 = vld [vmem:[%s3 + $0x98] sm:$0xf]
        %v4389 = vld [vmem:[%s3 + $0x9c] sm:$0xf]
        %v4390 = vld [vmem:[%s3 + $0xa0] sm:$0xf]
        %v4391 = vld [vmem:[%s3 + $0xa4] sm:$0xf]
        %v4392 = vld [vmem:[%s3 + $0xa8] sm:$0xf]
        %v4393 = vld [vmem:[%s3 + $0xac] sm:$0xf]
        %v4394 = vld [vmem:[%s3 + $0xb0] sm:$0xf]
        %v4395 = vld [vmem:[%s3 + $0xb4] sm:$0xf]
        %v4396 = vld [vmem:[%s3 + $0xb8] sm:$0xf]
        %v4397 = vld [vmem:[%s3 + $0xbc] sm:$0xf]
        %v4398 = vld [vmem:[%s3 + $0xc0] sm:$0xf]
        %v4399 = vld [vmem:[%s3 + $0xc4] sm:$0xf]
        %v4400 = vld [vmem:[%s3 + $0xc8] sm:$0xf]
        %v4401 = vld [vmem:[%s3 + $0xcc] sm:$0xf]
        %v4402 = vld [vmem:[%s3 + $0xd0] sm:$0xf]
        %v4403 = vld [vmem:[%s3 + $0xd4] sm:$0xf]
        %v4404 = vld [vmem:[%s3 + $0xd8] sm:$0xf]
        %v4405 = vld [vmem:[%s3 + $0xdc] sm:$0xf]
        %v4406 = vld [vmem:[%s3 + $0xe0] sm:$0xf]
        %v4407 = vld [vmem:[%s3 + $0xe4] sm:$0xf]
        %v4408 = vld [vmem:[%s3 + $0xe8] sm:$0xf]
        %v4409 = vld [vmem:[%s3 + $0xec] sm:$0xf]
        %v4410 = vld [vmem:[%s3 + $0xf0] sm:$0xf]
        %v4411 = vld [vmem:[%s3 + $0xf4] sm:$0xf]
        %v4412 = vld [vmem:[%s3 + $0xf8] sm:$0xf]
        %v4413 = vld [vmem:[%s3 + $0xfc] sm:$0xf]
        %v4414 = vld [vmem:[%s3 + $0x100] sm:$0xf]
        %v4415 = vld [vmem:[%s3 + $0x104] sm:$0xf]
        %v4416 = vld [vmem:[%s3 + $0x108] sm:$0xf]
        %v4417 = vld [vmem:[%s3 + $0x10c] sm:$0xf]
        %v4418 = vld [vmem:[%s3 + $0x110] sm:$0xf]
        %v4419 = vld [vmem:[%s3 + $0x114] sm:$0xf]
        %v4420 = vld [vmem:[%s3 + $0x118] sm:$0xf]
        %v4421 = vld [vmem:[%s3 + $0x11c] sm:$0xf]
        %v4422 = vld [vmem:[%s4] sm:$0x1]
        %v4424 = vperm.slane %v4422, 0
        %v4474 = vunpack.c.l.b16 %v4302
        %v4475 = vunpack.c.h.b16 %v4302
        %v4476 = vunpack.c.l.b16 %v4303
        %v4477 = vunpack.c.h.b16 %v4303
        %v4478 = vunpack.c.l.b16 %v4304
        %v4479 = vunpack.c.l.b16 %v4305
        %v4480 = vunpack.c.h.b16 %v4305
        %v4481 = vunpack.c.l.b16 %v4306
        %v4482 = vunpack.c.h.b16 %v4306
        %v4483 = vunpack.c.l.b16 %v4307
        %v4484 = vunpack.c.l.b16 %v4308
        %v4485 = vunpack.c.h.b16 %v4308
        %v4486 = vunpack.c.l.b16 %v4309
        %v4487 = vunpack.c.h.b16 %v4309
        %v4488 = vunpack.c.l.b16 %v4310
        %v4489 = vunpack.c.l.b16 %v4311
        %v4490 = vunpack.c.h.b16 %v4311
        %v4491 = vunpack.c.l.b16 %v4312
        %v4492 = vunpack.c.h.b16 %v4312
        %v4493 = vunpack.c.l.b16 %v4313
        %v4494 = vunpack.c.l.b16 %v4314
        %v4495 = vunpack.c.h.b16 %v4314
        %v4496 = vunpack.c.l.b16 %v4315
        %v4497 = vunpack.c.h.b16 %v4315
        %v4498 = vunpack.c.l.b16 %v4316
        %v4499 = vunpack.c.l.b16 %v4317
        %v4500 = vunpack.c.h.b16 %v4317
        %v4501 = vunpack.c.l.b16 %v4318
        %v4502 = vunpack.c.h.b16 %v4318
        %v4503 = vunpack.c.l.b16 %v4319
        %v4504 = vunpack.c.l.b16 %v4320
        %v4505 = vunpack.c.h.b16 %v4320
        %v4506 = vunpack.c.l.b16 %v4321
        %v4507 = vunpack.c.h.b16 %v4321
        %v4508 = vunpack.c.l.b16 %v4322
        %v4509 = vunpack.c.l.b16 %v4323
        %v4510 = vunpack.c.h.b16 %v4323
        %v4511 = vunpack.c.l.b16 %v4324
        %v4512 = vunpack.c.h.b16 %v4324
        %v4513 = vunpack.c.l.b16 %v4325
        %v4514 = vunpack.c.l.b16 %v4326
        %v4515 = vunpack.c.h.b16 %v4326
        %v4516 = vunpack.c.l.b16 %v4327
        %v4517 = vunpack.c.h.b16 %v4327
        %v4518 = vunpack.c.l.b16 %v4328
        %v4519 = vunpack.c.l.b16 %v4329
        %v4520 = vunpack.c.h.b16 %v4329
        %v4521 = vunpack.c.l.b16 %v4330
        %v4522 = vunpack.c.h.b16 %v4330
        %v4523 = vunpack.c.l.b16 %v4331
        %v4524 = vunpack.c.l.b16 %v4332
        %v4525 = vunpack.c.h.b16 %v4332
        %v4526 = vunpack.c.l.b16 %v4333
        %v4527 = vunpack.c.h.b16 %v4333
        %v4528 = vunpack.c.l.b16 %v4334
        %v4529 = vunpack.c.l.b16 %v4335
        %v4530 = vunpack.c.h.b16 %v4335
        %v4531 = vunpack.c.l.b16 %v4336
        %v4532 = vunpack.c.h.b16 %v4336
        %v4533 = vunpack.c.l.b16 %v4337
        %v4534 = vunpack.c.l.b16 %v4338
        %v4535 = vunpack.c.h.b16 %v4338
        %v4536 = vunpack.c.l.b16 %v4339
        %v4537 = vunpack.c.h.b16 %v4339
        %v4538 = vunpack.c.l.b16 %v4340
        %v4539 = vunpack.c.l.b16 %v4341
        %v4540 = vunpack.c.h.b16 %v4341
        %v4541 = vunpack.c.l.b16 %v4342
        %v4542 = vunpack.c.h.b16 %v4342
        %v4543 = vunpack.c.l.b16 %v4343
        %v4544 = vunpack.c.l.b16 %v4344
        %v4545 = vunpack.c.h.b16 %v4344
        %v4546 = vunpack.c.l.b16 %v4345
        %v4547 = vunpack.c.h.b16 %v4345
        %v4548 = vunpack.c.l.b16 %v4346
        %v4549 = vunpack.c.l.b16 %v4347
        %v4550 = vunpack.c.h.b16 %v4347
        %v4551 = vunpack.c.l.b16 %v4348
        %v4552 = vunpack.c.h.b16 %v4348
        %v4553 = vunpack.c.l.b16 %v4349
        %v4554 = vpack.c.b16 %v4479, %v4474
        %v4555 = vpack.c.b16 %v4480, %v4475
        %v4556 = vpack.c.b16 %v4481, %v4476
        %v4557 = vpack.c.b16 %v4482, %v4477
        %v4558 = vpack.c.b16 %v4483, %v4478
        %v4559 = vpack.c.b16 %v4489, %v4484
        %v4560 = vpack.c.b16 %v4490, %v4485
        %v4561 = vpack.c.b16 %v4491, %v4486
        %v4562 = vpack.c.b16 %v4492, %v4487
        %v4563 = vpack.c.b16 %v4493, %v4488
        %v4564 = vpack.c.b16 %v4499, %v4494
        %v4565 = vpack.c.b16 %v4500, %v4495
        %v4566 = vpack.c.b16 %v4501, %v4496
        %v4567 = vpack.c.b16 %v4502, %v4497
        %v4568 = vpack.c.b16 %v4503, %v4498
        %v4569 = vpack.c.b16 %v4509, %v4504
        %v4570 = vpack.c.b16 %v4510, %v4505
        %v4571 = vpack.c.b16 %v4511, %v4506
        %v4572 = vpack.c.b16 %v4512, %v4507
        %v4573 = vpack.c.b16 %v4513, %v4508
        %v4574 = vpack.c.b16 %v4519, %v4514
        %v4575 = vpack.c.b16 %v4520, %v4515
        %v4576 = vpack.c.b16 %v4521, %v4516
        %v4577 = vpack.c.b16 %v4522, %v4517
        %v4578 = vpack.c.b16 %v4523, %v4518
        %v4579 = vpack.c.b16 %v4529, %v4524
        %v4580 = vpack.c.b16 %v4530, %v4525
        %v4581 = vpack.c.b16 %v4531, %v4526
        %v4582 = vpack.c.b16 %v4532, %v4527
        %v4583 = vpack.c.b16 %v4533, %v4528
        %v4584 = vpack.c.b16 %v4539, %v4534
        %v4585 = vpack.c.b16 %v4540, %v4535
        %v4586 = vpack.c.b16 %v4541, %v4536
        %v4587 = vpack.c.b16 %v4542, %v4537
        %v4588 = vpack.c.b16 %v4543, %v4538
        %v4589 = vpack.c.b16 %v4549, %v4544
        %v4590 = vpack.c.b16 %v4550, %v4545
        %v4591 = vpack.c.b16 %v4551, %v4546
        %v4592 = vpack.c.b16 %v4552, %v4547
        %v4593 = vpack.c.b16 %v4553, %v4548
        %v4698 = vunpack.c.l.b16 %v4350
        %v4699 = vunpack.c.l.b16 %v4351
        %v4700 = vunpack.c.l.b16 %v4352
        %v4701 = vunpack.c.l.b16 %v4353
        %v4702 = vunpack.c.l.b16 %v4354
        %v4703 = vunpack.c.l.b16 %v4355
        %v4704 = vunpack.c.l.b16 %v4356
        %v4705 = vunpack.c.l.b16 %v4357
        %v4706 = vunpack.c.l.b16 %v4358
        %v4707 = vunpack.c.l.b16 %v4359
        %v4708 = vunpack.c.l.b16 %v4360
        %v4709 = vunpack.c.l.b16 %v4361
        %v4710 = vunpack.c.l.b16 %v4362
        %v4711 = vunpack.c.l.b16 %v4363
        %v4712 = vunpack.c.l.b16 %v4364
        %v4713 = vunpack.c.l.b16 %v4365
        %v4714 = vunpack.c.l.b16 %v4366
        %v4715 = vunpack.c.l.b16 %v4367
        %v4716 = vunpack.c.l.b16 %v4368
        %v4717 = vunpack.c.l.b16 %v4369
        %v4718 = vunpack.c.l.b16 %v4370
        %v4719 = vunpack.c.l.b16 %v4371
        %v4720 = vunpack.c.l.b16 %v4372
        %v4721 = vunpack.c.l.b16 %v4373
        %v4722 = vunpack.c.l.b16 %v4374
        %v4723 = vunpack.c.l.b16 %v4375
        %v4724 = vunpack.c.l.b16 %v4376
        %v4725 = vunpack.c.l.b16 %v4377
        %v4726 = vunpack.c.l.b16 %v4378
        %v4727 = vunpack.c.l.b16 %v4379
        %v4728 = vunpack.c.l.b16 %v4380
        %v4729 = vunpack.c.l.b16 %v4381
        %v4730 = vunpack.c.l.b16 %v4382
        %v4731 = vunpack.c.l.b16 %v4383
        %v4732 = vunpack.c.l.b16 %v4384
        %v4733 = vunpack.c.l.b16 %v4385
        %v4734 = vunpack.c.l.b16 %v4386
        %v4735 = vunpack.c.l.b16 %v4387
        %v4736 = vunpack.c.l.b16 %v4388
        %v4737 = vunpack.c.l.b16 %v4389
        %v4738 = vunpack.c.l.b16 %v4390
        %v4739 = vunpack.c.l.b16 %v4391
        %v4740 = vunpack.c.l.b16 %v4392
        %v4741 = vunpack.c.l.b16 %v4393
        %v4742 = vunpack.c.l.b16 %v4394
        %v4743 = vunpack.c.l.b16 %v4395
        %v4744 = vunpack.c.l.b16 %v4396
        %v4745 = vunpack.c.l.b16 %v4397
        %v4746 = vunpack.c.l.b16 %v4398
        %v4747 = vunpack.c.l.b16 %v4399
        %v4748 = vunpack.c.l.b16 %v4400
        %v4749 = vunpack.c.l.b16 %v4401
        %v4750 = vunpack.c.l.b16 %v4402
        %v4751 = vunpack.c.l.b16 %v4403
        %v4752 = vunpack.c.l.b16 %v4404
        %v4753 = vunpack.c.l.b16 %v4405
        %v4754 = vunpack.c.l.b16 %v4406
        %v4755 = vunpack.c.l.b16 %v4407
        %v4756 = vunpack.c.l.b16 %v4408
        %v4757 = vunpack.c.l.b16 %v4409
        %v4758 = vunpack.c.l.b16 %v4410
        %v4759 = vunpack.c.l.b16 %v4411
        %v4760 = vunpack.c.l.b16 %v4412
        %v4761 = vunpack.c.l.b16 %v4413
        %v4762 = vunpack.c.l.b16 %v4414
        %v4763 = vunpack.c.l.b16 %v4415
        %v4764 = vunpack.c.l.b16 %v4416
        %v4765 = vunpack.c.l.b16 %v4417
        %v4766 = vunpack.c.l.b16 %v4418
        %v4767 = vunpack.c.l.b16 %v4419
        %v4768 = vunpack.c.l.b16 %v4420
        %v4769 = vunpack.c.l.b16 %v4421
        %v4770 = vpack.c.b16 %v4699, %v4698
        %v4771 = vpack.c.b16 %v4701, %v4700
        %v4772 = vpack.c.b16 %v4703, %v4702
        %v4773 = vpack.c.b16 %v4705, %v4704
        %v4774 = vpack.c.b16 %v4707, %v4706
        %v4775 = vpack.c.b16 %v4709, %v4708
        %v4776 = vpack.c.b16 %v4711, %v4710
        %v4777 = vpack.c.b16 %v4713, %v4712
        %v4778 = vpack.c.b16 %v4715, %v4714
        %v4779 = vpack.c.b16 %v4717, %v4716
        %v4780 = vpack.c.b16 %v4719, %v4718
        %v4781 = vpack.c.b16 %v4721, %v4720
        %v4782 = vpack.c.b16 %v4723, %v4722
        %v4783 = vpack.c.b16 %v4725, %v4724
        %v4784 = vpack.c.b16 %v4727, %v4726
        %v4785 = vpack.c.b16 %v4729, %v4728
        %v4786 = vpack.c.b16 %v4731, %v4730
        %v4787 = vpack.c.b16 %v4733, %v4732
        %v4788 = vpack.c.b16 %v4735, %v4734
        %v4789 = vpack.c.b16 %v4737, %v4736
        %v4790 = vpack.c.b16 %v4739, %v4738
        %v4791 = vpack.c.b16 %v4741, %v4740
        %v4792 = vpack.c.b16 %v4743, %v4742
        %v4793 = vpack.c.b16 %v4745, %v4744
        %v4794 = vpack.c.b16 %v4747, %v4746
        %v4795 = vpack.c.b16 %v4749, %v4748
        %v4796 = vpack.c.b16 %v4751, %v4750
        %v4797 = vpack.c.b16 %v4753, %v4752
        %v4798 = vpack.c.b16 %v4755, %v4754
        %v4799 = vpack.c.b16 %v4757, %v4756
        %v4800 = vpack.c.b16 %v4759, %v4758
        %v4801 = vpack.c.b16 %v4761, %v4760
        %v4802 = vpack.c.b16 %v4763, %v4762
        %v4803 = vpack.c.b16 %v4765, %v4764
        %v4804 = vpack.c.b16 %v4767, %v4766
        %v4805 = vpack.c.b16 %v4769, %v4768
        %vm4842 = vcmask 523264
        %v4844 = vsel %vm4842, %v4558, 0
        %v4847 = vsel %vm4842, %v4563, 0
        %v4850 = vsel %vm4842, %v4568, 0
        %v4853 = vsel %vm4842, %v4573, 0
        %v4856 = vsel %vm4842, %v4578, 0
        %v4859 = vsel %vm4842, %v4583, 0
        %v4862 = vsel %vm4842, %v4588, 0
        %v4865 = vsel %vm4842, %v4593, 0
        %4867 = vmatpush.bf16.msra.mxu0 %v4777
        %4868 = vmatpush.bf16.msra.mxu0 %v4776
        %4869 = vmatpush.bf16.msra.mxu0 %v4775
        %4870 = vmatpush.bf16.msra.mxu0 %v4774
        %4871 = vmatpush.bf16.msra.mxu0 %v4773
        %4872 = vmatpush.bf16.msra.mxu0 %v4772
        %4873 = vmatpush.bf16.msra.mxu0 %v4771
        %4874 = vmatpush.bf16.msra.mxu0 %v4770
        %4875 = vmatmul.bf16.gmra.mxu0 %v4554
        %v4876 = vpop.f32.mrf.mxu0
        %v4877 = vadd.f32 %v4424, %v4876
        %v4878 = vpop.f32.mrf.mxu0
        %v4879 = vadd.f32 %v4424, %v4878
        %4880 = vmatmul.bf16.gmra.mxu0 %v4559
        %v4881 = vpop.f32.mrf.mxu0
        %v4882 = vadd.f32 %v4424, %v4881
        %v4883 = vpop.f32.mrf.mxu0
        %v4884 = vadd.f32 %v4424, %v4883
        %4885 = vmatmul.bf16.gmra.mxu0 %v4564
        %v4886 = vpop.f32.mrf.mxu0
        %v4887 = vadd.f32 %v4424, %v4886
        %v4888 = vpop.f32.mrf.mxu0
        %v4889 = vadd.f32 %v4424, %v4888
        %4890 = vmatmul.bf16.gmra.mxu0 %v4569
        %v4891 = vpop.f32.mrf.mxu0
        %v4892 = vadd.f32 %v4424, %v4891
        %v4893 = vpop.f32.mrf.mxu0
        %v4894 = vadd.f32 %v4424, %v4893
        %4895 = vmatmul.bf16.gmra.mxu0 %v4574
        %v4896 = vpop.f32.mrf.mxu0
        %v4897 = vadd.f32 %v4424, %v4896
        %v4898 = vpop.f32.mrf.mxu0
        %v4899 = vadd.f32 %v4424, %v4898
        %4900 = vmatmul.bf16.gmra.mxu0 %v4579
        %v4901 = vpop.f32.mrf.mxu0
        %v4902 = vadd.f32 %v4424, %v4901
        %v4903 = vpop.f32.mrf.mxu0
        %v4904 = vadd.f32 %v4424, %v4903
        %4905 = vmatmul.bf16.gmra.mxu0 %v4584
        %v4906 = vpop.f32.mrf.mxu0
        %v4907 = vadd.f32 %v4424, %v4906
        %v4908 = vpop.f32.mrf.mxu0
        %v4909 = vadd.f32 %v4424, %v4908
        %4910 = vmatmul.bf16.gmra.mxu0 %v4589
        %v4911 = vpop.f32.mrf.mxu0
        %v4912 = vadd.f32 %v4424, %v4911
        %v4913 = vpop.f32.mrf.mxu0
        %v4914 = vadd.f32 %v4424, %v4913
        %4915 = vdwg.mxu0
        %4916 = vmatpush.bf16.msra.mxu0 %v4785
        %4917 = vmatpush.bf16.msra.mxu0 %v4784
        %4918 = vmatpush.bf16.msra.mxu0 %v4783
        %4919 = vmatpush.bf16.msra.mxu0 %v4782
        %4920 = vmatpush.bf16.msra.mxu0 %v4781
        %4921 = vmatpush.bf16.msra.mxu0 %v4780
        %4922 = vmatpush.bf16.msra.mxu0 %v4779
        %4923 = vmatpush.bf16.msra.mxu0 %v4778
        %4924 = vmatmul.bf16.gmra.mxu0 %v4555
        %v4925 = vpop.f32.mrf.mxu0
        %v4926 = vadd.f32 %v4877, %v4925
        %v4927 = vpop.f32.mrf.mxu0
        %v4928 = vadd.f32 %v4879, %v4927
        %4929 = vmatmul.bf16.gmra.mxu0 %v4560
        %v4930 = vpop.f32.mrf.mxu0
        %v4931 = vadd.f32 %v4882, %v4930
        %v4932 = vpop.f32.mrf.mxu0
        %v4933 = vadd.f32 %v4884, %v4932
        %4934 = vmatmul.bf16.gmra.mxu0 %v4565
        %v4935 = vpop.f32.mrf.mxu0
        %v4936 = vadd.f32 %v4887, %v4935
        %v4937 = vpop.f32.mrf.mxu0
        %v4938 = vadd.f32 %v4889, %v4937
        %4939 = vmatmul.bf16.gmra.mxu0 %v4570
        %v4940 = vpop.f32.mrf.mxu0
        %v4941 = vadd.f32 %v4892, %v4940
        %v4942 = vpop.f32.mrf.mxu0
        %v4943 = vadd.f32 %v4894, %v4942
        %4944 = vmatmul.bf16.gmra.mxu0 %v4575
        %v4945 = vpop.f32.mrf.mxu0
        %v4946 = vadd.f32 %v4897, %v4945
        %v4947 = vpop.f32.mrf.mxu0
        %v4948 = vadd.f32 %v4899, %v4947
        %4949 = vmatmul.bf16.gmra.mxu0 %v4580
        %v4950 = vpop.f32.mrf.mxu0
        %v4951 = vadd.f32 %v4902, %v4950
        %v4952 = vpop.f32.mrf.mxu0
        %v4953 = vadd.f32 %v4904, %v4952
        %4954 = vmatmul.bf16.gmra.mxu0 %v4585
        %v4955 = vpop.f32.mrf.mxu0
        %v4956 = vadd.f32 %v4907, %v4955
        %v4957 = vpop.f32.mrf.mxu0
        %v4958 = vadd.f32 %v4909, %v4957
        %4959 = vmatmul.bf16.gmra.mxu0 %v4590
        %v4960 = vpop.f32.mrf.mxu0
        %v4961 = vadd.f32 %v4912, %v4960
        %v4962 = vpop.f32.mrf.mxu0
        %v4963 = vadd.f32 %v4914, %v4962
        %4964 = vdwg.mxu0
        %4965 = vmatpush.bf16.msra.mxu0 %v4793
        %4966 = vmatpush.bf16.msra.mxu0 %v4792
        %4967 = vmatpush.bf16.msra.mxu0 %v4791
        %4968 = vmatpush.bf16.msra.mxu0 %v4790
        %4969 = vmatpush.bf16.msra.mxu0 %v4789
        %4970 = vmatpush.bf16.msra.mxu0 %v4788
        %4971 = vmatpush.bf16.msra.mxu0 %v4787
        %4972 = vmatpush.bf16.msra.mxu0 %v4786
        %4973 = vmatmul.bf16.gmra.mxu0 %v4556
        %v4974 = vpop.f32.mrf.mxu0
        %v4975 = vadd.f32 %v4926, %v4974
        %v4976 = vpop.f32.mrf.mxu0
        %v4977 = vadd.f32 %v4928, %v4976
        %4978 = vmatmul.bf16.gmra.mxu0 %v4561
        %v4979 = vpop.f32.mrf.mxu0
        %v4980 = vadd.f32 %v4931, %v4979
        %v4981 = vpop.f32.mrf.mxu0
        %v4982 = vadd.f32 %v4933, %v4981
        %4983 = vmatmul.bf16.gmra.mxu0 %v4566
        %v4984 = vpop.f32.mrf.mxu0
        %v4985 = vadd.f32 %v4936, %v4984
        %v4986 = vpop.f32.mrf.mxu0
        %v4987 = vadd.f32 %v4938, %v4986
        %4988 = vmatmul.bf16.gmra.mxu0 %v4571
        %v4989 = vpop.f32.mrf.mxu0
        %v4990 = vadd.f32 %v4941, %v4989
        %v4991 = vpop.f32.mrf.mxu0
        %v4992 = vadd.f32 %v4943, %v4991
        %4993 = vmatmul.bf16.gmra.mxu0 %v4576
        %v4994 = vpop.f32.mrf.mxu0
        %v4995 = vadd.f32 %v4946, %v4994
        %v4996 = vpop.f32.mrf.mxu0
        %v4997 = vadd.f32 %v4948, %v4996
        %4998 = vmatmul.bf16.gmra.mxu0 %v4581
        %v4999 = vpop.f32.mrf.mxu0
        %v5000 = vadd.f32 %v4951, %v4999
        %v5001 = vpop.f32.mrf.mxu0
        %v5002 = vadd.f32 %v4953, %v5001
        %5003 = vmatmul.bf16.gmra.mxu0 %v4586
        %v5004 = vpop.f32.mrf.mxu0
        %v5005 = vadd.f32 %v4956, %v5004
        %v5006 = vpop.f32.mrf.mxu0
        %v5007 = vadd.f32 %v4958, %v5006
        %5008 = vmatmul.bf16.gmra.mxu0 %v4591
        %v5009 = vpop.f32.mrf.mxu0
        %v5010 = vadd.f32 %v4961, %v5009
        %v5011 = vpop.f32.mrf.mxu0
        %v5012 = vadd.f32 %v4963, %v5011
        %5013 = vdwg.mxu0
        %5014 = vmatpush.bf16.msra.mxu0 %v4801
        %5015 = vmatpush.bf16.msra.mxu0 %v4800
        %5016 = vmatpush.bf16.msra.mxu0 %v4799
        %5017 = vmatpush.bf16.msra.mxu0 %v4798
        %5018 = vmatpush.bf16.msra.mxu0 %v4797
        %5019 = vmatpush.bf16.msra.mxu0 %v4796
        %5020 = vmatpush.bf16.msra.mxu0 %v4795
        %5021 = vmatpush.bf16.msra.mxu0 %v4794
        %5022 = vmatmul.bf16.gmra.mxu0 %v4557
        %v5023 = vpop.f32.mrf.mxu0
        %v5024 = vadd.f32 %v4975, %v5023
        %v5025 = vpop.f32.mrf.mxu0
        %v5026 = vadd.f32 %v4977, %v5025
        %5027 = vmatmul.bf16.gmra.mxu0 %v4562
        %v5028 = vpop.f32.mrf.mxu0
        %v5029 = vadd.f32 %v4980, %v5028
        %v5030 = vpop.f32.mrf.mxu0
        %v5031 = vadd.f32 %v4982, %v5030
        %5032 = vmatmul.bf16.gmra.mxu0 %v4567
        %v5033 = vpop.f32.mrf.mxu0
        %v5034 = vadd.f32 %v4985, %v5033
        %v5035 = vpop.f32.mrf.mxu0
        %v5036 = vadd.f32 %v4987, %v5035
        %5037 = vmatmul.bf16.gmra.mxu0 %v4572
        %v5038 = vpop.f32.mrf.mxu0
        %v5039 = vadd.f32 %v4990, %v5038
        %v5040 = vpop.f32.mrf.mxu0
        %v5041 = vadd.f32 %v4992, %v5040
        %5042 = vmatmul.bf16.gmra.mxu0 %v4577
        %v5043 = vpop.f32.mrf.mxu0
        %v5044 = vadd.f32 %v4995, %v5043
        %v5045 = vpop.f32.mrf.mxu0
        %v5046 = vadd.f32 %v4997, %v5045
        %5047 = vmatmul.bf16.gmra.mxu0 %v4582
        %v5048 = vpop.f32.mrf.mxu0
        %v5049 = vadd.f32 %v5000, %v5048
        %v5050 = vpop.f32.mrf.mxu0
        %v5051 = vadd.f32 %v5002, %v5050
        %5052 = vmatmul.bf16.gmra.mxu0 %v4587
        %v5053 = vpop.f32.mrf.mxu0
        %v5054 = vadd.f32 %v5005, %v5053
        %v5055 = vpop.f32.mrf.mxu0
        %v5056 = vadd.f32 %v5007, %v5055
        %5057 = vmatmul.bf16.gmra.mxu0 %v4592
        %v5058 = vpop.f32.mrf.mxu0
        %v5059 = vadd.f32 %v5010, %v5058
        %v5060 = vpop.f32.mrf.mxu0
        %v5061 = vadd.f32 %v5012, %v5060
        %5062 = vdwg.mxu0
        %5063 = vmatpush.bf16.msra.mxu0 0
        %5064 = vmatpush.bf16.msra.mxu0 0
        %5065 = vmatpush.bf16.msra.mxu0 0
        %5066 = vmatpush.bf16.msra.mxu0 0
        %5067 = vmatpush.bf16.msra.mxu0 %v4805
        %5068 = vmatpush.bf16.msra.mxu0 %v4804
        %5069 = vmatpush.bf16.msra.mxu0 %v4803
        %5070 = vmatpush.bf16.msra.mxu0 %v4802
        %5071 = vmatmul.bf16.gmra.mxu0 %v4844
        %v5072 = vpop.f32.mrf.mxu0
        %v5073 = vadd.f32 %v5024, %v5072
        %v5074 = vpop.f32.mrf.mxu0
        %v5075 = vadd.f32 %v5026, %v5074
        %5076 = vmatmul.bf16.gmra.mxu0 %v4847
        %v5077 = vpop.f32.mrf.mxu0
        %v5078 = vadd.f32 %v5029, %v5077
        %v5079 = vpop.f32.mrf.mxu0
        %v5080 = vadd.f32 %v5031, %v5079
        %5081 = vmatmul.bf16.gmra.mxu0 %v4850
        %v5082 = vpop.f32.mrf.mxu0
        %v5083 = vadd.f32 %v5034, %v5082
        %v5084 = vpop.f32.mrf.mxu0
        %v5085 = vadd.f32 %v5036, %v5084
        %5086 = vmatmul.bf16.gmra.mxu0 %v4853
        %v5087 = vpop.f32.mrf.mxu0
        %v5088 = vadd.f32 %v5039, %v5087
        %v5089 = vpop.f32.mrf.mxu0
        %v5090 = vadd.f32 %v5041, %v5089
        %5091 = vmatmul.bf16.gmra.mxu0 %v4856
        %v5092 = vpop.f32.mrf.mxu0
        %v5093 = vadd.f32 %v5044, %v5092
        %v5094 = vpop.f32.mrf.mxu0
        %v5095 = vadd.f32 %v5046, %v5094
        %5096 = vmatmul.bf16.gmra.mxu0 %v4859
        %v5097 = vpop.f32.mrf.mxu0
        %v5098 = vadd.f32 %v5049, %v5097
        %v5099 = vpop.f32.mrf.mxu0
        %v5100 = vadd.f32 %v5051, %v5099
        %5101 = vmatmul.bf16.gmra.mxu0 %v4862
        %v5102 = vpop.f32.mrf.mxu0
        %v5103 = vadd.f32 %v5054, %v5102
        %v5104 = vpop.f32.mrf.mxu0
        %v5105 = vadd.f32 %v5056, %v5104
        %5106 = vmatmul.bf16.gmra.mxu0 %v4865
        %v5107 = vpop.f32.mrf.mxu0
        %v5108 = vadd.f32 %v5059, %v5107
        %v5109 = vpop.f32.mrf.mxu0
        %v5110 = vadd.f32 %v5061, %v5109
        %5111 = vdwg.mxu0
        %v5112 = vmax.f32 %v5073, 0.0
        %v5113 = vmax.f32 %v5075, 0.0
        %v5114 = vmax.f32 %v5078, 0.0
        %v5115 = vmax.f32 %v5080, 0.0
        %v5116 = vmax.f32 %v5083, 0.0
        %v5117 = vmax.f32 %v5085, 0.0
        %v5118 = vmax.f32 %v5088, 0.0
        %v5119 = vmax.f32 %v5090, 0.0
        %v5120 = vmax.f32 %v5093, 0.0
        %v5121 = vmax.f32 %v5095, 0.0
        %v5122 = vmax.f32 %v5098, 0.0
        %v5123 = vmax.f32 %v5100, 0.0
        %v5124 = vmax.f32 %v5103, 0.0
        %v5125 = vmax.f32 %v5105, 0.0
        %v5126 = vmax.f32 %v5108, 0.0
        %v5127 = vmax.f32 %v5110, 0.0
        %v5128 = vpack.c.bf16 %v5112, %v5112
        %v5129 = vpack.c.bf16 %v5113, %v5113
        %v5130 = vpack.c.bf16 %v5114, %v5114
        %v5131 = vpack.c.bf16 %v5115, %v5115
        %v5132 = vpack.c.bf16 %v5116, %v5116
        %v5133 = vpack.c.bf16 %v5117, %v5117
        %v5134 = vpack.c.bf16 %v5118, %v5118
        %v5135 = vpack.c.bf16 %v5119, %v5119
        %v5136 = vpack.c.bf16 %v5120, %v5120
        %v5137 = vpack.c.bf16 %v5121, %v5121
        %v5138 = vpack.c.bf16 %v5122, %v5122
        %v5139 = vpack.c.bf16 %v5123, %v5123
        %v5140 = vpack.c.bf16 %v5124, %v5124
        %v5141 = vpack.c.bf16 %v5125, %v5125
        %v5142 = vpack.c.bf16 %v5126, %v5126
        %v5143 = vpack.c.bf16 %v5127, %v5127
        %5144 = vst.msk [vmem:[%s231] sm:$0xf] %vm2760, %v5128
        %5145 = vst.msk [vmem:[%s231 + $0x4] sm:$0xf] %vm2760, %v5129
        %5146 = vst.msk [vmem:[%s231 + $0x8] sm:$0xf] %vm2760, %v5130
        %5147 = vst.msk [vmem:[%s231 + $0xc] sm:$0xf] %vm2760, %v5131
        %5148 = vst.msk [vmem:[%s231 + $0x10] sm:$0xf] %vm2760, %v5132
        %5149 = vst.msk [vmem:[%s231 + $0x14] sm:$0xf] %vm2760, %v5133
        %5150 = vst.msk [vmem:[%s231 + $0x18] sm:$0xf] %vm2760, %v5134
        %5151 = vst.msk [vmem:[%s231 + $0x1c] sm:$0xf] %vm2760, %v5135
        %5152 = vst.msk [vmem:[%s231 + $0x20] sm:$0xf] %vm2760, %v5136
        %5153 = vst.msk [vmem:[%s231 + $0x24] sm:$0xf] %vm2760, %v5137
        %5154 = vst.msk [vmem:[%s231 + $0x28] sm:$0xf] %vm2760, %v5138
        %5155 = vst.msk [vmem:[%s231 + $0x2c] sm:$0xf] %vm2760, %v5139
        %5156 = vst.msk [vmem:[%s231 + $0x30] sm:$0xf] %vm2760, %v5140
        %5157 = vst.msk [vmem:[%s231 + $0x34] sm:$0xf] %vm2760, %v5141
        %5158 = vst.msk [vmem:[%s231 + $0x38] sm:$0xf] %vm2760, %v5142
        %5159 = vst.msk [vmem:[%s231 + $0x3c] sm:$0xf] %vm2760, %v5143
        %s5160 = sand.u32 %s151, 1
        %s5161 = scalar_lea.sflag [#allocation6], %s5160
        %s5162 = sand.u32 %s151, 1
        %s5163 = smul.addr %s5162, 64
        %s5164 = scalar_lea.vmem [#allocation5], %s5163
        // Predicated region
        $region41: #{tpu_custom_call.1} parent=39 // pred_check
          %p5165 = pneg %p161
        $region42: #{tpu_custom_call.1} parent=39 // pred_check_branch
          %5167 = sbr.rel (%p5165) target = $region44
        $region43: #{tpu_custom_call.1} parent=39 // pred_region
          %s5168 = smul.u32 8, %s24
          %5170 = vsyncadd %s5161, 0
          %s5171 = smul.addr %s5168, 2
          %s5172 = smul.addr %s23, 32
          %s5173 = sadd.s32 %s5171, %s5172
          %s5174 = smul.addr %s5173, 4
          %s5175 = scalar_lea.hbm %s5, %s5174
          %s5176 = sshll.u32 %s5164, 4
          %s5177 = int_to_ptr.vmem [resolvable:$true] %s5176
          %s5178 = sshll.u32 %s5175, 4
          %s5179 = int_to_ptr.hbm [resolvable:$true] %s5178
          %5184 = dma.vmem_to_hbm [thread:$0]  %s5177, 1024, %s5179, %s5161, 64, 64, 4
        $region44: #{tpu_custom_call.1} parent=39 // pred_fallthru
          _
      $region40: #{tpu_custom_call.1} parent=5 // pred_fallthru
        _
      %p5185 = scmp.le.s32.totalorder 2, %s14
      // Predicated region
      $region45: #{tpu_custom_call.1} parent=5 // pred_check
        %p5186 = pneg %p5185
      $region46: #{tpu_custom_call.1} parent=5 // pred_check_branch
        %5188 = sbr.rel (%p5186) target = $region48
      $region47: #{tpu_custom_call.1} parent=5 // pred_region
        %s5189 = ssub.s32 %s14, 2
        // Predicated region
        $region49: #{tpu_custom_call.1} parent=47 // pred_check
          %p5190 = pneg %p167
        $region50: #{tpu_custom_call.1} parent=47 // pred_check_branch
          %5192 = sbr.rel (%p5190) target = $region52
        $region51: #{tpu_custom_call.1} parent=47 // pred_region
          %s5193 = sand.u32 %s152, 1
          %s5194 = scalar_lea.sflag [#allocation6], %s5193
          %s5195 = sand.u32 %s152, 1
          %s5196 = smul.addr %s5195, 64
          %s5197 = scalar_lea.vmem [#allocation5], %s5196
          %5199 = dma.done %s5194, 1024
        $region52: #{tpu_custom_call.1} parent=47 // pred_fallthru
          _
      $region48: #{tpu_custom_call.1} parent=5 // pred_fallthru
        _
    $region6: #{tpu_custom_call.1} parent=1 // loop_footer
      %s18 = sadd.s32 1, %s14
    $region7: #{tpu_custom_call.1} parent=1 // loop_footer_branch
      %13 = sbr.rel target = $region3
    $region8: #{tpu_custom_call.1} parent=1 // loop_exit
      _
    %5200 = vsyncpa [#allocation6], 1
    %s5201 = scalar_lea.sflag [#allocation6], 1
    %5202 = vsyncpa %s5201, 1

</llo_original>
